<compile_context>
chip_gen: v7x
topology: tpu7x:2x2x1
jax: 0.10.0
libtpu: 0.0.40
codegen_flags: <defaults>
</compile_context>

<pallas_src>
import functools

import jax
import jax.numpy as jnp
from jax.experimental import pallas as pl
from jax.experimental.pallas import tpu as pltpu

# ----------------------------- model config (small) -----------------------------
AUDIO_STRIDE = 320          # class constant _audio_embed_stride
NUM_CONV = 4                # default num_conv
NUM_CHANNELS = 8            # constructor arg (default 32; small here)
NUM_CHANNELS_MAX = 256
HIDDEN_SIZE = 32            # constructor arg (default 128; small here)
EMB_DIMS = (16, 8)          # embedding_dims
BN_EPS = 1e-5

_CHANNELS = [NUM_CHANNELS] + [min(NUM_CHANNELS_MAX, NUM_CHANNELS * 2 ** i)
                              for i in range(NUM_CONV)]        # [8, 8, 16, 32, 64]
_CMAX = max(_CHANNELS)
_D_TOT = sum(EMB_DIMS)


def _round_up(x, mult):
    return (x + mult - 1) // mult * mult


def _const_spec(shape):
    nd = len(shape)
    return pl.BlockSpec(shape, lambda i, _nd=nd: (0,) * _nd)    # VMEM-resident, DMA'd once


# ----------------------------- fused Pallas kernel ------------------------------
def _fused_forward_kernel(x_ref, ew_ref, *refs, n, t, m, tile_m, channels):
    """Whole forward in one kernel; grid axis streams the (N*T, 320) frame rows.

    refs layout (after x_ref, ew_ref):
      per conv layer i (x NUM_CONV):
        w_ref_i   (3, Cin, Cout)    bf16   conv taps
        gb_ref_i  (2, Cout)         f32    rows = [bn gamma, bn beta]
      lw_ref      (C_last, H)       bf16
      lb_ref      (1, H)            f32
      hw_ref      (H, D_tot)        bf16   both heads concatenated
      hb_ref      (1, D_tot)        f32
      out_ref     (1, D_tot)        f32
      emb_scr     (M_pad, C0)       bf16   scratch: streamed embed-conv output
      act_scr     (N, T+2, Cmax)    bf16   scratch: time-halo-padded activations
    """
    num_conv = len(channels) - 1
    conv_refs = refs[:2 * num_conv]
    (lw_ref, lb_ref, hw_ref, hb_ref,
     out_ref, emb_scr, act_scr) = refs[2 * num_conv:]

    step = pl.program_id(0)

    # ---- stage 1 (every grid step): audio embed conv on the streamed x tile ----
    # kernel = stride = 320  =>  (tile_m, 320) @ (320, C0); NO bias (torch key bug).
    y0 = jnp.dot(x_ref[...], ew_ref[...], preferred_element_type=jnp.float32)
    row0 = pl.multiple_of(step * tile_m, tile_m)
    emb_scr[pl.ds(row0, tile_m), :] = y0.astype(emb_scr.dtype)

    # ---- stage 2 (last grid step only): conv stack + head, entirely from VMEM ----
    @pl.when(step == pl.num_programs(0) - 1)
    def _stage2():
        c0 = channels[0]
        inv_m = 1.0 / float(m)

        # zero ONLY the two time-halo rows; interior rows are fully overwritten below.
        zero_row = jnp.zeros((n, 1, act_scr.shape[-1]), act_scr.dtype)
        act_scr[:, 0:1, :] = zero_row
        act_scr[:, t + 1:t + 2, :] = zero_row

        # gather the streamed embed output (first m rows only; pad rows are zeros anyway)
        emb_all = emb_scr[...]
        act_scr[:, 1:t + 1, :c0] = emb_all[:m].reshape(n, t, c0)

        # ---- NUM_CONV x (Conv1d k=3 pad=1 -> BN(train, batch stats) -> ReLU) ----
        y = None
        for i in range(num_conv):
            cin, cout = channels[i], channels[i + 1]
            w_ref = conv_refs[2 * i]        # (3, Cin, Cout) bf16
            gb_ref = conv_refs[2 * i + 1]   # (2, Cout)      f32

            acc = None
            for d in range(3):              # 3 shifted taps straight from bf16 scratch
                tap = act_scr[:, d:d + t, :cin].reshape(m, cin)
                part = jnp.dot(tap, w_ref[d], preferred_element_type=jnp.float32)
                acc = part if acc is None else acc + part
            # conv bias intentionally dropped: training-mode BN subtracts the batch mean,
            # so a constant per-channel bias is an exact no-op.

            # two-pass (mean-subtracted) batch statistics over (N, T)
            mean = jnp.sum(acc, axis=0, keepdims=True) * inv_m
            cen = acc - mean
            var = jnp.sum(cen * cen, axis=0, keepdims=True) * inv_m
            scale = gb_ref[0:1, :] * jax.lax.rsqrt(var + BN_EPS)
            y = jnp.maximum(cen * scale + gb_ref[1:2, :], 0.0)       # BN + ReLU, f32

            if i + 1 < num_conv:             # last layer stays in registers for the pool
                act_scr[:, 1:t + 1, :cout] = y.reshape(n, t, cout).astype(act_scr.dtype)

        # ---- avgpool over time -> Linear -> ReLU -> max over batch -> fused heads ----
        c_last = channels[-1]
        pooled = jnp.mean(y.reshape(n, t, c_last), axis=1)            # (N, C_last) f32
        h = jnp.dot(pooled.astype(jnp.bfloat16), lw_ref[...],
                    preferred_element_type=jnp.float32) + lb_ref[...]
        h = jnp.maximum(h, 0.0)
        emb = jnp.max(h, axis=0, keepdims=True)                       # (1, H)
        out_ref[...] = jnp.dot(emb.astype(jnp.bfloat16), hw_ref[...],
                               preferred_element_type=jnp.float32) + hb_ref[...]


# ----------------------------- full forward -------------------------------------
def model_forward(x_ncl, params, *, tile_m=512):
    N = x_ncl.shape[0]
    L = x_ncl.shape[2]
    T = L // AUDIO_STRIDE
    M = N * T

    # torch Conv1d(k=320, stride=320) silently drops the ragged tail -> truncate first
    x2d = x_ncl[:, 0, :T * AUDIO_STRIDE].reshape(M, AUDIO_STRIDE).astype(jnp.bfloat16)

    tile_m = int(min(_round_up(tile_m, 8), _round_up(M, 8)))
    m_pad = _round_up(M, tile_m)
    if m_pad > M:                               # zero-pad; stats inside still divide by M
        x2d = jnp.pad(x2d, ((0, m_pad - M), (0, 0)))
    grid = (m_pad // tile_m,)

    C0 = _CHANNELS[0]
    ew = jnp.transpose(params['embed_w'].reshape(C0, AUDIO_STRIDE)).astype(jnp.bfloat16)

    inputs = [x2d, ew]
    for i in range(NUM_CONV):
        w = jnp.transpose(params[f'conv{i}_w'], (2, 1, 0)).astype(jnp.bfloat16)  # (3,Cin,Cout)
        gb = jnp.stack([params[f'bn{i}_g'], params[f'bn{i}_b']], axis=0).astype(jnp.float32)
        inputs += [w, gb]

    lw = jnp.transpose(params['lin_w']).astype(jnp.bfloat16)                     # (C_last, H)
    lb = params['lin_b'].reshape(1, HIDDEN_SIZE).astype(jnp.float32)
    hw = jnp.concatenate([jnp.transpose(params[f'head{j}_w'])
                          for j in range(len(EMB_DIMS))], axis=1).astype(jnp.bfloat16)
    hb = jnp.concatenate([params[f'head{j}_b'] for j in range(len(EMB_DIMS))]
                         ).reshape(1, _D_TOT).astype(jnp.float32)
    inputs += [lw, lb, hw, hb]

    in_specs = [pl.BlockSpec((tile_m, AUDIO_STRIDE), lambda i: (i, 0))]   # streamed x
    in_specs += [_const_spec(a.shape) for a in inputs[1:]]                # VMEM residents

    # VMEM budget (bf16 scratches + double-buffered x tile + f32 conv/BN temps at the end)
    act_bytes = N * (T + 2) * _CMAX * 2
    emb_bytes = m_pad * C0 * 2
    xbuf_bytes = 2 * tile_m * AUDIO_STRIDE * 2
    temp_bytes = 4 * m_pad * _CMAX * 4
    vmem_limit = int(min(max(act_bytes + emb_bytes + xbuf_bytes + temp_bytes + (8 << 20),
                             32 << 20), 100 << 20))

    flops = 2 * M * AUDIO_STRIDE * C0
    for i in range(NUM_CONV):
        flops += 2 * M * 3 * _CHANNELS[i] * _CHANNELS[i + 1]
    flops += 2 * N * _CHANNELS[-1] * HIDDEN_SIZE + 2 * HIDDEN_SIZE * _D_TOT
    bytes_accessed = int(sum(a.size * a.dtype.itemsize for a in inputs) + _D_TOT * 4)

    kernel = functools.partial(_fused_forward_kernel, n=N, t=T, m=M,
                               tile_m=tile_m, channels=tuple(_CHANNELS))

    out = pl.pallas_call(
        kernel,
        out_shape=jax.ShapeDtypeStruct((1, _D_TOT), jnp.float32),
        grid=grid,
        in_specs=in_specs,
        out_specs=pl.BlockSpec((1, _D_TOT), lambda i: (0, 0)),
        scratch_shapes=[pltpu.VMEM((m_pad, C0), jnp.bfloat16),
                        pltpu.VMEM((N, T + 2, _CMAX), jnp.bfloat16)],
        compiler_params=pltpu.CompilerParams(
            dimension_semantics=("arbitrary",),          # grid axis carries the scratches
            vmem_limit_bytes=vmem_limit),
        cost_estimate=pl.CostEstimate(flops=int(flops),
                                      transcendentals=NUM_CONV * _CMAX,
                                      bytes_accessed=bytes_accessed),
    )(*inputs)

    # split the fused head output back into per-head embeddings
    outs, off = [], 0
    for d in EMB_DIMS:
        outs.append(out[:, off:off + d])
        off += d
    return outs


# ----------------------------- pure-JAX reference --------------------------------
def reference_forward(x_ncl, params):
    N, _, L = x_ncl.shape
    T = L // AUDIO_STRIDE
    C0 = params['embed_w'].shape[0]
    x = x_ncl[:, 0, :T * AUDIO_STRIDE].reshape(N * T, AUDIO_STRIDE) \
        @ params['embed_w'].reshape(C0, AUDIO_STRIDE).T
    x = x.reshape(N, T, C0)
    for i in range(NUM_CONV):
        w = params[f'conv{i}_w']
        Cout = w.shape[0]
        xp = jnp.pad(x, ((0, 0), (1, 1), (0, 0)))
        acc = jnp.zeros((N, T, Cout), jnp.float32)
        for d in range(3):
            acc = acc + jnp.einsum('ntc,oc->nto', xp[:, d:d + T, :], w[:, :, d])
        acc = acc + params[f'conv{i}_b']
        mu = jnp.mean(acc, axis=(0, 1), keepdims=True)
        v = jnp.mean((acc - mu) ** 2, axis=(0, 1), keepdims=True)
        x = jnp.maximum((acc - mu) / jnp.sqrt(v + BN_EPS) * params[f'bn{i}_g']
                        + params[f'bn{i}_b'], 0.0)
    feat = jnp.mean(x, axis=1)
    h = jnp.maximum(feat @ params['lin_w'].T + params['lin_b'], 0.0)
    emb_in = jnp.max(h, axis=0, keepdims=True)
    return [emb_in @ params[f'head{j}_w'].T + params[f'head{j}_b']
            for j in range(len(EMB_DIMS))]


# ----------------------------- parameter init ------------------------------------
def init_params(key):
    params = {}
    keys = iter(jax.random.split(key, 4 * NUM_CONV + 2 * len(EMB_DIMS) + 4))
    params['embed_w'] = 0.1 * jax.random.normal(next(keys),
                                                (_CHANNELS[0], 1, AUDIO_STRIDE), jnp.float32)
    for i in range(NUM_CONV):
        cin, cout = _CHANNELS[i], _CHANNELS[i + 1]
        params[f'conv{i}_w'] = 0.1 * jax.random.normal(next(keys), (cout, cin, 3), jnp.float32)
        params[f'conv{i}_b'] = 0.1 * jax.random.normal(next(keys), (cout,), jnp.float32)
        params[f'bn{i}_g'] = 1.0 + 0.1 * jax.random.normal(next(keys), (cout,), jnp.float32)
        params[f'bn{i}_b'] = 0.1 * jax.random.normal(next(keys), (cout,), jnp.float32)
    c_last = _CHANNELS[-1]
    params['lin_w'] = 0.1 * jax.random.normal(next(keys), (HIDDEN_SIZE, c_last), jnp.float32)
    params['lin_b'] = 0.1 * jax.random.normal(next(keys), (HIDDEN_SIZE,), jnp.float32)
    for j, dim in enumerate(EMB_DIMS):
        params[f'head{j}_w'] = 0.1 * jax.random.normal(next(keys), (dim, HIDDEN_SIZE), jnp.float32)
        params[f'head{j}_b'] = 0.1 * jax.random.normal(next(keys), (dim,), jnp.float32)
    return params


# ----------------------------- main ----------------------------------------------
if __name__ == "__main__":
    key = jax.random.PRNGKey(0)
    kx1, kx2, kp = jax.random.split(key, 3)
    params = init_params(kp)

    # case 1: N*T divisible by the row tile -> 4-step pipelined x stream, no padding
    N1, T1 = 4, 16
    x1 = jax.random.normal(kx1, (N1, 1, AUDIO_STRIDE * T1), jnp.float32)   # (4, 1, 5120)
    # case 2: N*T NOT divisible by the row tile -> exercises the zero-padded tail path
    N2, T2 = 3, 8
    x2 = jax.random.normal(kx2, (N2, 1, AUDIO_STRIDE * T2), jnp.float32)   # (3, 1, 2560)

    for x in (x1, x2):
        fwd = jax.jit(functools.partial(model_forward, tile_m=16))
        outs = jax.block_until_ready(fwd(x, params))
        refs = reference_forward(x, params)
        for o, r, d in zip(outs, refs, EMB_DIMS):
            assert o.shape == (1, d), (o.shape, d)
            # loose tolerance: bf16 MXU operands / bf16 activation scratch vs f32 reference
            assert jnp.allclose(o, r, rtol=5e-2, atol=5e-2), float(jnp.max(jnp.abs(o - r)))

    print("KERNEL_OK")
</pallas_src>

<mosaic_0001>
module attributes {stable_mosaic.version = 11 : i64} {
  func.func @_fused_forward_kernel(%arg0: i32, %arg1: memref<16x320xbf16, #tpu.memory_space<vmem>>, %arg2: memref<320x8xbf16, #tpu.memory_space<vmem>>, %arg3: memref<3x8x8xbf16, #tpu.memory_space<vmem>>, %arg4: memref<2x8xf32, #tpu.memory_space<vmem>>, %arg5: memref<3x8x16xbf16, #tpu.memory_space<vmem>>, %arg6: memref<2x16xf32, #tpu.memory_space<vmem>>, %arg7: memref<3x16x32xbf16, #tpu.memory_space<vmem>>, %arg8: memref<2x32xf32, #tpu.memory_space<vmem>>, %arg9: memref<3x32x64xbf16, #tpu.memory_space<vmem>>, %arg10: memref<2x64xf32, #tpu.memory_space<vmem>>, %arg11: memref<64x32xbf16, #tpu.memory_space<vmem>>, %arg12: memref<1x32xf32, #tpu.memory_space<vmem>>, %arg13: memref<32x24xbf16, #tpu.memory_space<vmem>>, %arg14: memref<1x24xf32, #tpu.memory_space<vmem>>, %arg15: memref<1x24xf32, #tpu.memory_space<vmem>>, %arg16: memref<64x8xbf16, #tpu.memory_space<vmem>>, %arg17: memref<4x18x64xbf16, #tpu.memory_space<vmem>>) attributes {dimension_semantics = [#tpu.dimension_semantics<arbitrary>], iteration_bounds = array<i64: 4>, scalar_prefetch = 0 : i64, scratch_operands = 2 : i64, tpu.core_type = #tpu.core_type<tc>, window_params = [{transform_indices = @transform_0, window_bounds = array<i64: 16, 320>}, {pipeline_mode = #tpu.pipeline_mode<synchronous>, transform_indices = @transform_1, window_bounds = array<i64: 320, 8>}, {pipeline_mode = #tpu.pipeline_mode<synchronous>, transform_indices = @transform_2, window_bounds = array<i64: 3, 8, 8>}, {pipeline_mode = #tpu.pipeline_mode<synchronous>, transform_indices = @transform_3, window_bounds = array<i64: 2, 8>}, {pipeline_mode = #tpu.pipeline_mode<synchronous>, transform_indices = @transform_4, window_bounds = array<i64: 3, 8, 16>}, {pipeline_mode = #tpu.pipeline_mode<synchronous>, transform_indices = @transform_5, window_bounds = array<i64: 2, 16>}, {pipeline_mode = #tpu.pipeline_mode<synchronous>, transform_indices = @transform_6, window_bounds = array<i64: 3, 16, 32>}, {pipeline_mode = #tpu.pipeline_mode<synchronous>, transform_indices = @transform_7, window_bounds = array<i64: 2, 32>}, {pipeline_mode = #tpu.pipeline_mode<synchronous>, transform_indices = @transform_8, window_bounds = array<i64: 3, 32, 64>}, {pipeline_mode = #tpu.pipeline_mode<synchronous>, transform_indices = @transform_9, window_bounds = array<i64: 2, 64>}, {pipeline_mode = #tpu.pipeline_mode<synchronous>, transform_indices = @transform_10, window_bounds = array<i64: 64, 32>}, {pipeline_mode = #tpu.pipeline_mode<synchronous>, transform_indices = @transform_11, window_bounds = array<i64: 1, 32>}, {pipeline_mode = #tpu.pipeline_mode<synchronous>, transform_indices = @transform_12, window_bounds = array<i64: 32, 24>}, {pipeline_mode = #tpu.pipeline_mode<synchronous>, transform_indices = @transform_13, window_bounds = array<i64: 1, 24>}, {pipeline_mode = #tpu.pipeline_mode<synchronous>, transform_indices = @transform_14, window_bounds = array<i64: 1, 24>}]} {
    %c0 = arith.constant 0 : index
    %c0_0 = arith.constant 0 : index
    %0 = vector.load %arg1[%c0, %c0_0] : memref<16x320xbf16, #tpu.memory_space<vmem>>, vector<16x320xbf16>
    %c0_1 = arith.constant 0 : index
    %c0_2 = arith.constant 0 : index
    %1 = vector.load %arg2[%c0_1, %c0_2] : memref<320x8xbf16, #tpu.memory_space<vmem>>, vector<320x8xbf16>
    %cst = arith.constant dense<0.000000e+00> : vector<16x8xf32>
    %2 = tpu.matmul %0, %1, %cst {dimension_numbers = #tpu.dot_dimension_numbers<[1], [0], [0], [1], [0, 0, 1, 1], [], []>} : vector<16x320xbf16>, vector<320x8xbf16>, vector<16x8xf32> -> vector<16x8xf32>
    %c16_i32 = arith.constant 16 : i32
    %3 = arith.muli %arg0, %c16_i32 : i32
    %4 = tpu.assume_multiple %3, 16 : i32
    %5 = arith.truncf %2 : vector<16x8xf32> to vector<16x8xbf16>
    %6 = arith.index_cast %4 : i32 to index
    %c0_3 = arith.constant 0 : index
    %7 = vector.load %arg16[%6, %c0_3] : memref<64x8xbf16, #tpu.memory_space<vmem>>, vector<16x8xbf16>
    tpu.vector_store %arg16[%6, %c0_3], %5 {strides = array<i32>} : memref<64x8xbf16, #tpu.memory_space<vmem>>, vector<16x8xbf16>,
    %c3_i32 = arith.constant 3 : i32
    %8 = arith.cmpi eq, %arg0, %c3_i32 : i32
    %9 = arith.extui %8 : i1 to i32
    %c0_i32 = arith.constant 0 : i32
    %10 = arith.cmpi ne, %9, %c0_i32 : i32
    scf.if %10 {
      %cst_4 = arith.constant 0.000000e+00 : bf16
      %11 = vector.broadcast %cst_4 : bf16 to vector<4x1x64xbf16>
      %c0_5 = arith.constant 0 : index
      %c0_6 = arith.constant 0 : index
      %c0_7 = arith.constant 0 : index
      %12 = vector.load %arg17[%c0_5, %c0_6, %c0_7] : memref<4x18x64xbf16, #tpu.memory_space<vmem>>, vector<4x1x64xbf16>
      tpu.vector_store %arg17[%c0_5, %c0_6, %c0_7], %11 {strides = array<i32>} : memref<4x18x64xbf16, #tpu.memory_space<vmem>>, vector<4x1x64xbf16>,
      %c0_8 = arith.constant 0 : index
      %c17 = arith.constant 17 : index
      %c0_9 = arith.constant 0 : index
      %13 = vector.load %arg17[%c0_8, %c17, %c0_9] : memref<4x18x64xbf16, #tpu.memory_space<vmem>>, vector<4x1x64xbf16>
      tpu.vector_store %arg17[%c0_8, %c17, %c0_9], %11 {strides = array<i32>} : memref<4x18x64xbf16, #tpu.memory_space<vmem>>, vector<4x1x64xbf16>,
      %c0_10 = arith.constant 0 : index
      %c0_11 = arith.constant 0 : index
      %14 = vector.load %arg16[%c0_10, %c0_11] : memref<64x8xbf16, #tpu.memory_space<vmem>>, vector<64x8xbf16>
      %15 = vector.shape_cast %14 : vector<64x8xbf16> to vector<4x16x8xbf16>
      %c0_12 = arith.constant 0 : index
      %c1 = arith.constant 1 : index
      %c0_13 = arith.constant 0 : index
      %16 = vector.load %arg17[%c0_12, %c1, %c0_13] : memref<4x18x64xbf16, #tpu.memory_space<vmem>>, vector<4x16x8xbf16>
      tpu.vector_store %arg17[%c0_12, %c1, %c0_13], %15 {strides = array<i32>} : memref<4x18x64xbf16, #tpu.memory_space<vmem>>, vector<4x16x8xbf16>,
      %c0_14 = arith.constant 0 : index
      %c0_15 = arith.constant 0 : index
      %c0_16 = arith.constant 0 : index
      %17 = vector.load %arg17[%c0_14, %c0_15, %c0_16] : memref<4x18x64xbf16, #tpu.memory_space<vmem>>, vector<4x16x8xbf16>
      %18 = vector.shape_cast %17 : vector<4x16x8xbf16> to vector<64x8xbf16>
      %c0_17 = arith.constant 0 : index
      %c0_18 = arith.constant 0 : index
      %c0_19 = arith.constant 0 : index
      %19 = vector.load %arg3[%c0_17, %c0_18, %c0_19] : memref<3x8x8xbf16, #tpu.memory_space<vmem>>, vector<1x8x8xbf16>
      %20 = vector.shape_cast %19 : vector<1x8x8xbf16> to vector<8x8xbf16>
      %cst_20 = arith.constant dense<0.000000e+00> : vector<64x8xf32>
      %21 = tpu.matmul %18, %20, %cst_20 {dimension_numbers = #tpu.dot_dimension_numbers<[1], [0], [0], [1], [0, 0, 1, 1], [], []>} : vector<64x8xbf16>, vector<8x8xbf16>, vector<64x8xf32> -> vector<64x8xf32>
      %c0_21 = arith.constant 0 : index
      %c1_22 = arith.constant 1 : index
      %c0_23 = arith.constant 0 : index
      %22 = vector.load %arg17[%c0_21, %c1_22, %c0_23] : memref<4x18x64xbf16, #tpu.memory_space<vmem>>, vector<4x16x8xbf16>
      %23 = vector.shape_cast %22 : vector<4x16x8xbf16> to vector<64x8xbf16>
      %c1_24 = arith.constant 1 : index
      %c0_25 = arith.constant 0 : index
      %c0_26 = arith.constant 0 : index
      %24 = vector.load %arg3[%c1_24, %c0_25, %c0_26] : memref<3x8x8xbf16, #tpu.memory_space<vmem>>, vector<1x8x8xbf16>
      %25 = vector.shape_cast %24 : vector<1x8x8xbf16> to vector<8x8xbf16>
      %cst_27 = arith.constant dense<0.000000e+00> : vector<64x8xf32>
      %26 = tpu.matmul %23, %25, %cst_27 {dimension_numbers = #tpu.dot_dimension_numbers<[1], [0], [0], [1], [0, 0, 1, 1], [], []>} : vector<64x8xbf16>, vector<8x8xbf16>, vector<64x8xf32> -> vector<64x8xf32>
      %27 = arith.addf %21, %26 : vector<64x8xf32>
      %c0_28 = arith.constant 0 : index
      %c2 = arith.constant 2 : index
      %c0_29 = arith.constant 0 : index
      %28 = vector.load %arg17[%c0_28, %c2, %c0_29] : memref<4x18x64xbf16, #tpu.memory_space<vmem>>, vector<4x16x8xbf16>
      %29 = vector.shape_cast %28 : vector<4x16x8xbf16> to vector<64x8xbf16>
      %c2_30 = arith.constant 2 : index
      %c0_31 = arith.constant 0 : index
      %c0_32 = arith.constant 0 : index
      %30 = vector.load %arg3[%c2_30, %c0_31, %c0_32] : memref<3x8x8xbf16, #tpu.memory_space<vmem>>, vector<1x8x8xbf16>
      %31 = vector.shape_cast %30 : vector<1x8x8xbf16> to vector<8x8xbf16>
      %cst_33 = arith.constant dense<0.000000e+00> : vector<64x8xf32>
      %32 = tpu.matmul %29, %31, %cst_33 {dimension_numbers = #tpu.dot_dimension_numbers<[1], [0], [0], [1], [0, 0, 1, 1], [], []>} : vector<64x8xbf16>, vector<8x8xbf16>, vector<64x8xf32> -> vector<64x8xf32>
      %33 = arith.addf %27, %32 : vector<64x8xf32>
      %cst_34 = arith.constant dense<0.000000e+00> : vector<8xf32>
      %34 = vector.multi_reduction <add>, %33, %cst_34 [0] : vector<64x8xf32> to vector<8xf32>
      %35 = vector.shape_cast %34 : vector<8xf32> to vector<1x8xf32>
      %cst_35 = arith.constant 1.562500e-02 : f32
      %36 = vector.broadcast %cst_35 : f32 to vector<1x8xf32>
      %37 = arith.mulf %35, %36 : vector<1x8xf32>
      %38 = vector.broadcast %37 : vector<1x8xf32> to vector<64x8xf32>
      %39 = arith.subf %33, %38 : vector<64x8xf32>
      %40 = arith.mulf %39, %39 : vector<64x8xf32>
      %cst_36 = arith.constant dense<0.000000e+00> : vector<8xf32>
      %41 = vector.multi_reduction <add>, %40, %cst_36 [0] : vector<64x8xf32> to vector<8xf32>
      %42 = vector.shape_cast %41 : vector<8xf32> to vector<1x8xf32>
      %cst_37 = arith.constant 1.562500e-02 : f32
      %43 = vector.broadcast %cst_37 : f32 to vector<1x8xf32>
      %44 = arith.mulf %42, %43 : vector<1x8xf32>
      %c0_38 = arith.constant 0 : index
      %c0_39 = arith.constant 0 : index
      %45 = vector.load %arg4[%c0_38, %c0_39] : memref<2x8xf32, #tpu.memory_space<vmem>>, vector<1x8xf32>
      %cst_40 = arith.constant 9.99999974E-6 : f32
      %46 = vector.broadcast %cst_40 : f32 to vector<1x8xf32>
      %47 = arith.addf %44, %46 : vector<1x8xf32>
      %48 = math.rsqrt %47 : vector<1x8xf32>
      %49 = arith.mulf %45, %48 : vector<1x8xf32>
      %50 = vector.broadcast %49 : vector<1x8xf32> to vector<64x8xf32>
      %51 = arith.mulf %39, %50 : vector<64x8xf32>
      %c1_41 = arith.constant 1 : index
      %c0_42 = arith.constant 0 : index
      %52 = vector.load %arg4[%c1_41, %c0_42] : memref<2x8xf32, #tpu.memory_space<vmem>>, vector<1x8xf32>
      %53 = vector.broadcast %52 : vector<1x8xf32> to vector<64x8xf32>
      %54 = arith.addf %51, %53 : vector<64x8xf32>
      %cst_43 = arith.constant 0.000000e+00 : f32
      %55 = vector.broadcast %cst_43 : f32 to vector<64x8xf32>
      %56 = arith.maximumf %54, %55 : vector<64x8xf32>
      %57 = vector.shape_cast %56 : vector<64x8xf32> to vector<4x16x8xf32>
      %58 = arith.truncf %57 : vector<4x16x8xf32> to vector<4x16x8xbf16>
      %c0_44 = arith.constant 0 : index
      %c1_45 = arith.constant 1 : index
      %c0_46 = arith.constant 0 : index
      %59 = vector.load %arg17[%c0_44, %c1_45, %c0_46] : memref<4x18x64xbf16, #tpu.memory_space<vmem>>, vector<4x16x8xbf16>
      tpu.vector_store %arg17[%c0_44, %c1_45, %c0_46], %58 {strides = array<i32>} : memref<4x18x64xbf16, #tpu.memory_space<vmem>>, vector<4x16x8xbf16>,
      %c0_47 = arith.constant 0 : index
      %c0_48 = arith.constant 0 : index
      %c0_49 = arith.constant 0 : index
      %60 = vector.load %arg17[%c0_47, %c0_48, %c0_49] : memref<4x18x64xbf16, #tpu.memory_space<vmem>>, vector<4x16x8xbf16>
      %61 = vector.shape_cast %60 : vector<4x16x8xbf16> to vector<64x8xbf16>
      %c0_50 = arith.constant 0 : index
      %c0_51 = arith.constant 0 : index
      %c0_52 = arith.constant 0 : index
      %62 = vector.load %arg5[%c0_50, %c0_51, %c0_52] : memref<3x8x16xbf16, #tpu.memory_space<vmem>>, vector<1x8x16xbf16>
      %63 = vector.shape_cast %62 : vector<1x8x16xbf16> to vector<8x16xbf16>
      %cst_53 = arith.constant dense<0.000000e+00> : vector<64x16xf32>
      %64 = tpu.matmul %61, %63, %cst_53 {dimension_numbers = #tpu.dot_dimension_numbers<[1], [0], [0], [1], [0, 0, 1, 1], [], []>} : vector<64x8xbf16>, vector<8x16xbf16>, vector<64x16xf32> -> vector<64x16xf32>
      %c0_54 = arith.constant 0 : index
      %c1_55 = arith.constant 1 : index
      %c0_56 = arith.constant 0 : index
      %65 = vector.load %arg17[%c0_54, %c1_55, %c0_56] : memref<4x18x64xbf16, #tpu.memory_space<vmem>>, vector<4x16x8xbf16>
      %66 = vector.shape_cast %65 : vector<4x16x8xbf16> to vector<64x8xbf16>
      %c1_57 = arith.constant 1 : index
      %c0_58 = arith.constant 0 : index
      %c0_59 = arith.constant 0 : index
      %67 = vector.load %arg5[%c1_57, %c0_58, %c0_59] : memref<3x8x16xbf16, #tpu.memory_space<vmem>>, vector<1x8x16xbf16>
      %68 = vector.shape_cast %67 : vector<1x8x16xbf16> to vector<8x16xbf16>
      %cst_60 = arith.constant dense<0.000000e+00> : vector<64x16xf32>
      %69 = tpu.matmul %66, %68, %cst_60 {dimension_numbers = #tpu.dot_dimension_numbers<[1], [0], [0], [1], [0, 0, 1, 1], [], []>} : vector<64x8xbf16>, vector<8x16xbf16>, vector<64x16xf32> -> vector<64x16xf32>
      %70 = arith.addf %64, %69 : vector<64x16xf32>
      %c0_61 = arith.constant 0 : index
      %c2_62 = arith.constant 2 : index
      %c0_63 = arith.constant 0 : index
      %71 = vector.load %arg17[%c0_61, %c2_62, %c0_63] : memref<4x18x64xbf16, #tpu.memory_space<vmem>>, vector<4x16x8xbf16>
      %72 = vector.shape_cast %71 : vector<4x16x8xbf16> to vector<64x8xbf16>
      %c2_64 = arith.constant 2 : index
      %c0_65 = arith.constant 0 : index
      %c0_66 = arith.constant 0 : index
      %73 = vector.load %arg5[%c2_64, %c0_65, %c0_66] : memref<3x8x16xbf16, #tpu.memory_space<vmem>>, vector<1x8x16xbf16>
      %74 = vector.shape_cast %73 : vector<1x8x16xbf16> to vector<8x16xbf16>
      %cst_67 = arith.constant dense<0.000000e+00> : vector<64x16xf32>
      %75 = tpu.matmul %72, %74, %cst_67 {dimension_numbers = #tpu.dot_dimension_numbers<[1], [0], [0], [1], [0, 0, 1, 1], [], []>} : vector<64x8xbf16>, vector<8x16xbf16>, vector<64x16xf32> -> vector<64x16xf32>
      %76 = arith.addf %70, %75 : vector<64x16xf32>
      %cst_68 = arith.constant dense<0.000000e+00> : vector<16xf32>
      %77 = vector.multi_reduction <add>, %76, %cst_68 [0] : vector<64x16xf32> to vector<16xf32>
      %78 = vector.shape_cast %77 : vector<16xf32> to vector<1x16xf32>
      %cst_69 = arith.constant 1.562500e-02 : f32
      %79 = vector.broadcast %cst_69 : f32 to vector<1x16xf32>
      %80 = arith.mulf %78, %79 : vector<1x16xf32>
      %81 = vector.broadcast %80 : vector<1x16xf32> to vector<64x16xf32>
      %82 = arith.subf %76, %81 : vector<64x16xf32>
      %83 = arith.mulf %82, %82 : vector<64x16xf32>
      %cst_70 = arith.constant dense<0.000000e+00> : vector<16xf32>
      %84 = vector.multi_reduction <add>, %83, %cst_70 [0] : vector<64x16xf32> to vector<16xf32>
      %85 = vector.shape_cast %84 : vector<16xf32> to vector<1x16xf32>
      %cst_71 = arith.constant 1.562500e-02 : f32
      %86 = vector.broadcast %cst_71 : f32 to vector<1x16xf32>
      %87 = arith.mulf %85, %86 : vector<1x16xf32>
      %c0_72 = arith.constant 0 : index
      %c0_73 = arith.constant 0 : index
      %88 = vector.load %arg6[%c0_72, %c0_73] : memref<2x16xf32, #tpu.memory_space<vmem>>, vector<1x16xf32>
      %cst_74 = arith.constant 9.99999974E-6 : f32
      %89 = vector.broadcast %cst_74 : f32 to vector<1x16xf32>
      %90 = arith.addf %87, %89 : vector<1x16xf32>
      %91 = math.rsqrt %90 : vector<1x16xf32>
      %92 = arith.mulf %88, %91 : vector<1x16xf32>
      %93 = vector.broadcast %92 : vector<1x16xf32> to vector<64x16xf32>
      %94 = arith.mulf %82, %93 : vector<64x16xf32>
      %c1_75 = arith.constant 1 : index
      %c0_76 = arith.constant 0 : index
      %95 = vector.load %arg6[%c1_75, %c0_76] : memref<2x16xf32, #tpu.memory_space<vmem>>, vector<1x16xf32>
      %96 = vector.broadcast %95 : vector<1x16xf32> to vector<64x16xf32>
      %97 = arith.addf %94, %96 : vector<64x16xf32>
      %cst_77 = arith.constant 0.000000e+00 : f32
      %98 = vector.broadcast %cst_77 : f32 to vector<64x16xf32>
      %99 = arith.maximumf %97, %98 : vector<64x16xf32>
      %100 = vector.shape_cast %99 : vector<64x16xf32> to vector<4x16x16xf32>
      %101 = arith.truncf %100 : vector<4x16x16xf32> to vector<4x16x16xbf16>
      %c0_78 = arith.constant 0 : index
      %c1_79 = arith.constant 1 : index
      %c0_80 = arith.constant 0 : index
      %102 = vector.load %arg17[%c0_78, %c1_79, %c0_80] : memref<4x18x64xbf16, #tpu.memory_space<vmem>>, vector<4x16x16xbf16>
      tpu.vector_store %arg17[%c0_78, %c1_79, %c0_80], %101 {strides = array<i32>} : memref<4x18x64xbf16, #tpu.memory_space<vmem>>, vector<4x16x16xbf16>,
      %c0_81 = arith.constant 0 : index
      %c0_82 = arith.constant 0 : index
      %c0_83 = arith.constant 0 : index
      %103 = vector.load %arg17[%c0_81, %c0_82, %c0_83] : memref<4x18x64xbf16, #tpu.memory_space<vmem>>, vector<4x16x16xbf16>
      %104 = vector.shape_cast %103 : vector<4x16x16xbf16> to vector<64x16xbf16>
      %c0_84 = arith.constant 0 : index
      %c0_85 = arith.constant 0 : index
      %c0_86 = arith.constant 0 : index
      %105 = vector.load %arg7[%c0_84, %c0_85, %c0_86] : memref<3x16x32xbf16, #tpu.memory_space<vmem>>, vector<1x16x32xbf16>
      %106 = vector.shape_cast %105 : vector<1x16x32xbf16> to vector<16x32xbf16>
      %cst_87 = arith.constant dense<0.000000e+00> : vector<64x32xf32>
      %107 = tpu.matmul %104, %106, %cst_87 {dimension_numbers = #tpu.dot_dimension_numbers<[1], [0], [0], [1], [0, 0, 1, 1], [], []>} : vector<64x16xbf16>, vector<16x32xbf16>, vector<64x32xf32> -> vector<64x32xf32>
      %c0_88 = arith.constant 0 : index
      %c1_89 = arith.constant 1 : index
      %c0_90 = arith.constant 0 : index
      %108 = vector.load %arg17[%c0_88, %c1_89, %c0_90] : memref<4x18x64xbf16, #tpu.memory_space<vmem>>, vector<4x16x16xbf16>
      %109 = vector.shape_cast %108 : vector<4x16x16xbf16> to vector<64x16xbf16>
      %c1_91 = arith.constant 1 : index
      %c0_92 = arith.constant 0 : index
      %c0_93 = arith.constant 0 : index
      %110 = vector.load %arg7[%c1_91, %c0_92, %c0_93] : memref<3x16x32xbf16, #tpu.memory_space<vmem>>, vector<1x16x32xbf16>
      %111 = vector.shape_cast %110 : vector<1x16x32xbf16> to vector<16x32xbf16>
      %cst_94 = arith.constant dense<0.000000e+00> : vector<64x32xf32>
      %112 = tpu.matmul %109, %111, %cst_94 {dimension_numbers = #tpu.dot_dimension_numbers<[1], [0], [0], [1], [0, 0, 1, 1], [], []>} : vector<64x16xbf16>, vector<16x32xbf16>, vector<64x32xf32> -> vector<64x32xf32>
      %113 = arith.addf %107, %112 : vector<64x32xf32>
      %c0_95 = arith.constant 0 : index
      %c2_96 = arith.constant 2 : index
      %c0_97 = arith.constant 0 : index
      %114 = vector.load %arg17[%c0_95, %c2_96, %c0_97] : memref<4x18x64xbf16, #tpu.memory_space<vmem>>, vector<4x16x16xbf16>
      %115 = vector.shape_cast %114 : vector<4x16x16xbf16> to vector<64x16xbf16>
      %c2_98 = arith.constant 2 : index
      %c0_99 = arith.constant 0 : index
      %c0_100 = arith.constant 0 : index
      %116 = vector.load %arg7[%c2_98, %c0_99, %c0_100] : memref<3x16x32xbf16, #tpu.memory_space<vmem>>, vector<1x16x32xbf16>
      %117 = vector.shape_cast %116 : vector<1x16x32xbf16> to vector<16x32xbf16>
      %cst_101 = arith.constant dense<0.000000e+00> : vector<64x32xf32>
      %118 = tpu.matmul %115, %117, %cst_101 {dimension_numbers = #tpu.dot_dimension_numbers<[1], [0], [0], [1], [0, 0, 1, 1], [], []>} : vector<64x16xbf16>, vector<16x32xbf16>, vector<64x32xf32> -> vector<64x32xf32>
      %119 = arith.addf %113, %118 : vector<64x32xf32>
      %cst_102 = arith.constant dense<0.000000e+00> : vector<32xf32>
      %120 = vector.multi_reduction <add>, %119, %cst_102 [0] : vector<64x32xf32> to vector<32xf32>
      %121 = vector.shape_cast %120 : vector<32xf32> to vector<1x32xf32>
      %cst_103 = arith.constant 1.562500e-02 : f32
      %122 = vector.broadcast %cst_103 : f32 to vector<1x32xf32>
      %123 = arith.mulf %121, %122 : vector<1x32xf32>
      %124 = vector.broadcast %123 : vector<1x32xf32> to vector<64x32xf32>
      %125 = arith.subf %119, %124 : vector<64x32xf32>
      %126 = arith.mulf %125, %125 : vector<64x32xf32>
      %cst_104 = arith.constant dense<0.000000e+00> : vector<32xf32>
      %127 = vector.multi_reduction <add>, %126, %cst_104 [0] : vector<64x32xf32> to vector<32xf32>
      %128 = vector.shape_cast %127 : vector<32xf32> to vector<1x32xf32>
      %cst_105 = arith.constant 1.562500e-02 : f32
      %129 = vector.broadcast %cst_105 : f32 to vector<1x32xf32>
      %130 = arith.mulf %128, %129 : vector<1x32xf32>
      %c0_106 = arith.constant 0 : index
      %c0_107 = arith.constant 0 : index
      %131 = vector.load %arg8[%c0_106, %c0_107] : memref<2x32xf32, #tpu.memory_space<vmem>>, vector<1x32xf32>
      %cst_108 = arith.constant 9.99999974E-6 : f32
      %132 = vector.broadcast %cst_108 : f32 to vector<1x32xf32>
      %133 = arith.addf %130, %132 : vector<1x32xf32>
      %134 = math.rsqrt %133 : vector<1x32xf32>
      %135 = arith.mulf %131, %134 : vector<1x32xf32>
      %136 = vector.broadcast %135 : vector<1x32xf32> to vector<64x32xf32>
      %137 = arith.mulf %125, %136 : vector<64x32xf32>
      %c1_109 = arith.constant 1 : index
      %c0_110 = arith.constant 0 : index
      %138 = vector.load %arg8[%c1_109, %c0_110] : memref<2x32xf32, #tpu.memory_space<vmem>>, vector<1x32xf32>
      %139 = vector.broadcast %138 : vector<1x32xf32> to vector<64x32xf32>
      %140 = arith.addf %137, %139 : vector<64x32xf32>
      %cst_111 = arith.constant 0.000000e+00 : f32
      %141 = vector.broadcast %cst_111 : f32 to vector<64x32xf32>
      %142 = arith.maximumf %140, %141 : vector<64x32xf32>
      %143 = vector.shape_cast %142 : vector<64x32xf32> to vector<4x16x32xf32>
      %144 = arith.truncf %143 : vector<4x16x32xf32> to vector<4x16x32xbf16>
      %c0_112 = arith.constant 0 : index
      %c1_113 = arith.constant 1 : index
      %c0_114 = arith.constant 0 : index
      %145 = vector.load %arg17[%c0_112, %c1_113, %c0_114] : memref<4x18x64xbf16, #tpu.memory_space<vmem>>, vector<4x16x32xbf16>
      tpu.vector_store %arg17[%c0_112, %c1_113, %c0_114], %144 {strides = array<i32>} : memref<4x18x64xbf16, #tpu.memory_space<vmem>>, vector<4x16x32xbf16>,
      %c0_115 = arith.constant 0 : index
      %c0_116 = arith.constant 0 : index
      %c0_117 = arith.constant 0 : index
      %146 = vector.load %arg17[%c0_115, %c0_116, %c0_117] : memref<4x18x64xbf16, #tpu.memory_space<vmem>>, vector<4x16x32xbf16>
      %147 = vector.shape_cast %146 : vector<4x16x32xbf16> to vector<64x32xbf16>
      %c0_118 = arith.constant 0 : index
      %c0_119 = arith.constant 0 : index
      %c0_120 = arith.constant 0 : index
      %148 = vector.load %arg9[%c0_118, %c0_119, %c0_120] : memref<3x32x64xbf16, #tpu.memory_space<vmem>>, vector<1x32x64xbf16>
      %149 = vector.shape_cast %148 : vector<1x32x64xbf16> to vector<32x64xbf16>
      %cst_121 = arith.constant dense<0.000000e+00> : vector<64x64xf32>
      %150 = tpu.matmul %147, %149, %cst_121 {dimension_numbers = #tpu.dot_dimension_numbers<[1], [0], [0], [1], [0, 0, 1, 1], [], []>} : vector<64x32xbf16>, vector<32x64xbf16>, vector<64x64xf32> -> vector<64x64xf32>
      %c0_122 = arith.constant 0 : index
      %c1_123 = arith.constant 1 : index
      %c0_124 = arith.constant 0 : index
      %151 = vector.load %arg17[%c0_122, %c1_123, %c0_124] : memref<4x18x64xbf16, #tpu.memory_space<vmem>>, vector<4x16x32xbf16>
      %152 = vector.shape_cast %151 : vector<4x16x32xbf16> to vector<64x32xbf16>
      %c1_125 = arith.constant 1 : index
      %c0_126 = arith.constant 0 : index
      %c0_127 = arith.constant 0 : index
      %153 = vector.load %arg9[%c1_125, %c0_126, %c0_127] : memref<3x32x64xbf16, #tpu.memory_space<vmem>>, vector<1x32x64xbf16>
      %154 = vector.shape_cast %153 : vector<1x32x64xbf16> to vector<32x64xbf16>
      %cst_128 = arith.constant dense<0.000000e+00> : vector<64x64xf32>
      %155 = tpu.matmul %152, %154, %cst_128 {dimension_numbers = #tpu.dot_dimension_numbers<[1], [0], [0], [1], [0, 0, 1, 1], [], []>} : vector<64x32xbf16>, vector<32x64xbf16>, vector<64x64xf32> -> vector<64x64xf32>
      %156 = arith.addf %150, %155 : vector<64x64xf32>
      %c0_129 = arith.constant 0 : index
      %c2_130 = arith.constant 2 : index
      %c0_131 = arith.constant 0 : index
      %157 = vector.load %arg17[%c0_129, %c2_130, %c0_131] : memref<4x18x64xbf16, #tpu.memory_space<vmem>>, vector<4x16x32xbf16>
      %158 = vector.shape_cast %157 : vector<4x16x32xbf16> to vector<64x32xbf16>
      %c2_132 = arith.constant 2 : index
      %c0_133 = arith.constant 0 : index
      %c0_134 = arith.constant 0 : index
      %159 = vector.load %arg9[%c2_132, %c0_133, %c0_134] : memref<3x32x64xbf16, #tpu.memory_space<vmem>>, vector<1x32x64xbf16>
      %160 = vector.shape_cast %159 : vector<1x32x64xbf16> to vector<32x64xbf16>
      %cst_135 = arith.constant dense<0.000000e+00> : vector<64x64xf32>
      %161 = tpu.matmul %158, %160, %cst_135 {dimension_numbers = #tpu.dot_dimension_numbers<[1], [0], [0], [1], [0, 0, 1, 1], [], []>} : vector<64x32xbf16>, vector<32x64xbf16>, vector<64x64xf32> -> vector<64x64xf32>
      %162 = arith.addf %156, %161 : vector<64x64xf32>
      %cst_136 = arith.constant dense<0.000000e+00> : vector<64xf32>
      %163 = vector.multi_reduction <add>, %162, %cst_136 [0] : vector<64x64xf32> to vector<64xf32>
      %164 = vector.shape_cast %163 : vector<64xf32> to vector<1x64xf32>
      %cst_137 = arith.constant 1.562500e-02 : f32
      %165 = vector.broadcast %cst_137 : f32 to vector<1x64xf32>
      %166 = arith.mulf %164, %165 : vector<1x64xf32>
      %167 = vector.broadcast %166 : vector<1x64xf32> to vector<64x64xf32>
      %168 = arith.subf %162, %167 : vector<64x64xf32>
      %169 = arith.mulf %168, %168 : vector<64x64xf32>
      %cst_138 = arith.constant dense<0.000000e+00> : vector<64xf32>
      %170 = vector.multi_reduction <add>, %169, %cst_138 [0] : vector<64x64xf32> to vector<64xf32>
      %171 = vector.shape_cast %170 : vector<64xf32> to vector<1x64xf32>
      %cst_139 = arith.constant 1.562500e-02 : f32
      %172 = vector.broadcast %cst_139 : f32 to vector<1x64xf32>
      %173 = arith.mulf %171, %172 : vector<1x64xf32>
      %c0_140 = arith.constant 0 : index
      %c0_141 = arith.constant 0 : index
      %174 = vector.load %arg10[%c0_140, %c0_141] : memref<2x64xf32, #tpu.memory_space<vmem>>, vector<1x64xf32>
      %cst_142 = arith.constant 9.99999974E-6 : f32
      %175 = vector.broadcast %cst_142 : f32 to vector<1x64xf32>
      %176 = arith.addf %173, %175 : vector<1x64xf32>
      %177 = math.rsqrt %176 : vector<1x64xf32>
      %178 = arith.mulf %174, %177 : vector<1x64xf32>
      %179 = vector.broadcast %178 : vector<1x64xf32> to vector<64x64xf32>
      %180 = arith.mulf %168, %179 : vector<64x64xf32>
      %c1_143 = arith.constant 1 : index
      %c0_144 = arith.constant 0 : index
      %181 = vector.load %arg10[%c1_143, %c0_144] : memref<2x64xf32, #tpu.memory_space<vmem>>, vector<1x64xf32>
      %182 = vector.broadcast %181 : vector<1x64xf32> to vector<64x64xf32>
      %183 = arith.addf %180, %182 : vector<64x64xf32>
      %cst_145 = arith.constant 0.000000e+00 : f32
      %184 = vector.broadcast %cst_145 : f32 to vector<64x64xf32>
      %185 = arith.maximumf %183, %184 : vector<64x64xf32>
      %186 = vector.shape_cast %185 : vector<64x64xf32> to vector<4x16x64xf32>
      %cst_146 = arith.constant dense<0.000000e+00> : vector<4x64xf32>
      %187 = vector.multi_reduction <add>, %186, %cst_146 [1] : vector<4x16x64xf32> to vector<4x64xf32>
      %cst_147 = arith.constant 1.600000e+01 : f32
      %188 = vector.broadcast %cst_147 : f32 to vector<4x64xf32>
      %189 = arith.divf %187, %188 : vector<4x64xf32>
      %190 = arith.truncf %189 : vector<4x64xf32> to vector<4x64xbf16>
      %c0_148 = arith.constant 0 : index
      %c0_149 = arith.constant 0 : index
      %191 = vector.load %arg11[%c0_148, %c0_149] : memref<64x32xbf16, #tpu.memory_space<vmem>>, vector<64x32xbf16>
      %cst_150 = arith.constant dense<0.000000e+00> : vector<4x32xf32>
      %192 = tpu.matmul %190, %191, %cst_150 {dimension_numbers = #tpu.dot_dimension_numbers<[1], [0], [0], [1], [0, 0, 1, 1], [], []>} : vector<4x64xbf16>, vector<64x32xbf16>, vector<4x32xf32> -> vector<4x32xf32>
      %c0_151 = arith.constant 0 : index
      %c0_152 = arith.constant 0 : index
      %193 = vector.load %arg12[%c0_151, %c0_152] : memref<1x32xf32, #tpu.memory_space<vmem>>, vector<1x32xf32>
      %194 = vector.broadcast %193 : vector<1x32xf32> to vector<4x32xf32>
      %195 = arith.addf %192, %194 : vector<4x32xf32>
      %cst_153 = arith.constant 0.000000e+00 : f32
      %196 = vector.broadcast %cst_153 : f32 to vector<4x32xf32>
      %197 = arith.maximumf %195, %196 : vector<4x32xf32>
      %cst_154 = arith.constant dense<0xFF800000> : vector<32xf32>
      %198 = vector.multi_reduction <maximumf>, %197, %cst_154 [0] : vector<4x32xf32> to vector<32xf32>
      %199 = vector.shape_cast %198 : vector<32xf32> to vector<1x32xf32>
      %200 = arith.truncf %199 : vector<1x32xf32> to vector<1x32xbf16>
      %c0_155 = arith.constant 0 : index
      %c0_156 = arith.constant 0 : index
      %201 = vector.load %arg13[%c0_155, %c0_156] : memref<32x24xbf16, #tpu.memory_space<vmem>>, vector<32x24xbf16>
      %cst_157 = arith.constant dense<0.000000e+00> : vector<1x24xf32>
      %202 = tpu.matmul %200, %201, %cst_157 {dimension_numbers = #tpu.dot_dimension_numbers<[1], [0], [0], [1], [0, 0, 1, 1], [], []>} : vector<1x32xbf16>, vector<32x24xbf16>, vector<1x24xf32> -> vector<1x24xf32>
      %c0_158 = arith.constant 0 : index
      %c0_159 = arith.constant 0 : index
      %203 = vector.load %arg14[%c0_158, %c0_159] : memref<1x24xf32, #tpu.memory_space<vmem>>, vector<1x24xf32>
      %204 = arith.addf %202, %203 : vector<1x24xf32>
      %c0_160 = arith.constant 0 : index
      %c0_161 = arith.constant 0 : index
      %205 = vector.load %arg15[%c0_160, %c0_161] : memref<1x24xf32, #tpu.memory_space<vmem>>, vector<1x24xf32>
      tpu.vector_store %arg15[%c0_160, %c0_161], %204 {strides = array<i32>} : memref<1x24xf32, #tpu.memory_space<vmem>>, vector<1x24xf32>,
    } else {
    }
    return
  }
  func.func @transform_0(%arg0: i32) -> (i32, i32) {
    %c0_i32 = arith.constant 0 : i32
    %c0_i32_0 = arith.constant 0 : i32
    return %arg0, %c0_i32 : i32, i32
  }
  func.func @transform_1(%arg0: i32) -> (i32, i32) {
    %c0_i32 = arith.constant 0 : i32
    %c0_i32_0 = arith.constant 0 : i32
    %c0_i32_1 = arith.constant 0 : i32
    return %c0_i32, %c0_i32_0 : i32, i32
  }
  func.func @transform_2(%arg0: i32) -> (i32, i32, i32) {
    %c0_i32 = arith.constant 0 : i32
    %c0_i32_0 = arith.constant 0 : i32
    %c0_i32_1 = arith.constant 0 : i32
    %c0_i32_2 = arith.constant 0 : i32
    return %c0_i32, %c0_i32_0, %c0_i32_1 : i32, i32, i32
  }
  func.func @transform_3(%arg0: i32) -> (i32, i32) {
    %c0_i32 = arith.constant 0 : i32
    %c0_i32_0 = arith.constant 0 : i32
    %c0_i32_1 = arith.constant 0 : i32
    return %c0_i32, %c0_i32_0 : i32, i32
  }
  func.func @transform_4(%arg0: i32) -> (i32, i32, i32) {
    %c0_i32 = arith.constant 0 : i32
    %c0_i32_0 = arith.constant 0 : i32
    %c0_i32_1 = arith.constant 0 : i32
    %c0_i32_2 = arith.constant 0 : i32
    return %c0_i32, %c0_i32_0, %c0_i32_1 : i32, i32, i32
  }
  func.func @transform_5(%arg0: i32) -> (i32, i32) {
    %c0_i32 = arith.constant 0 : i32
    %c0_i32_0 = arith.constant 0 : i32
    %c0_i32_1 = arith.constant 0 : i32
    return %c0_i32, %c0_i32_0 : i32, i32
  }
  func.func @transform_6(%arg0: i32) -> (i32, i32, i32) {
    %c0_i32 = arith.constant 0 : i32
    %c0_i32_0 = arith.constant 0 : i32
    %c0_i32_1 = arith.constant 0 : i32
    %c0_i32_2 = arith.constant 0 : i32
    return %c0_i32, %c0_i32_0, %c0_i32_1 : i32, i32, i32
  }
  func.func @transform_7(%arg0: i32) -> (i32, i32) {
    %c0_i32 = arith.constant 0 : i32
    %c0_i32_0 = arith.constant 0 : i32
    %c0_i32_1 = arith.constant 0 : i32
    return %c0_i32, %c0_i32_0 : i32, i32
  }
  func.func @transform_8(%arg0: i32) -> (i32, i32, i32) {
    %c0_i32 = arith.constant 0 : i32
    %c0_i32_0 = arith.constant 0 : i32
    %c0_i32_1 = arith.constant 0 : i32
    %c0_i32_2 = arith.constant 0 : i32
    return %c0_i32, %c0_i32_0, %c0_i32_1 : i32, i32, i32
  }
  func.func @transform_9(%arg0: i32) -> (i32, i32) {
    %c0_i32 = arith.constant 0 : i32
    %c0_i32_0 = arith.constant 0 : i32
    %c0_i32_1 = arith.constant 0 : i32
    return %c0_i32, %c0_i32_0 : i32, i32
  }
  func.func @transform_10(%arg0: i32) -> (i32, i32) {
    %c0_i32 = arith.constant 0 : i32
    %c0_i32_0 = arith.constant 0 : i32
    %c0_i32_1 = arith.constant 0 : i32
    return %c0_i32, %c0_i32_0 : i32, i32
  }
  func.func @transform_11(%arg0: i32) -> (i32, i32) {
    %c0_i32 = arith.constant 0 : i32
    %c0_i32_0 = arith.constant 0 : i32
    %c0_i32_1 = arith.constant 0 : i32
    return %c0_i32, %c0_i32_0 : i32, i32
  }
  func.func @transform_12(%arg0: i32) -> (i32, i32) {
    %c0_i32 = arith.constant 0 : i32
    %c0_i32_0 = arith.constant 0 : i32
    %c0_i32_1 = arith.constant 0 : i32
    return %c0_i32, %c0_i32_0 : i32, i32
  }
  func.func @transform_13(%arg0: i32) -> (i32, i32) {
    %c0_i32 = arith.constant 0 : i32
    %c0_i32_0 = arith.constant 0 : i32
    %c0_i32_1 = arith.constant 0 : i32
    return %c0_i32, %c0_i32_0 : i32, i32
  }
  func.func @transform_14(%arg0: i32) -> (i32, i32) {
    %c0_i32 = arith.constant 0 : i32
    %c0_i32_0 = arith.constant 0 : i32
    %c0_i32_1 = arith.constant 0 : i32
    return %c0_i32, %c0_i32_0 : i32, i32
  }
}

</mosaic_0001>

<llo_original>
// kernel: model_forward.1
$region0: #{model_forward.1}
  #allocation0 [shape = 'u32[]', space=smem, size = 0x4, offset = 0x4, fixed_abs, tag = 'smem constant byte address 0x4 - core index']
  #allocation1 [shape = 'u32[144,128]{1,0:T(1,128)}', space=vmem, size = 0x12000, scoped, tag = 'internal scratch']
  #allocation2 [shape = 'bf16[64,8]{1,0:T(16,128)(2,1)}', space=vmem, size = 0x4000, scoped, tag = 'scratch operand']
  #allocation3 [shape = 'bf16[4,18,64]{2,1,0:T(8,128)(2,1)}', space=vmem, size = 0x6000, scoped, tag = 'scratch operand']
  %s0 = inlined_call_operand.vmem [shape: bf16[64,320], index: 0, kind: input, shape index: {}]
  %s1 = inlined_call_operand.vmem [shape: bf16[320,8], index: 1, kind: input, shape index: {}]
  %s2 = inlined_call_operand.vmem [shape: bf16[3,8,8], index: 2, kind: input, shape index: {}]
  %s3 = inlined_call_operand.vmem [shape: f32[2,8], index: 3, kind: input, shape index: {}]
  %s4 = inlined_call_operand.vmem [shape: bf16[3,8,16], index: 4, kind: input, shape index: {}]
  %s5 = inlined_call_operand.vmem [shape: f32[2,16], index: 5, kind: input, shape index: {}]
  %s6 = inlined_call_operand.vmem [shape: bf16[3,16,32], index: 6, kind: input, shape index: {}]
  %s7 = inlined_call_operand.vmem [shape: f32[2,32], index: 7, kind: input, shape index: {}]
  %s8 = inlined_call_operand.vmem [shape: bf16[3,32,64], index: 8, kind: input, shape index: {}]
  %s9 = inlined_call_operand.vmem [shape: f32[2,64], index: 9, kind: input, shape index: {}]
  %s10 = inlined_call_operand.vmem [shape: bf16[64,32], index: 10, kind: input, shape index: {}]
  %s11 = inlined_call_operand.vmem [shape: f32[1,32], index: 11, kind: input, shape index: {}]
  %s12 = inlined_call_operand.vmem [shape: bf16[32,24], index: 12, kind: input, shape index: {}]
  %s13 = inlined_call_operand.vmem [shape: f32[1,24], index: 13, kind: input, shape index: {}]
  %s14 = inlined_call_operand.vmem [shape: f32[1,24], index: 14, kind: output, shape index: {}]
  %s15 = sld [smem:[#allocation0]]
  $region93: #{model_forward.1} parent=0
    _
  %s17 = ssub.s32 1, %s15
  %s18 = scalar_select 0, %s17, %s15
  loop: start=0, step=1, limit=6
  $region2: #{model_forward.1} parent=0 // loop_pre_header
    _
  $region3: #{model_forward.1} parent=0 // loop_header
    %s20 = sphi 0, %s24
    %p21 = scmp.ge.s32.totalorder %s20, 6
    %s30 = sphi 0, %s32
    %s33 = sphi 0, %s30
    %s34 = sphi 0, %s33
    %s50 = sphi 0, %s34
    %s54 = sphi 0, %s54
    %s56 = sphi 0, %s54
    %s57 = sphi 0, %s56
    %s71 = sphi 0, %s57
    %s75 = sphi 0, %s75
    %s77 = sphi 0, %s75
    %s78 = sphi 0, %s77
    %s92 = sphi 0, %s78
    %s96 = sphi 0, %s96
    %s98 = sphi 0, %s96
    %s99 = sphi 0, %s98
    %s113 = sphi 0, %s99
    %s117 = sphi 0, %s117
    %s119 = sphi 0, %s117
    %s120 = sphi 0, %s119
    %s134 = sphi 0, %s120
    %s138 = sphi 0, %s138
    %s140 = sphi 0, %s138
    %s141 = sphi 0, %s140
    %s155 = sphi 0, %s141
    %s159 = sphi 0, %s159
    %s161 = sphi 0, %s159
    %s162 = sphi 0, %s161
    %s176 = sphi 0, %s162
    %s180 = sphi 0, %s180
    %s182 = sphi 0, %s180
    %s183 = sphi 0, %s182
    %s197 = sphi 0, %s183
    %s201 = sphi 0, %s201
    %s203 = sphi 0, %s201
    %s204 = sphi 0, %s203
    %s218 = sphi 0, %s204
    %s222 = sphi 0, %s222
    %s224 = sphi 0, %s222
    %s225 = sphi 0, %s224
    %s239 = sphi 0, %s225
    %s243 = sphi 0, %s243
    %s245 = sphi 0, %s243
    %s246 = sphi 0, %s245
    %s260 = sphi 0, %s246
    %s264 = sphi 0, %s264
    %s266 = sphi 0, %s264
    %s267 = sphi 0, %s266
    %s281 = sphi 0, %s267
    %s285 = sphi 0, %s285
    %s287 = sphi 0, %s285
    %s288 = sphi 0, %s287
    %s302 = sphi 0, %s288
    %s306 = sphi 0, %s306
    %s308 = sphi 0, %s306
    %s309 = sphi 0, %s308
    %s323 = sphi 0, %s309
    %s327 = sphi 0, %s327
    %s329 = sphi 0, %s327
    %s330 = sphi 0, %s329
    %s344 = sphi 0, %s330
  $region4: #{model_forward.1} parent=0 // loop_header_branch
    %23 = sbr.rel (%p21) target = $region8
  $region5: #{model_forward.1} parent=0 // loop_body
    %s25 = ssub.s32 %s20, 1
    %s26 = ssub.s32 %s20, 2
    %s27 = sadd.s32 %s20, 1
    %s28 = ssub.s32 %s20, %s27
    %p29 = scmp.eq.s32.totalorder %s28, 0
    %s31 = sadd.s32 %s30, 1
    %s32 = scalar_select %p29, %s30, %s31
    %p35 = pneg %p29
    %p36 = scmp.eq.s32.totalorder %s20, 3
    %p37 = por %p35, %p36
    %p38 = scmp.ne.s32.totalorder %s30, %s33
    %p39 = scmp.eq.s32.totalorder %s20, 0
    %p40 = por %p38, %p39
    %p41 = scmp.ne.s32.totalorder %s30, %s33
    %p42 = scmp.eq.s32.totalorder %s25, 3
    %p43 = por %p41, %p42
    %p44 = scmp.ne.s32.totalorder %s33, %s34
    %p45 = scmp.eq.s32.totalorder %s25, 0
    %p46 = por %p44, %p45
    %p47 = scmp.ne.s32.totalorder %s33, %s34
    %p48 = scmp.eq.s32.totalorder %s26, 3
    %p49 = por %p47, %p48
    %p51 = scmp.ne.s32.totalorder %s34, %s50
    %p52 = scmp.eq.s32.totalorder %s26, 0
    %p53 = por %p51, %p52
    %s55 = sadd.s32 %s54, 1
    %p58 = scmp.eq.s32.totalorder %s20, 3
    %p59 = scmp.ne.s32.totalorder %s54, %s56
    %p60 = scmp.eq.s32.totalorder %s20, 0
    %p61 = por %p59, %p60
    %p62 = scmp.ne.s32.totalorder %s54, %s56
    %p63 = scmp.eq.s32.totalorder %s25, 3
    %p64 = por %p62, %p63
    %p65 = scmp.ne.s32.totalorder %s56, %s57
    %p66 = scmp.eq.s32.totalorder %s25, 0
    %p67 = por %p65, %p66
    %p68 = scmp.ne.s32.totalorder %s56, %s57
    %p69 = scmp.eq.s32.totalorder %s26, 3
    %p70 = por %p68, %p69
    %p72 = scmp.ne.s32.totalorder %s57, %s71
    %p73 = scmp.eq.s32.totalorder %s26, 0
    %p74 = por %p72, %p73
    %s76 = sadd.s32 %s75, 1
    %p79 = scmp.eq.s32.totalorder %s20, 3
    %p80 = scmp.ne.s32.totalorder %s75, %s77
    %p81 = scmp.eq.s32.totalorder %s20, 0
    %p82 = por %p80, %p81
    %p83 = scmp.ne.s32.totalorder %s75, %s77
    %p84 = scmp.eq.s32.totalorder %s25, 3
    %p85 = por %p83, %p84
    %p86 = scmp.ne.s32.totalorder %s77, %s78
    %p87 = scmp.eq.s32.totalorder %s25, 0
    %p88 = por %p86, %p87
    %p89 = scmp.ne.s32.totalorder %s77, %s78
    %p90 = scmp.eq.s32.totalorder %s26, 3
    %p91 = por %p89, %p90
    %p93 = scmp.ne.s32.totalorder %s78, %s92
    %p94 = scmp.eq.s32.totalorder %s26, 0
    %p95 = por %p93, %p94
    %s97 = sadd.s32 %s96, 1
    %p100 = scmp.eq.s32.totalorder %s20, 3
    %p101 = scmp.ne.s32.totalorder %s96, %s98
    %p102 = scmp.eq.s32.totalorder %s20, 0
    %p103 = por %p101, %p102
    %p104 = scmp.ne.s32.totalorder %s96, %s98
    %p105 = scmp.eq.s32.totalorder %s25, 3
    %p106 = por %p104, %p105
    %p107 = scmp.ne.s32.totalorder %s98, %s99
    %p108 = scmp.eq.s32.totalorder %s25, 0
    %p109 = por %p107, %p108
    %p110 = scmp.ne.s32.totalorder %s98, %s99
    %p111 = scmp.eq.s32.totalorder %s26, 3
    %p112 = por %p110, %p111
    %p114 = scmp.ne.s32.totalorder %s99, %s113
    %p115 = scmp.eq.s32.totalorder %s26, 0
    %p116 = por %p114, %p115
    %s118 = sadd.s32 %s117, 1
    %p121 = scmp.eq.s32.totalorder %s20, 3
    %p122 = scmp.ne.s32.totalorder %s117, %s119
    %p123 = scmp.eq.s32.totalorder %s20, 0
    %p124 = por %p122, %p123
    %p125 = scmp.ne.s32.totalorder %s117, %s119
    %p126 = scmp.eq.s32.totalorder %s25, 3
    %p127 = por %p125, %p126
    %p128 = scmp.ne.s32.totalorder %s119, %s120
    %p129 = scmp.eq.s32.totalorder %s25, 0
    %p130 = por %p128, %p129
    %p131 = scmp.ne.s32.totalorder %s119, %s120
    %p132 = scmp.eq.s32.totalorder %s26, 3
    %p133 = por %p131, %p132
    %p135 = scmp.ne.s32.totalorder %s120, %s134
    %p136 = scmp.eq.s32.totalorder %s26, 0
    %p137 = por %p135, %p136
    %s139 = sadd.s32 %s138, 1
    %p142 = scmp.eq.s32.totalorder %s20, 3
    %p143 = scmp.ne.s32.totalorder %s138, %s140
    %p144 = scmp.eq.s32.totalorder %s20, 0
    %p145 = por %p143, %p144
    %p146 = scmp.ne.s32.totalorder %s138, %s140
    %p147 = scmp.eq.s32.totalorder %s25, 3
    %p148 = por %p146, %p147
    %p149 = scmp.ne.s32.totalorder %s140, %s141
    %p150 = scmp.eq.s32.totalorder %s25, 0
    %p151 = por %p149, %p150
    %p152 = scmp.ne.s32.totalorder %s140, %s141
    %p153 = scmp.eq.s32.totalorder %s26, 3
    %p154 = por %p152, %p153
    %p156 = scmp.ne.s32.totalorder %s141, %s155
    %p157 = scmp.eq.s32.totalorder %s26, 0
    %p158 = por %p156, %p157
    %s160 = sadd.s32 %s159, 1
    %p163 = scmp.eq.s32.totalorder %s20, 3
    %p164 = scmp.ne.s32.totalorder %s159, %s161
    %p165 = scmp.eq.s32.totalorder %s20, 0
    %p166 = por %p164, %p165
    %p167 = scmp.ne.s32.totalorder %s159, %s161
    %p168 = scmp.eq.s32.totalorder %s25, 3
    %p169 = por %p167, %p168
    %p170 = scmp.ne.s32.totalorder %s161, %s162
    %p171 = scmp.eq.s32.totalorder %s25, 0
    %p172 = por %p170, %p171
    %p173 = scmp.ne.s32.totalorder %s161, %s162
    %p174 = scmp.eq.s32.totalorder %s26, 3
    %p175 = por %p173, %p174
    %p177 = scmp.ne.s32.totalorder %s162, %s176
    %p178 = scmp.eq.s32.totalorder %s26, 0
    %p179 = por %p177, %p178
    %s181 = sadd.s32 %s180, 1
    %p184 = scmp.eq.s32.totalorder %s20, 3
    %p185 = scmp.ne.s32.totalorder %s180, %s182
    %p186 = scmp.eq.s32.totalorder %s20, 0
    %p187 = por %p185, %p186
    %p188 = scmp.ne.s32.totalorder %s180, %s182
    %p189 = scmp.eq.s32.totalorder %s25, 3
    %p190 = por %p188, %p189
    %p191 = scmp.ne.s32.totalorder %s182, %s183
    %p192 = scmp.eq.s32.totalorder %s25, 0
    %p193 = por %p191, %p192
    %p194 = scmp.ne.s32.totalorder %s182, %s183
    %p195 = scmp.eq.s32.totalorder %s26, 3
    %p196 = por %p194, %p195
    %p198 = scmp.ne.s32.totalorder %s183, %s197
    %p199 = scmp.eq.s32.totalorder %s26, 0
    %p200 = por %p198, %p199
    %s202 = sadd.s32 %s201, 1
    %p205 = scmp.eq.s32.totalorder %s20, 3
    %p206 = scmp.ne.s32.totalorder %s201, %s203
    %p207 = scmp.eq.s32.totalorder %s20, 0
    %p208 = por %p206, %p207
    %p209 = scmp.ne.s32.totalorder %s201, %s203
    %p210 = scmp.eq.s32.totalorder %s25, 3
    %p211 = por %p209, %p210
    %p212 = scmp.ne.s32.totalorder %s203, %s204
    %p213 = scmp.eq.s32.totalorder %s25, 0
    %p214 = por %p212, %p213
    %p215 = scmp.ne.s32.totalorder %s203, %s204
    %p216 = scmp.eq.s32.totalorder %s26, 3
    %p217 = por %p215, %p216
    %p219 = scmp.ne.s32.totalorder %s204, %s218
    %p220 = scmp.eq.s32.totalorder %s26, 0
    %p221 = por %p219, %p220
    %s223 = sadd.s32 %s222, 1
    %p226 = scmp.eq.s32.totalorder %s20, 3
    %p227 = scmp.ne.s32.totalorder %s222, %s224
    %p228 = scmp.eq.s32.totalorder %s20, 0
    %p229 = por %p227, %p228
    %p230 = scmp.ne.s32.totalorder %s222, %s224
    %p231 = scmp.eq.s32.totalorder %s25, 3
    %p232 = por %p230, %p231
    %p233 = scmp.ne.s32.totalorder %s224, %s225
    %p234 = scmp.eq.s32.totalorder %s25, 0
    %p235 = por %p233, %p234
    %p236 = scmp.ne.s32.totalorder %s224, %s225
    %p237 = scmp.eq.s32.totalorder %s26, 3
    %p238 = por %p236, %p237
    %p240 = scmp.ne.s32.totalorder %s225, %s239
    %p241 = scmp.eq.s32.totalorder %s26, 0
    %p242 = por %p240, %p241
    %s244 = sadd.s32 %s243, 1
    %p247 = scmp.eq.s32.totalorder %s20, 3
    %p248 = scmp.ne.s32.totalorder %s243, %s245
    %p249 = scmp.eq.s32.totalorder %s20, 0
    %p250 = por %p248, %p249
    %p251 = scmp.ne.s32.totalorder %s243, %s245
    %p252 = scmp.eq.s32.totalorder %s25, 3
    %p253 = por %p251, %p252
    %p254 = scmp.ne.s32.totalorder %s245, %s246
    %p255 = scmp.eq.s32.totalorder %s25, 0
    %p256 = por %p254, %p255
    %p257 = scmp.ne.s32.totalorder %s245, %s246
    %p258 = scmp.eq.s32.totalorder %s26, 3
    %p259 = por %p257, %p258
    %p261 = scmp.ne.s32.totalorder %s246, %s260
    %p262 = scmp.eq.s32.totalorder %s26, 0
    %p263 = por %p261, %p262
    %s265 = sadd.s32 %s264, 1
    %p268 = scmp.eq.s32.totalorder %s20, 3
    %p269 = scmp.ne.s32.totalorder %s264, %s266
    %p270 = scmp.eq.s32.totalorder %s20, 0
    %p271 = por %p269, %p270
    %p272 = scmp.ne.s32.totalorder %s264, %s266
    %p273 = scmp.eq.s32.totalorder %s25, 3
    %p274 = por %p272, %p273
    %p275 = scmp.ne.s32.totalorder %s266, %s267
    %p276 = scmp.eq.s32.totalorder %s25, 0
    %p277 = por %p275, %p276
    %p278 = scmp.ne.s32.totalorder %s266, %s267
    %p279 = scmp.eq.s32.totalorder %s26, 3
    %p280 = por %p278, %p279
    %p282 = scmp.ne.s32.totalorder %s267, %s281
    %p283 = scmp.eq.s32.totalorder %s26, 0
    %p284 = por %p282, %p283
    %s286 = sadd.s32 %s285, 1
    %p289 = scmp.eq.s32.totalorder %s20, 3
    %p290 = scmp.ne.s32.totalorder %s285, %s287
    %p291 = scmp.eq.s32.totalorder %s20, 0
    %p292 = por %p290, %p291
    %p293 = scmp.ne.s32.totalorder %s285, %s287
    %p294 = scmp.eq.s32.totalorder %s25, 3
    %p295 = por %p293, %p294
    %p296 = scmp.ne.s32.totalorder %s287, %s288
    %p297 = scmp.eq.s32.totalorder %s25, 0
    %p298 = por %p296, %p297
    %p299 = scmp.ne.s32.totalorder %s287, %s288
    %p300 = scmp.eq.s32.totalorder %s26, 3
    %p301 = por %p299, %p300
    %p303 = scmp.ne.s32.totalorder %s288, %s302
    %p304 = scmp.eq.s32.totalorder %s26, 0
    %p305 = por %p303, %p304
    %s307 = sadd.s32 %s306, 1
    %p310 = scmp.eq.s32.totalorder %s20, 3
    %p311 = scmp.ne.s32.totalorder %s306, %s308
    %p312 = scmp.eq.s32.totalorder %s20, 0
    %p313 = por %p311, %p312
    %p314 = scmp.ne.s32.totalorder %s306, %s308
    %p315 = scmp.eq.s32.totalorder %s25, 3
    %p316 = por %p314, %p315
    %p317 = scmp.ne.s32.totalorder %s308, %s309
    %p318 = scmp.eq.s32.totalorder %s25, 0
    %p319 = por %p317, %p318
    %p320 = scmp.ne.s32.totalorder %s308, %s309
    %p321 = scmp.eq.s32.totalorder %s26, 3
    %p322 = por %p320, %p321
    %p324 = scmp.ne.s32.totalorder %s309, %s323
    %p325 = scmp.eq.s32.totalorder %s26, 0
    %p326 = por %p324, %p325
    %s328 = sadd.s32 %s327, 1
    %p331 = scmp.eq.s32.totalorder %s20, 3
    %p332 = scmp.ne.s32.totalorder %s327, %s329
    %p333 = scmp.eq.s32.totalorder %s20, 0
    %p334 = por %p332, %p333
    %p335 = scmp.ne.s32.totalorder %s327, %s329
    %p336 = scmp.eq.s32.totalorder %s25, 3
    %p337 = por %p335, %p336
    %p338 = scmp.ne.s32.totalorder %s329, %s330
    %p339 = scmp.eq.s32.totalorder %s25, 0
    %p340 = por %p338, %p339
    %p341 = scmp.ne.s32.totalorder %s329, %s330
    %p342 = scmp.eq.s32.totalorder %s26, 3
    %p343 = por %p341, %p342
    %p345 = scmp.ne.s32.totalorder %s330, %s344
    %p346 = scmp.eq.s32.totalorder %s26, 0
    %p347 = por %p345, %p346
    %p348 = scmp.le.s32.totalorder 1, %s20
    %p349 = scmp.lt.s32.totalorder %s20, 5
    %p350 = pnand %p348, %p349
    %p351 = pneg %p350
    // Predicated region
    $region9: #{model_forward.1} parent=5 // pred_check
      _
    $region10: #{model_forward.1} parent=5 // pred_check_branch
      %353 = sbr.rel (%p350) target = $region12
    $region11: #{model_forward.1} parent=5 // pred_region
      %s354 = ssub.s32 %s20, 1
      // Predicated region
      $region13: #{model_forward.1} parent=11 // pred_check
        %p355 = pneg %p67
      $region14: #{model_forward.1} parent=11 // pred_check_branch
        %357 = sbr.rel (%p355) target = $region16
      $region15: #{model_forward.1} parent=11 // pred_region
        _
      $region16: #{model_forward.1} parent=11 // pred_fallthru
        _
      // Predicated region
      $region17: #{model_forward.1} parent=11 // pred_check
        %p358 = pneg %p88
      $region18: #{model_forward.1} parent=11 // pred_check_branch
        %360 = sbr.rel (%p358) target = $region20
      $region19: #{model_forward.1} parent=11 // pred_region
        _
      $region20: #{model_forward.1} parent=11 // pred_fallthru
        _
      // Predicated region
      $region21: #{model_forward.1} parent=11 // pred_check
        %p361 = pneg %p109
      $region22: #{model_forward.1} parent=11 // pred_check_branch
        %363 = sbr.rel (%p361) target = $region24
      $region23: #{model_forward.1} parent=11 // pred_region
        _
      $region24: #{model_forward.1} parent=11 // pred_fallthru
        _
      // Predicated region
      $region25: #{model_forward.1} parent=11 // pred_check
        %p364 = pneg %p130
      $region26: #{model_forward.1} parent=11 // pred_check_branch
        %366 = sbr.rel (%p364) target = $region28
      $region27: #{model_forward.1} parent=11 // pred_region
        _
      $region28: #{model_forward.1} parent=11 // pred_fallthru
        _
      // Predicated region
      $region29: #{model_forward.1} parent=11 // pred_check
        %p367 = pneg %p151
      $region30: #{model_forward.1} parent=11 // pred_check_branch
        %369 = sbr.rel (%p367) target = $region32
      $region31: #{model_forward.1} parent=11 // pred_region
        _
      $region32: #{model_forward.1} parent=11 // pred_fallthru
        _
      // Predicated region
      $region33: #{model_forward.1} parent=11 // pred_check
        %p370 = pneg %p172
      $region34: #{model_forward.1} parent=11 // pred_check_branch
        %372 = sbr.rel (%p370) target = $region36
      $region35: #{model_forward.1} parent=11 // pred_region
        _
      $region36: #{model_forward.1} parent=11 // pred_fallthru
        _
      // Predicated region
      $region37: #{model_forward.1} parent=11 // pred_check
        %p373 = pneg %p193
      $region38: #{model_forward.1} parent=11 // pred_check_branch
        %375 = sbr.rel (%p373) target = $region40
      $region39: #{model_forward.1} parent=11 // pred_region
        _
      $region40: #{model_forward.1} parent=11 // pred_fallthru
        _
      // Predicated region
      $region41: #{model_forward.1} parent=11 // pred_check
        %p376 = pneg %p214
      $region42: #{model_forward.1} parent=11 // pred_check_branch
        %378 = sbr.rel (%p376) target = $region44
      $region43: #{model_forward.1} parent=11 // pred_region
        _
      $region44: #{model_forward.1} parent=11 // pred_fallthru
        _
      // Predicated region
      $region45: #{model_forward.1} parent=11 // pred_check
        %p379 = pneg %p235
      $region46: #{model_forward.1} parent=11 // pred_check_branch
        %381 = sbr.rel (%p379) target = $region48
      $region47: #{model_forward.1} parent=11 // pred_region
        _
      $region48: #{model_forward.1} parent=11 // pred_fallthru
        _
      // Predicated region
      $region49: #{model_forward.1} parent=11 // pred_check
        %p382 = pneg %p256
      $region50: #{model_forward.1} parent=11 // pred_check_branch
        %384 = sbr.rel (%p382) target = $region52
      $region51: #{model_forward.1} parent=11 // pred_region
        _
      $region52: #{model_forward.1} parent=11 // pred_fallthru
        _
      // Predicated region
      $region53: #{model_forward.1} parent=11 // pred_check
        %p385 = pneg %p277
      $region54: #{model_forward.1} parent=11 // pred_check_branch
        %387 = sbr.rel (%p385) target = $region56
      $region55: #{model_forward.1} parent=11 // pred_region
        _
      $region56: #{model_forward.1} parent=11 // pred_fallthru
        _
      // Predicated region
      $region57: #{model_forward.1} parent=11 // pred_check
        %p388 = pneg %p298
      $region58: #{model_forward.1} parent=11 // pred_check_branch
        %390 = sbr.rel (%p388) target = $region60
      $region59: #{model_forward.1} parent=11 // pred_region
        _
      $region60: #{model_forward.1} parent=11 // pred_fallthru
        _
      // Predicated region
      $region61: #{model_forward.1} parent=11 // pred_check
        %p391 = pneg %p319
      $region62: #{model_forward.1} parent=11 // pred_check_branch
        %393 = sbr.rel (%p391) target = $region64
      $region63: #{model_forward.1} parent=11 // pred_region
        _
      $region64: #{model_forward.1} parent=11 // pred_fallthru
        _
    $region12: #{model_forward.1} parent=5 // pred_fallthru
      _
    %p394 = scmp.lt.s32.totalorder %s20, 4
    // Predicated region
    $region65: #{model_forward.1} parent=5 // pred_check
      %p395 = pneg %p394
    $region66: #{model_forward.1} parent=5 // pred_check_branch
      %397 = sbr.rel (%p395) target = $region68
    $region67: #{model_forward.1} parent=5 // pred_region
      // Predicated region
      $region69: #{model_forward.1} parent=67 // pred_check
        %p398 = pneg %p40
      $region70: #{model_forward.1} parent=67 // pred_check_branch
        %400 = sbr.rel (%p398) target = $region72
      $region71: #{model_forward.1} parent=67 // pred_region
        %s401 = smul.u32 2, %s20
        %p402 = scmp.lt.s32.totalorder %s401, 7
        %s403 = scalar_select %p402, %s401, 7
        %s404 = smul.addr %s403, 3
        %s405 = smul.addr %s404, 4
        %s406 = scalar_lea.vmem %s0, %s405
        %s407 = smul.u32 2, %s20
      $region72: #{model_forward.1} parent=67 // pred_fallthru
        _
    $region68: #{model_forward.1} parent=5 // pred_fallthru
      _
    %p408 = scmp.le.s32.totalorder 1, %s20
    %p409 = scmp.lt.s32.totalorder %s20, 5
    %p410 = pnand %p408, %p409
    %p411 = pneg %p410
    // Predicated region
    $region73: #{model_forward.1} parent=5 // pred_check
      _
    $region74: #{model_forward.1} parent=5 // pred_check_branch
      %413 = sbr.rel (%p410) target = $region76
    $region75: #{model_forward.1} parent=5 // pred_region
      %s414 = ssub.s32 %s20, 1
      %s415 = smul.u32 2, %s25
      %p416 = scmp.lt.s32.totalorder %s415, 7
      %s417 = scalar_select %p416, %s415, 7
      %s418 = smul.addr %s417, 3
      %s419 = smul.addr %s418, 4
      %s420 = scalar_lea.vmem %s0, %s419
      %p421 = pneg %p46
      %p422 = pneg %p43
      %p423 = pneg %p67
      %p424 = pneg %p64
      %p425 = pneg %p88
      %p426 = pneg %p85
      %p427 = pneg %p109
      %p428 = pneg %p106
      %p429 = pneg %p130
      %p430 = pneg %p127
      %p431 = pneg %p151
      %p432 = pneg %p148
      %p433 = pneg %p172
      %p434 = pneg %p169
      %p435 = pneg %p193
      %p436 = pneg %p190
      %p437 = pneg %p214
      %p438 = pneg %p211
      %p439 = pneg %p235
      %p440 = pneg %p232
      %p441 = pneg %p256
      %p442 = pneg %p253
      %p443 = pneg %p277
      %p444 = pneg %p274
      %p445 = pneg %p298
      %p446 = pneg %p295
      %p447 = pneg %p319
      %p448 = pneg %p316
      %p449 = pneg %p340
      %p450 = pneg %p337
      %s451 = smul.u32 2, %s25
      %p452 = scmp.lt.s32.totalorder %s451, 7
      %s453 = scalar_select %p452, %s451, 7
      %s454 = smul.addr %s453, 3
      %s455 = smul.addr %s454, 4
      %s456 = scalar_lea.vmem %s0, %s455
      %s457 = smul.u32 2, %s25
      %v459 = vld [vmem:[%s456] sm:$0xff]
      %v460 = vld [vmem:[%s456 + $0x8] sm:$0xf]
      %v461 = vld [vmem:[%s456 + $0xc] sm:$0xff]
      %v462 = vld [vmem:[%s456 + $0x14] sm:$0xf]
      %v463 = vld [vmem:[%s1] sm:$0xf]
      %v464 = vld [vmem:[%s1 + $0x4] sm:$0xf]
      %v465 = vld [vmem:[%s1 + $0x8] sm:$0xf]
      %v466 = vld [vmem:[%s1 + $0xc] sm:$0xf]
      %v467 = vld [vmem:[%s1 + $0x10] sm:$0xf]
      %v468 = vld [vmem:[%s1 + $0x14] sm:$0xf]
      %v469 = vld [vmem:[%s1 + $0x18] sm:$0xf]
      %v470 = vld [vmem:[%s1 + $0x1c] sm:$0xf]
      %v471 = vld [vmem:[%s1 + $0x20] sm:$0xf]
      %v472 = vld [vmem:[%s1 + $0x24] sm:$0xf]
      %v473 = vld [vmem:[%s1 + $0x28] sm:$0xf]
      %v474 = vld [vmem:[%s1 + $0x2c] sm:$0xf]
      %v475 = vld [vmem:[%s1 + $0x30] sm:$0xf]
      %v476 = vld [vmem:[%s1 + $0x34] sm:$0xf]
      %v477 = vld [vmem:[%s1 + $0x38] sm:$0xf]
      %v478 = vld [vmem:[%s1 + $0x3c] sm:$0xf]
      %v479 = vld [vmem:[%s1 + $0x40] sm:$0xf]
      %v480 = vld [vmem:[%s1 + $0x44] sm:$0xf]
      %v481 = vld [vmem:[%s1 + $0x48] sm:$0xf]
      %v482 = vld [vmem:[%s1 + $0x4c] sm:$0xf]
      %v483 = vld [vmem:[%s1 + $0x50] sm:$0xf]
      %v484 = vld [vmem:[%s1 + $0x54] sm:$0xf]
      %v485 = vld [vmem:[%s1 + $0x58] sm:$0xf]
      %v486 = vld [vmem:[%s1 + $0x5c] sm:$0xf]
      %v487 = vld [vmem:[%s1 + $0x60] sm:$0xf]
      %v488 = vld [vmem:[%s1 + $0x64] sm:$0xf]
      %v489 = vld [vmem:[%s1 + $0x68] sm:$0xf]
      %v490 = vld [vmem:[%s1 + $0x6c] sm:$0xf]
      %v491 = vld [vmem:[%s1 + $0x70] sm:$0xf]
      %v492 = vld [vmem:[%s1 + $0x74] sm:$0xf]
      %v493 = vld [vmem:[%s1 + $0x78] sm:$0xf]
      %v494 = vld [vmem:[%s1 + $0x7c] sm:$0xf]
      %v495 = vld [vmem:[%s1 + $0x80] sm:$0xf]
      %v496 = vld [vmem:[%s1 + $0x84] sm:$0xf]
      %v497 = vld [vmem:[%s1 + $0x88] sm:$0xf]
      %v498 = vld [vmem:[%s1 + $0x8c] sm:$0xf]
      %v499 = vld [vmem:[%s1 + $0x90] sm:$0xf]
      %v500 = vld [vmem:[%s1 + $0x94] sm:$0xf]
      %v501 = vld [vmem:[%s1 + $0x98] sm:$0xf]
      %v502 = vld [vmem:[%s1 + $0x9c] sm:$0xf]
      %v507 = vunpack.c.l.b16 %v459
      %v508 = vunpack.c.h.b16 %v459
      %v509 = vunpack.c.l.b16 %v460
      %v510 = vunpack.c.l.b16 %v461
      %v511 = vunpack.c.h.b16 %v461
      %v512 = vunpack.c.l.b16 %v462
      %v513 = vpack.c.b16 %v510, %v507
      %v514 = vpack.c.b16 %v511, %v508
      %v515 = vpack.c.b16 %v512, %v509
      %v558 = vunpack.c.l.b16 %v463
      %v559 = vunpack.c.l.b16 %v464
      %v560 = vunpack.c.l.b16 %v465
      %v561 = vunpack.c.l.b16 %v466
      %v562 = vunpack.c.l.b16 %v467
      %v563 = vunpack.c.l.b16 %v468
      %v564 = vunpack.c.l.b16 %v469
      %v565 = vunpack.c.l.b16 %v470
      %v566 = vunpack.c.l.b16 %v471
      %v567 = vunpack.c.l.b16 %v472
      %v568 = vunpack.c.l.b16 %v473
      %v569 = vunpack.c.l.b16 %v474
      %v570 = vunpack.c.l.b16 %v475
      %v571 = vunpack.c.l.b16 %v476
      %v572 = vunpack.c.l.b16 %v477
      %v573 = vunpack.c.l.b16 %v478
      %v574 = vunpack.c.l.b16 %v479
      %v575 = vunpack.c.l.b16 %v480
      %v576 = vunpack.c.l.b16 %v481
      %v577 = vunpack.c.l.b16 %v482
      %v578 = vunpack.c.l.b16 %v483
      %v579 = vunpack.c.l.b16 %v484
      %v580 = vunpack.c.l.b16 %v485
      %v581 = vunpack.c.l.b16 %v486
      %v582 = vunpack.c.l.b16 %v487
      %v583 = vunpack.c.l.b16 %v488
      %v584 = vunpack.c.l.b16 %v489
      %v585 = vunpack.c.l.b16 %v490
      %v586 = vunpack.c.l.b16 %v491
      %v587 = vunpack.c.l.b16 %v492
      %v588 = vunpack.c.l.b16 %v493
      %v589 = vunpack.c.l.b16 %v494
      %v590 = vunpack.c.l.b16 %v495
      %v591 = vunpack.c.l.b16 %v496
      %v592 = vunpack.c.l.b16 %v497
      %v593 = vunpack.c.l.b16 %v498
      %v594 = vunpack.c.l.b16 %v499
      %v595 = vunpack.c.l.b16 %v500
      %v596 = vunpack.c.l.b16 %v501
      %v597 = vunpack.c.l.b16 %v502
      %v598 = vpack.c.b16 %v559, %v558
      %v599 = vpack.c.b16 %v561, %v560
      %v600 = vpack.c.b16 %v563, %v562
      %v601 = vpack.c.b16 %v565, %v564
      %v602 = vpack.c.b16 %v567, %v566
      %v603 = vpack.c.b16 %v569, %v568
      %v604 = vpack.c.b16 %v571, %v570
      %v605 = vpack.c.b16 %v573, %v572
      %v606 = vpack.c.b16 %v575, %v574
      %v607 = vpack.c.b16 %v577, %v576
      %v608 = vpack.c.b16 %v579, %v578
      %v609 = vpack.c.b16 %v581, %v580
      %v610 = vpack.c.b16 %v583, %v582
      %v611 = vpack.c.b16 %v585, %v584
      %v612 = vpack.c.b16 %v587, %v586
      %v613 = vpack.c.b16 %v589, %v588
      %v614 = vpack.c.b16 %v591, %v590
      %v615 = vpack.c.b16 %v593, %v592
      %v616 = vpack.c.b16 %v595, %v594
      %v617 = vpack.c.b16 %v597, %v596
      %vm638 = vcmask 523264
      %v640 = vsel %vm638, %v515, 0
      %642 = vmatprep.subr.bf16.mxu0 0
      %643 = vmatpush1.bf16.msra.mxu0 %v598
      %644 = vmatprep.subr.bf16.mxu0 0
      %645 = vmatpush1.bf16.msra.mxu0 %v599
      %646 = vmatprep.subr.bf16.mxu0 0
      %647 = vmatpush1.bf16.msra.mxu0 %v600
      %648 = vmatprep.subr.bf16.mxu0 0
      %649 = vmatpush1.bf16.msra.mxu0 %v601
      %650 = vmatprep.subr.bf16.mxu0 0
      %651 = vmatpush1.bf16.msra.mxu0 %v602
      %652 = vmatprep.subr.bf16.mxu0 0
      %653 = vmatpush1.bf16.msra.mxu0 %v603
      %654 = vmatprep.subr.bf16.mxu0 0
      %655 = vmatpush1.bf16.msra.mxu0 %v604
      %656 = vmatprep.subr.bf16.mxu0 0
      %657 = vmatpush1.bf16.msra.mxu0 %v605
      %658 = vmatprep.subr.bf16.mxu0 0
      %659 = vmatpush1.bf16.msra.mxu0 %v606
      %660 = vmatprep.subr.bf16.mxu0 0
      %661 = vmatpush1.bf16.msra.mxu0 %v607
      %662 = vmatprep.subr.bf16.mxu0 0
      %663 = vmatpush1.bf16.msra.mxu0 %v608
      %664 = vmatprep.subr.bf16.mxu0 0
      %665 = vmatpush1.bf16.msra.mxu0 %v609
      %666 = vmatprep.subr.bf16.mxu0 0
      %667 = vmatpush1.bf16.msra.mxu0 %v610
      %668 = vmatprep.subr.bf16.mxu0 0
      %669 = vmatpush1.bf16.msra.mxu0 %v611
      %670 = vmatprep.subr.bf16.mxu0 0
      %671 = vmatpush1.bf16.msra.mxu0 %v612
      %672 = vmatprep.subr.bf16.mxu0 0
      %673 = vmatpush1.bf16.msra.mxu0 %v613
      %674 = vmatprep.mubr.bf16.mxu0 %v514
      %675 = vmatmul.mubr.bf16.gmra.mrb[0].mxu0 %v513
      %v676 = vpop.f32.mrb[0].mxu0
      %v677 = vadd.f32 0.0, %v676
      %v678 = vpop.f32.mrb[0].mxu0
      %v679 = vpop.f32.mrb[0].mxu0
      %v680 = vadd.f32 0.0, %v679
      %v681 = vpop.f32.mrb[0].mxu0
      %682 = vdwg.mxu0
      %683 = vmatprep.subr.bf16.mxu0 0
      %684 = vmatpush1.bf16.msra.mxu0 %v614
      %685 = vmatprep.subr.bf16.mxu0 0
      %686 = vmatpush1.bf16.msra.mxu0 %v615
      %687 = vmatprep.subr.bf16.mxu0 0
      %688 = vmatpush1.bf16.msra.mxu0 %v616
      %689 = vmatprep.subr.bf16.mxu0 0
      %690 = vmatpush1.bf16.msra.mxu0 %v617
      %691 = vmatprep.subr.bf16.mxu0 0
      %692 = vmatpush1.bf16.msra.mxu0 0
      %693 = vmatprep.subr.bf16.mxu0 0
      %694 = vmatpush1.bf16.msra.mxu0 0
      %695 = vmatprep.subr.bf16.mxu0 0
      %696 = vmatpush1.bf16.msra.mxu0 0
      %697 = vmatprep.subr.bf16.mxu0 0
      %698 = vmatpush1.bf16.msra.mxu0 0
      %699 = vmatprep.subr.bf16.mxu0 0
      %700 = vmatpush1.bf16.msra.mxu0 0
      %701 = vmatprep.subr.bf16.mxu0 0
      %702 = vmatpush1.bf16.msra.mxu0 0
      %703 = vmatprep.subr.bf16.mxu0 0
      %704 = vmatpush1.bf16.msra.mxu0 0
      %705 = vmatprep.subr.bf16.mxu0 0
      %706 = vmatpush1.bf16.msra.mxu0 0
      %707 = vmatprep.subr.bf16.mxu0 0
      %708 = vmatpush1.bf16.msra.mxu0 0
      %709 = vmatprep.subr.bf16.mxu0 0
      %710 = vmatpush1.bf16.msra.mxu0 0
      %711 = vmatprep.subr.bf16.mxu0 0
      %712 = vmatpush1.bf16.msra.mxu0 0
      %713 = vmatprep.subr.bf16.mxu0 0
      %714 = vmatpush1.bf16.msra.mxu0 0
      %715 = vmatprep.mubr.bf16.mxu0 0
      %716 = vmatmul.mubr.bf16.gmra.mrb[0].mxu0 %v640
      %v717 = vpop.f32.mrb[0].mxu0
      %v718 = vadd.f32 %v677, %v717
      %v719 = vpop.f32.mrb[0].mxu0
      %v720 = vpop.f32.mrb[0].mxu0
      %v721 = vadd.f32 %v680, %v720
      %v722 = vpop.f32.mrb[0].mxu0
      %723 = vdwg.mxu0
      %s724 = smul.u32 %s25, 16
      %v725 = vpack.c.bf16 %v721, %v718
      %s726 = sshra.s32 %s724, 4
      %s727 = sand.u32 %s724, 15
      %s728 = smul.addr %s726, 8
      %s729 = scalar_lea.vmem [#allocation2], %s728
      %vm730 = vcmask 64512
      %731 = vst.msk [vmem:[%s729] sm:$0xff] %vm730, %v725
      %p732 = scmp.eq.s32.totalorder %s25, 3
      // Predicated region
      $region77: #{model_forward.1} parent=75 // pred_check
        %p733 = pneg %p732
      $region78: #{model_forward.1} parent=75 // pred_check_branch
        %735 = sbr.rel (%p733) target = $region80
      $region79: #{model_forward.1} parent=75 // pred_region
        %vm736 = vcmask 516096
        %vm737 = vsmask.f32 256
        %vm738 = vmand %vm736, %vm737
        %v739 = vld [vmem:[#allocation3] sm:$0x1]
        %v740 = vsel %vm738, 0, %v739
        %741 = vst [vmem:[#allocation3] sm:$0x1] %v740
        %v742 = vld [vmem:[#allocation3 + $0xc] sm:$0x1]
        %v743 = vsel %vm738, 0, %v742
        %744 = vst [vmem:[#allocation3 + $0xc] sm:$0x1] %v743
        %v745 = vld [vmem:[#allocation3 + $0x18] sm:$0x1]
        %v746 = vsel %vm738, 0, %v745
        %747 = vst [vmem:[#allocation3 + $0x18] sm:$0x1] %v746
        %v748 = vld [vmem:[#allocation3 + $0x24] sm:$0x1]
        %v749 = vsel %vm738, 0, %v748
        %750 = vst [vmem:[#allocation3 + $0x24] sm:$0x1] %v749
        %vm751 = vsmask.f32 7938
        %vm752 = vmand %vm736, %vm751
        %v753 = vld [vmem:[#allocation3 + $0x8] sm:$0x1]
        %v754 = vsel %vm752, 0, %v753
        %755 = vst [vmem:[#allocation3 + $0x8] sm:$0x1] %v754
        %v756 = vld [vmem:[#allocation3 + $0x14] sm:$0x1]
        %v757 = vsel %vm752, 0, %v756
        %758 = vst [vmem:[#allocation3 + $0x14] sm:$0x1] %v757
        %v759 = vld [vmem:[#allocation3 + $0x20] sm:$0x1]
        %v760 = vsel %vm752, 0, %v759
        %761 = vst [vmem:[#allocation3 + $0x20] sm:$0x1] %v760
        %v762 = vld [vmem:[#allocation3 + $0x2c] sm:$0x1]
        %v763 = vsel %vm752, 0, %v762
        %764 = vst [vmem:[#allocation3 + $0x2c] sm:$0x1] %v763
        %v765 = vld [vmem:[#allocation2] sm:$0xff]
        %v766 = vld [vmem:[#allocation2 + $0x8] sm:$0xff]
        %v767 = vld [vmem:[#allocation2 + $0x10] sm:$0xff]
        %v768 = vld [vmem:[#allocation2 + $0x18] sm:$0xff]
        %v773 = vunpack.c.l.b16 %v765
        %v774 = vunpack.c.h.b16 %v765
        %v775 = vunpack.c.l.b16 %v766
        %v776 = vunpack.c.h.b16 %v766
        %v777 = vunpack.c.l.b16 %v767
        %v778 = vunpack.c.h.b16 %v767
        %v779 = vunpack.c.l.b16 %v768
        %v780 = vunpack.c.h.b16 %v768
        %v781 = vpack.c.b16 %v773, %v773
        %v782 = vpack.c.b16 %v774, %v774
        %v783 = vpack.c.b16 %v775, %v775
        %v784 = vpack.c.b16 %v776, %v776
        %v785 = vpack.c.b16 %v777, %v777
        %v786 = vpack.c.b16 %v778, %v778
        %v787 = vpack.c.b16 %v779, %v779
        %v788 = vpack.c.b16 %v780, %v780
        %vm789 = vsmask.f32 4368
        %vm790 = vmor %vm737, %vm789
        %v792 = vshrl.u32 %v781, 16
        %v794 = vrot.slane %v792, 7
        %v795 = vshll.u32 %v781, 16
        %v797 = vor.u32 %v794, %v795
        %v798 = vrot.slane %v794, 4
        %v800 = vshrl.u32 %v782, 16
        %v802 = vrot.slane %v800, 7
        %v803 = vshll.u32 %v782, 16
        %v805 = vor.u32 %v802, %v803
        %v806 = vsel %vm790, %v798, %v805
        %v807 = vrot.slane %v802, 4
        %v809 = vshrl.u32 %v783, 16
        %v811 = vrot.slane %v809, 7
        %v812 = vshll.u32 %v783, 16
        %v814 = vor.u32 %v811, %v812
        %v815 = vrot.slane %v811, 4
        %v817 = vshrl.u32 %v784, 16
        %v819 = vrot.slane %v817, 7
        %v820 = vshll.u32 %v784, 16
        %v822 = vor.u32 %v819, %v820
        %v823 = vsel %vm790, %v815, %v822
        %v824 = vrot.slane %v819, 4
        %v826 = vshrl.u32 %v785, 16
        %v828 = vrot.slane %v826, 7
        %v829 = vshll.u32 %v785, 16
        %v831 = vor.u32 %v828, %v829
        %v832 = vrot.slane %v828, 4
        %v834 = vshrl.u32 %v786, 16
        %v836 = vrot.slane %v834, 7
        %v837 = vshll.u32 %v786, 16
        %v839 = vor.u32 %v836, %v837
        %v840 = vsel %vm790, %v832, %v839
        %v841 = vrot.slane %v836, 4
        %v843 = vshrl.u32 %v787, 16
        %v845 = vrot.slane %v843, 7
        %v846 = vshll.u32 %v787, 16
        %v848 = vor.u32 %v845, %v846
        %v849 = vrot.slane %v845, 4
        %v851 = vshrl.u32 %v788, 16
        %v853 = vrot.slane %v851, 7
        %v854 = vshll.u32 %v788, 16
        %v856 = vor.u32 %v853, %v854
        %v857 = vsel %vm790, %v849, %v856
        %v858 = vrot.slane %v853, 4
        %vm871 = vcmask 60416
        %vm872 = vmand %vm871, %vm751
        %v873 = vld [vmem:[#allocation3] sm:$0xf]
        %v874 = vsel %vm872, %v797, %v873
        %875 = vst [vmem:[#allocation3] sm:$0xf] %v874
        %vm876 = vcmask 60416
        %877 = vst.msk [vmem:[#allocation3 + $0x4] sm:$0xf] %vm876, %v806
        %vm878 = vcmask 57344
        %vm879 = vmand %vm878, %vm737
        %v880 = vld [vmem:[#allocation3 + $0x8] sm:$0x1]
        %v881 = vsel %vm879, %v807, %v880
        %882 = vst [vmem:[#allocation3 + $0x8] sm:$0x1] %v881
        %v883 = vld [vmem:[#allocation3 + $0xc] sm:$0xf]
        %v884 = vsel %vm872, %v814, %v883
        %885 = vst [vmem:[#allocation3 + $0xc] sm:$0xf] %v884
        %886 = vst.msk [vmem:[#allocation3 + $0x10] sm:$0xf] %vm876, %v823
        %v887 = vld [vmem:[#allocation3 + $0x14] sm:$0x1]
        %v888 = vsel %vm879, %v824, %v887
        %889 = vst [vmem:[#allocation3 + $0x14] sm:$0x1] %v888
        %v890 = vld [vmem:[#allocation3 + $0x18] sm:$0xf]
        %v891 = vsel %vm872, %v831, %v890
        %892 = vst [vmem:[#allocation3 + $0x18] sm:$0xf] %v891
        %893 = vst.msk [vmem:[#allocation3 + $0x1c] sm:$0xf] %vm876, %v840
        %v894 = vld [vmem:[#allocation3 + $0x20] sm:$0x1]
        %v895 = vsel %vm879, %v841, %v894
        %896 = vst [vmem:[#allocation3 + $0x20] sm:$0x1] %v895
        %v897 = vld [vmem:[#allocation3 + $0x24] sm:$0xf]
        %v898 = vsel %vm872, %v848, %v897
        %899 = vst [vmem:[#allocation3 + $0x24] sm:$0xf] %v898
        %900 = vst.msk [vmem:[#allocation3 + $0x28] sm:$0xf] %vm876, %v857
        %v901 = vld [vmem:[#allocation3 + $0x2c] sm:$0x1]
        %v902 = vsel %vm879, %v858, %v901
        %903 = vst [vmem:[#allocation3 + $0x2c] sm:$0x1] %v902
        %v904 = vld [vmem:[#allocation3] sm:$0xf]
        %v905 = vld [vmem:[#allocation3 + $0x4] sm:$0xf]
        %v906 = vld [vmem:[#allocation3 + $0xc] sm:$0xf]
        %v907 = vld [vmem:[#allocation3 + $0x10] sm:$0xf]
        %v908 = vld [vmem:[#allocation3 + $0x18] sm:$0xf]
        %v909 = vld [vmem:[#allocation3 + $0x1c] sm:$0xf]
        %v910 = vld [vmem:[#allocation3 + $0x24] sm:$0xf]
        %v911 = vld [vmem:[#allocation3 + $0x28] sm:$0xf]
        %v912 = vld [vmem:[%s2] sm:$0xf]
        %v913 = vld [vmem:[#allocation3 + $0x8] sm:$0x1]
        %v914 = vld [vmem:[#allocation3 + $0x14] sm:$0x1]
        %v915 = vld [vmem:[#allocation3 + $0x20] sm:$0x1]
        %v916 = vld [vmem:[#allocation3 + $0x2c] sm:$0x1]
        %vm917 = vsmask.f32 3328
        %vm918 = vsmask.f32 7440
        %vm919 = vmor %vm917, %vm918
        %v921 = vshrl.u32 %v904, 16
        %v923 = vrot.slane %v921, 4
        %v924 = vshll.u32 %v904, 16
        %v926 = vrot.slane %v924, 5
        %v927 = vor.u32 %v923, %v926
        %v928 = vrot.slane %v927, 4
        %v930 = vshll.u32 %v905, 16
        %v932 = vrot.slane %v930, 5
        %v933 = vsel %vm919, %v928, %v932
        %v934 = vshrl.u32 %v905, 16
        %v936 = vrot.slane %v934, 4
        %v937 = vor.u32 %v936, %v932
        %v938 = vrot.slane %v937, 4
        %v940 = vshll.u32 %v913, 16
        %v942 = vrot.slane %v940, 5
        %v943 = vsel %vm919, %v938, %v942
        %v945 = vshrl.u32 %v906, 16
        %v947 = vrot.slane %v945, 4
        %v948 = vshll.u32 %v906, 16
        %v950 = vrot.slane %v948, 5
        %v951 = vor.u32 %v947, %v950
        %v952 = vrot.slane %v951, 4
        %v954 = vshll.u32 %v907, 16
        %v956 = vrot.slane %v954, 5
        %v957 = vsel %vm919, %v952, %v956
        %v958 = vshrl.u32 %v907, 16
        %v960 = vrot.slane %v958, 4
        %v961 = vor.u32 %v960, %v956
        %v962 = vrot.slane %v961, 4
        %v964 = vshll.u32 %v914, 16
        %v966 = vrot.slane %v964, 5
        %v967 = vsel %vm919, %v962, %v966
        %v969 = vshrl.u32 %v908, 16
        %v971 = vrot.slane %v969, 4
        %v972 = vshll.u32 %v908, 16
        %v974 = vrot.slane %v972, 5
        %v975 = vor.u32 %v971, %v974
        %v976 = vrot.slane %v975, 4
        %v978 = vshll.u32 %v909, 16
        %v980 = vrot.slane %v978, 5
        %v981 = vsel %vm919, %v976, %v980
        %v982 = vshrl.u32 %v909, 16
        %v984 = vrot.slane %v982, 4
        %v985 = vor.u32 %v984, %v980
        %v986 = vrot.slane %v985, 4
        %v988 = vshll.u32 %v915, 16
        %v990 = vrot.slane %v988, 5
        %v991 = vsel %vm919, %v986, %v990
        %v993 = vshrl.u32 %v910, 16
        %v995 = vrot.slane %v993, 4
        %v996 = vshll.u32 %v910, 16
        %v998 = vrot.slane %v996, 5
        %v999 = vor.u32 %v995, %v998
        %v1000 = vrot.slane %v999, 4
        %v1002 = vshll.u32 %v911, 16
        %v1004 = vrot.slane %v1002, 5
        %v1005 = vsel %vm919, %v1000, %v1004
        %v1006 = vshrl.u32 %v911, 16
        %v1008 = vrot.slane %v1006, 4
        %v1009 = vor.u32 %v1008, %v1004
        %v1010 = vrot.slane %v1009, 4
        %v1012 = vshll.u32 %v916, 16
        %v1014 = vrot.slane %v1012, 5
        %v1015 = vsel %vm919, %v1010, %v1014
        %s1016 = scalar_lea.vmem %s2, 4
        %v1017 = vld [vmem:[%s1016] sm:$0xf]
        %v1018 = vunpack.c.l.b16 %v933
        %v1019 = vunpack.c.l.b16 %v943
        %v1020 = vunpack.c.l.b16 %v957
        %v1021 = vunpack.c.l.b16 %v967
        %v1022 = vunpack.c.l.b16 %v981
        %v1023 = vunpack.c.l.b16 %v991
        %v1024 = vunpack.c.l.b16 %v1005
        %v1025 = vunpack.c.l.b16 %v1015
        %v1026 = vpack.c.b16 %v1019, %v1018
        %v1027 = vpack.c.b16 %v1021, %v1020
        %v1028 = vpack.c.b16 %v1023, %v1022
        %v1029 = vpack.c.b16 %v1025, %v1024
        %v1031 = vsel %vm730, %v1026, 0
        %v1034 = vsel %vm730, %v1027, 0
        %v1037 = vsel %vm730, %v1028, 0
        %v1040 = vsel %vm730, %v1029, 0
        %vm1042 = vcmask 1043456
        %v1044 = vsel %vm1042, %v1017, 0
        %1046 = vmatprep.subr.bf16.mxu0 0
        %1047 = vmatpush1.bf16.msra.mxu0 %v1044
        %1048 = vmatprep.subr.bf16.mxu0 0
        %1049 = vmatpush1.bf16.msra.mxu0 0
        %1050 = vmatprep.subr.bf16.mxu0 0
        %1051 = vmatpush1.bf16.msra.mxu0 0
        %1052 = vmatprep.subr.bf16.mxu0 0
        %1053 = vmatpush1.bf16.msra.mxu0 0
        %1054 = vmatprep.subr.bf16.mxu0 0
        %1055 = vmatpush1.bf16.msra.mxu0 0
        %1056 = vmatprep.subr.bf16.mxu0 0
        %1057 = vmatpush1.bf16.msra.mxu0 0
        %1058 = vmatprep.subr.bf16.mxu0 0
        %1059 = vmatpush1.bf16.msra.mxu0 0
        %1060 = vmatprep.subr.bf16.mxu0 0
        %1061 = vmatpush1.bf16.msra.mxu0 0
        %1062 = vmatprep.subr.bf16.mxu0 0
        %1063 = vmatpush1.bf16.msra.mxu0 0
        %1064 = vmatprep.subr.bf16.mxu0 0
        %1065 = vmatpush1.bf16.msra.mxu0 0
        %1066 = vmatprep.subr.bf16.mxu0 0
        %1067 = vmatpush1.bf16.msra.mxu0 0
        %1068 = vmatprep.subr.bf16.mxu0 0
        %1069 = vmatpush1.bf16.msra.mxu0 0
        %1070 = vmatprep.subr.bf16.mxu0 0
        %1071 = vmatpush1.bf16.msra.mxu0 0
        %1072 = vmatprep.subr.bf16.mxu0 0
        %1073 = vmatpush1.bf16.msra.mxu0 0
        %1074 = vmatprep.subr.bf16.mxu0 0
        %1075 = vmatpush1.bf16.msra.mxu0 0
        %1076 = vmatprep.subr.bf16.mxu0 0
        %1077 = vmatpush1.bf16.msra.mxu0 0
        %1078 = vmatprep.mubr.bf16.mxu0 0
        %1079 = vmatmul.mubr.bf16.gmra.mrb[0].mxu0 %v1031
        %v1080 = vpop.f32.mrb[0].mxu0
        %v1081 = vadd.f32 0.0, %v1080
        %v1082 = vpop.f32.mrb[0].mxu0
        %v1083 = vpop.f32.mrb[0].mxu0
        %v1084 = vadd.f32 0.0, %v1083
        %v1085 = vpop.f32.mrb[0].mxu0
        %1086 = vmatprep.mubr.bf16.mxu0 0
        %1087 = vmatmul.mubr.bf16.gmra.mrb[0].mxu0 %v1034
        %v1088 = vpop.f32.mrb[0].mxu0
        %v1089 = vadd.f32 0.0, %v1088
        %v1090 = vpop.f32.mrb[0].mxu0
        %v1091 = vpop.f32.mrb[0].mxu0
        %v1092 = vadd.f32 0.0, %v1091
        %v1093 = vpop.f32.mrb[0].mxu0
        %1094 = vmatprep.mubr.bf16.mxu0 0
        %1095 = vmatmul.mubr.bf16.gmra.mrb[0].mxu0 %v1037
        %v1096 = vpop.f32.mrb[0].mxu0
        %v1097 = vadd.f32 0.0, %v1096
        %v1098 = vpop.f32.mrb[0].mxu0
        %v1099 = vpop.f32.mrb[0].mxu0
        %v1100 = vadd.f32 0.0, %v1099
        %v1101 = vpop.f32.mrb[0].mxu0
        %1102 = vmatprep.mubr.bf16.mxu0 0
        %1103 = vmatmul.mubr.bf16.gmra.mrb[0].mxu0 %v1040
        %v1104 = vpop.f32.mrb[0].mxu0
        %v1105 = vadd.f32 0.0, %v1104
        %v1106 = vpop.f32.mrb[0].mxu0
        %v1107 = vpop.f32.mrb[0].mxu0
        %v1108 = vadd.f32 0.0, %v1107
        %v1109 = vpop.f32.mrb[0].mxu0
        %1110 = vdwg.mxu0
        %v1119 = vunpack.c.l.b16 %v904
        %v1120 = vunpack.c.l.b16 %v905
        %v1121 = vunpack.c.l.b16 %v906
        %v1122 = vunpack.c.l.b16 %v907
        %v1123 = vunpack.c.l.b16 %v908
        %v1124 = vunpack.c.l.b16 %v909
        %v1125 = vunpack.c.l.b16 %v910
        %v1126 = vunpack.c.l.b16 %v911
        %v1127 = vpack.c.b16 %v1120, %v1119
        %v1128 = vpack.c.b16 %v1122, %v1121
        %v1129 = vpack.c.b16 %v1124, %v1123
        %v1130 = vpack.c.b16 %v1126, %v1125
        %v1132 = vsel %vm730, %v1127, 0
        %v1135 = vsel %vm730, %v1128, 0
        %v1138 = vsel %vm730, %v1129, 0
        %v1141 = vsel %vm730, %v1130, 0
        %v1144 = vsel %vm1042, %v912, 0
        %1146 = vmatprep.subr.bf16.mxu0 0
        %1147 = vmatpush1.bf16.msra.mxu0 %v1144
        %1148 = vmatprep.subr.bf16.mxu0 0
        %1149 = vmatpush1.bf16.msra.mxu0 0
        %1150 = vmatprep.subr.bf16.mxu0 0
        %1151 = vmatpush1.bf16.msra.mxu0 0
        %1152 = vmatprep.subr.bf16.mxu0 0
        %1153 = vmatpush1.bf16.msra.mxu0 0
        %1154 = vmatprep.subr.bf16.mxu0 0
        %1155 = vmatpush1.bf16.msra.mxu0 0
        %1156 = vmatprep.subr.bf16.mxu0 0
        %1157 = vmatpush1.bf16.msra.mxu0 0
        %1158 = vmatprep.subr.bf16.mxu0 0
        %1159 = vmatpush1.bf16.msra.mxu0 0
        %1160 = vmatprep.subr.bf16.mxu0 0
        %1161 = vmatpush1.bf16.msra.mxu0 0
        %1162 = vmatprep.subr.bf16.mxu0 0
        %1163 = vmatpush1.bf16.msra.mxu0 0
        %1164 = vmatprep.subr.bf16.mxu0 0
        %1165 = vmatpush1.bf16.msra.mxu0 0
        %1166 = vmatprep.subr.bf16.mxu0 0
        %1167 = vmatpush1.bf16.msra.mxu0 0
        %1168 = vmatprep.subr.bf16.mxu0 0
        %1169 = vmatpush1.bf16.msra.mxu0 0
        %1170 = vmatprep.subr.bf16.mxu0 0
        %1171 = vmatpush1.bf16.msra.mxu0 0
        %1172 = vmatprep.subr.bf16.mxu0 0
        %1173 = vmatpush1.bf16.msra.mxu0 0
        %1174 = vmatprep.subr.bf16.mxu0 0
        %1175 = vmatpush1.bf16.msra.mxu0 0
        %1176 = vmatprep.subr.bf16.mxu0 0
        %1177 = vmatpush1.bf16.msra.mxu0 0
        %1178 = vmatprep.mubr.bf16.mxu0 0
        %1179 = vmatmul.mubr.bf16.gmra.mrb[0].mxu0 %v1132
        %v1180 = vpop.f32.mrb[0].mxu0
        %v1181 = vadd.f32 %v1081, %v1180
        %v1182 = vpop.f32.mrb[0].mxu0
        %v1183 = vpop.f32.mrb[0].mxu0
        %v1184 = vadd.f32 %v1084, %v1183
        %v1185 = vpop.f32.mrb[0].mxu0
        %1186 = vmatprep.mubr.bf16.mxu0 0
        %1187 = vmatmul.mubr.bf16.gmra.mrb[0].mxu0 %v1135
        %v1188 = vpop.f32.mrb[0].mxu0
        %v1189 = vadd.f32 %v1089, %v1188
        %v1190 = vpop.f32.mrb[0].mxu0
        %v1191 = vpop.f32.mrb[0].mxu0
        %v1192 = vadd.f32 %v1092, %v1191
        %v1193 = vpop.f32.mrb[0].mxu0
        %1194 = vmatprep.mubr.bf16.mxu0 0
        %1195 = vmatmul.mubr.bf16.gmra.mrb[0].mxu0 %v1138
        %v1196 = vpop.f32.mrb[0].mxu0
        %v1197 = vadd.f32 %v1097, %v1196
        %v1198 = vpop.f32.mrb[0].mxu0
        %v1199 = vpop.f32.mrb[0].mxu0
        %v1200 = vadd.f32 %v1100, %v1199
        %v1201 = vpop.f32.mrb[0].mxu0
        %1202 = vmatprep.mubr.bf16.mxu0 0
        %1203 = vmatmul.mubr.bf16.gmra.mrb[0].mxu0 %v1141
        %v1204 = vpop.f32.mrb[0].mxu0
        %v1205 = vadd.f32 %v1105, %v1204
        %v1206 = vpop.f32.mrb[0].mxu0
        %v1207 = vpop.f32.mrb[0].mxu0
        %v1208 = vadd.f32 %v1108, %v1207
        %v1209 = vpop.f32.mrb[0].mxu0
        %1210 = vdwg.mxu0
        %v1211 = vld [vmem:[#allocation3] sm:$0xe]
        %v1212 = vld [vmem:[#allocation3 + $0xc] sm:$0xe]
        %v1213 = vld [vmem:[#allocation3 + $0x18] sm:$0xe]
        %v1214 = vld [vmem:[#allocation3 + $0x24] sm:$0xe]
        %vm1223 = vcmask 1042432
        %vm1224 = vcmask 1046532
        %vm1225 = vmor %vm1223, %vm1224
        %v1226 = vrot.slane %v1211, 5
        %v1227 = vrot.slane %v1226, 4
        %v1228 = vrot.slane %v905, 5
        %v1229 = vsel %vm1225, %v1227, %v1228
        %v1230 = vrot.slane %v1228, 4
        %v1231 = vrot.slane %v913, 5
        %v1232 = vsel %vm1225, %v1230, %v1231
        %v1233 = vrot.slane %v1212, 5
        %v1234 = vrot.slane %v1233, 4
        %v1235 = vrot.slane %v907, 5
        %v1236 = vsel %vm1225, %v1234, %v1235
        %v1237 = vrot.slane %v1235, 4
        %v1238 = vrot.slane %v914, 5
        %v1239 = vsel %vm1225, %v1237, %v1238
        %v1240 = vrot.slane %v1213, 5
        %v1241 = vrot.slane %v1240, 4
        %v1242 = vrot.slane %v909, 5
        %v1243 = vsel %vm1225, %v1241, %v1242
        %v1244 = vrot.slane %v1242, 4
        %v1245 = vrot.slane %v915, 5
        %v1246 = vsel %vm1225, %v1244, %v1245
        %v1247 = vrot.slane %v1214, 5
        %v1248 = vrot.slane %v1247, 4
        %v1249 = vrot.slane %v911, 5
        %v1250 = vsel %vm1225, %v1248, %v1249
        %v1251 = vrot.slane %v1249, 4
        %v1252 = vrot.slane %v916, 5
        %v1253 = vsel %vm1225, %v1251, %v1252
        %s1254 = scalar_lea.vmem %s2, 8
        %v1255 = vld [vmem:[%s1254] sm:$0xf]
        %v1256 = vunpack.c.l.b16 %v1229
        %v1257 = vunpack.c.l.b16 %v1232
        %v1258 = vunpack.c.l.b16 %v1236
        %v1259 = vunpack.c.l.b16 %v1239
        %v1260 = vunpack.c.l.b16 %v1243
        %v1261 = vunpack.c.l.b16 %v1246
        %v1262 = vunpack.c.l.b16 %v1250
        %v1263 = vunpack.c.l.b16 %v1253
        %v1264 = vpack.c.b16 %v1257, %v1256
        %v1265 = vpack.c.b16 %v1259, %v1258
        %v1266 = vpack.c.b16 %v1261, %v1260
        %v1267 = vpack.c.b16 %v1263, %v1262
        %v1269 = vsel %vm730, %v1264, 0
        %v1272 = vsel %vm730, %v1265, 0
        %v1275 = vsel %vm730, %v1266, 0
        %v1278 = vsel %vm730, %v1267, 0
        %v1281 = vsel %vm1042, %v1255, 0
        %1283 = vmatprep.subr.bf16.mxu0 0
        %1284 = vmatpush1.bf16.msra.mxu0 %v1281
        %1285 = vmatprep.subr.bf16.mxu0 0
        %1286 = vmatpush1.bf16.msra.mxu0 0
        %1287 = vmatprep.subr.bf16.mxu0 0
        %1288 = vmatpush1.bf16.msra.mxu0 0
        %1289 = vmatprep.subr.bf16.mxu0 0
        %1290 = vmatpush1.bf16.msra.mxu0 0
        %1291 = vmatprep.subr.bf16.mxu0 0
        %1292 = vmatpush1.bf16.msra.mxu0 0
        %1293 = vmatprep.subr.bf16.mxu0 0
        %1294 = vmatpush1.bf16.msra.mxu0 0
        %1295 = vmatprep.subr.bf16.mxu0 0
        %1296 = vmatpush1.bf16.msra.mxu0 0
        %1297 = vmatprep.subr.bf16.mxu0 0
        %1298 = vmatpush1.bf16.msra.mxu0 0
        %1299 = vmatprep.subr.bf16.mxu0 0
        %1300 = vmatpush1.bf16.msra.mxu0 0
        %1301 = vmatprep.subr.bf16.mxu0 0
        %1302 = vmatpush1.bf16.msra.mxu0 0
        %1303 = vmatprep.subr.bf16.mxu0 0
        %1304 = vmatpush1.bf16.msra.mxu0 0
        %1305 = vmatprep.subr.bf16.mxu0 0
        %1306 = vmatpush1.bf16.msra.mxu0 0
        %1307 = vmatprep.subr.bf16.mxu0 0
        %1308 = vmatpush1.bf16.msra.mxu0 0
        %1309 = vmatprep.subr.bf16.mxu0 0
        %1310 = vmatpush1.bf16.msra.mxu0 0
        %1311 = vmatprep.subr.bf16.mxu0 0
        %1312 = vmatpush1.bf16.msra.mxu0 0
        %1313 = vmatprep.subr.bf16.mxu0 0
        %1314 = vmatpush1.bf16.msra.mxu0 0
        %1315 = vmatprep.mubr.bf16.mxu0 0
        %1316 = vmatmul.mubr.bf16.gmra.mrb[0].mxu0 %v1269
        %v1317 = vpop.f32.mrb[0].mxu0
        %v1318 = vadd.f32 0.0, %v1317
        %v1319 = vpop.f32.mrb[0].mxu0
        %v1320 = vpop.f32.mrb[0].mxu0
        %v1321 = vadd.f32 0.0, %v1320
        %v1322 = vpop.f32.mrb[0].mxu0
        %1323 = vmatprep.mubr.bf16.mxu0 0
        %1324 = vmatmul.mubr.bf16.gmra.mrb[0].mxu0 %v1272
        %v1325 = vpop.f32.mrb[0].mxu0
        %v1326 = vadd.f32 0.0, %v1325
        %v1327 = vpop.f32.mrb[0].mxu0
        %v1328 = vpop.f32.mrb[0].mxu0
        %v1329 = vadd.f32 0.0, %v1328
        %v1330 = vpop.f32.mrb[0].mxu0
        %1331 = vmatprep.mubr.bf16.mxu0 0
        %1332 = vmatmul.mubr.bf16.gmra.mrb[0].mxu0 %v1275
        %v1333 = vpop.f32.mrb[0].mxu0
        %v1334 = vadd.f32 0.0, %v1333
        %v1335 = vpop.f32.mrb[0].mxu0
        %v1336 = vpop.f32.mrb[0].mxu0
        %v1337 = vadd.f32 0.0, %v1336
        %v1338 = vpop.f32.mrb[0].mxu0
        %1339 = vmatprep.mubr.bf16.mxu0 0
        %1340 = vmatmul.mubr.bf16.gmra.mrb[0].mxu0 %v1278
        %v1341 = vpop.f32.mrb[0].mxu0
        %v1342 = vadd.f32 0.0, %v1341
        %v1343 = vpop.f32.mrb[0].mxu0
        %v1344 = vpop.f32.mrb[0].mxu0
        %v1345 = vadd.f32 0.0, %v1344
        %v1346 = vpop.f32.mrb[0].mxu0
        %1347 = vdwg.mxu0
        %v1348 = vadd.f32 %v1181, %v1318
        %v1349 = vadd.f32 %v1184, %v1321
        %v1350 = vadd.f32 %v1189, %v1326
        %v1351 = vadd.f32 %v1192, %v1329
        %v1352 = vadd.f32 %v1197, %v1334
        %v1353 = vadd.f32 %v1200, %v1337
        %v1354 = vadd.f32 %v1205, %v1342
        %v1355 = vadd.f32 %v1208, %v1345
        %v1356 = vsel %vm730, %v1348, 0.0
        %v1357 = vsel %vm730, %v1349, 0.0
        %v1358 = vadd.f32 %v1356, %v1357
        %v1359 = vsel %vm730, %v1350, 0.0
        %v1360 = vadd.f32 %v1358, %v1359
        %v1361 = vsel %vm730, %v1351, 0.0
        %v1362 = vadd.f32 %v1360, %v1361
        %v1363 = vsel %vm730, %v1352, 0.0
        %v1364 = vadd.f32 %v1362, %v1363
        %v1365 = vsel %vm730, %v1353, 0.0
        %v1366 = vadd.f32 %v1364, %v1365
        %v1367 = vsel %vm730, %v1354, 0.0
        %v1368 = vadd.f32 %v1366, %v1367
        %v1369 = vsel %vm730, %v1355, 0.0
        %v1370 = vadd.f32 %v1368, %v1369
        %v1371 = vrot.slane %v1370, 4
        %v1372 = vadd.f32 %v1370, %v1371
        %v1373 = vrot.slane %v1372, 2
        %v1374 = vadd.f32 %v1372, %v1373
        %v1375 = vrot.slane %v1374, 1
        %v1376 = vadd.f32 %v1374, %v1375
        %v1377 = vmul.f32 %v1376, 0.015625
        %v1378 = vsub.f32 %v1348, %v1377
        %v1379 = vsub.f32 %v1349, %v1377
        %v1380 = vsub.f32 %v1350, %v1377
        %v1381 = vsub.f32 %v1351, %v1377
        %v1382 = vsub.f32 %v1352, %v1377
        %v1383 = vsub.f32 %v1353, %v1377
        %v1384 = vsub.f32 %v1354, %v1377
        %v1385 = vsub.f32 %v1355, %v1377
        %v1386 = vmul.f32 %v1378, %v1378
        %v1387 = vmul.f32 %v1379, %v1379
        %v1388 = vmul.f32 %v1380, %v1380
        %v1389 = vmul.f32 %v1381, %v1381
        %v1390 = vmul.f32 %v1382, %v1382
        %v1391 = vmul.f32 %v1383, %v1383
        %v1392 = vmul.f32 %v1384, %v1384
        %v1393 = vmul.f32 %v1385, %v1385
        %v1394 = vsel %vm730, %v1386, 0.0
        %v1395 = vsel %vm730, %v1387, 0.0
        %v1396 = vadd.f32 %v1394, %v1395
        %v1397 = vsel %vm730, %v1388, 0.0
        %v1398 = vadd.f32 %v1396, %v1397
        %v1399 = vsel %vm730, %v1389, 0.0
        %v1400 = vadd.f32 %v1398, %v1399
        %v1401 = vsel %vm730, %v1390, 0.0
        %v1402 = vadd.f32 %v1400, %v1401
        %v1403 = vsel %vm730, %v1391, 0.0
        %v1404 = vadd.f32 %v1402, %v1403
        %v1405 = vsel %vm730, %v1392, 0.0
        %v1406 = vadd.f32 %v1404, %v1405
        %v1407 = vsel %vm730, %v1393, 0.0
        %v1408 = vadd.f32 %v1406, %v1407
        %v1409 = vrot.slane %v1408, 4
        %v1410 = vadd.f32 %v1408, %v1409
        %v1411 = vrot.slane %v1410, 2
        %v1412 = vadd.f32 %v1410, %v1411
        %v1413 = vrot.slane %v1412, 1
        %v1414 = vadd.f32 %v1412, %v1413
        %v1415 = vmul.f32 %v1414, 0.015625
        %v1416 = vld [vmem:[%s3] sm:$0x1]
        %v1417 = vadd.f32 %v1415, 1e-05
        %v1418 = vrsqrt.pop %v1417
        %v1419 = vmul.f32 %v1416, %v1418
        %v1420 = vlaneseq
        %v1421 = vshrl.u32 %v1420, 7
        %v1422 = vsub.s32 0, %v1421
        %v1423 = vrot.slane %v1419, %v1422
        %v1424 = vmul.f32 %v1378, %v1423
        %v1425 = vmul.f32 %v1379, %v1423
        %v1426 = vmul.f32 %v1380, %v1423
        %v1427 = vmul.f32 %v1381, %v1423
        %v1428 = vmul.f32 %v1382, %v1423
        %v1429 = vmul.f32 %v1383, %v1423
        %v1430 = vmul.f32 %v1384, %v1423
        %v1431 = vmul.f32 %v1385, %v1423
        %v1432 = vld [vmem:[%s3 + $0x1] sm:$0x1]
        %v1433 = vlaneseq
        %v1434 = vshrl.u32 %v1433, 7
        %v1435 = vsub.s32 0, %v1434
        %v1436 = vrot.slane %v1432, %v1435
        %v1437 = vadd.f32 %v1424, %v1436
        %v1438 = vadd.f32 %v1425, %v1436
        %v1439 = vadd.f32 %v1426, %v1436
        %v1440 = vadd.f32 %v1427, %v1436
        %v1441 = vadd.f32 %v1428, %v1436
        %v1442 = vadd.f32 %v1429, %v1436
        %v1443 = vadd.f32 %v1430, %v1436
        %v1444 = vadd.f32 %v1431, %v1436
        %v1445 = vmax.f32 %v1437, 0.0
        %v1446 = vmax.f32 %v1438, 0.0
        %v1447 = vmax.f32 %v1439, 0.0
        %v1448 = vmax.f32 %v1440, 0.0
        %v1449 = vmax.f32 %v1441, 0.0
        %v1450 = vmax.f32 %v1442, 0.0
        %v1451 = vmax.f32 %v1443, 0.0
        %v1452 = vmax.f32 %v1444, 0.0
        %v1453 = vpack.c.bf16 %v1446, %v1445
        %v1454 = vpack.c.bf16 %v1448, %v1447
        %v1455 = vpack.c.bf16 %v1450, %v1449
        %v1456 = vpack.c.bf16 %v1452, %v1451
        %v1461 = vunpack.c.l.b16 %v1453
        %v1462 = vunpack.c.h.b16 %v1453
        %v1463 = vunpack.c.l.b16 %v1454
        %v1464 = vunpack.c.h.b16 %v1454
        %v1465 = vunpack.c.l.b16 %v1455
        %v1466 = vunpack.c.h.b16 %v1455
        %v1467 = vunpack.c.l.b16 %v1456
        %v1468 = vunpack.c.h.b16 %v1456
        %v1469 = vpack.c.b16 %v1461, %v1461
        %v1470 = vpack.c.b16 %v1462, %v1462
        %v1471 = vpack.c.b16 %v1463, %v1463
        %v1472 = vpack.c.b16 %v1464, %v1464
        %v1473 = vpack.c.b16 %v1465, %v1465
        %v1474 = vpack.c.b16 %v1466, %v1466
        %v1475 = vpack.c.b16 %v1467, %v1467
        %v1476 = vpack.c.b16 %v1468, %v1468
        %v1478 = vshrl.u32 %v1469, 16
        %v1480 = vrot.slane %v1478, 7
        %v1481 = vshll.u32 %v1469, 16
        %v1483 = vor.u32 %v1480, %v1481
        %v1484 = vrot.slane %v1480, 4
        %v1486 = vshrl.u32 %v1470, 16
        %v1488 = vrot.slane %v1486, 7
        %v1489 = vshll.u32 %v1470, 16
        %v1491 = vor.u32 %v1488, %v1489
        %v1492 = vsel %vm790, %v1484, %v1491
        %v1493 = vrot.slane %v1488, 4
        %v1495 = vshrl.u32 %v1471, 16
        %v1497 = vrot.slane %v1495, 7
        %v1498 = vshll.u32 %v1471, 16
        %v1500 = vor.u32 %v1497, %v1498
        %v1501 = vrot.slane %v1497, 4
        %v1503 = vshrl.u32 %v1472, 16
        %v1505 = vrot.slane %v1503, 7
        %v1506 = vshll.u32 %v1472, 16
        %v1508 = vor.u32 %v1505, %v1506
        %v1509 = vsel %vm790, %v1501, %v1508
        %v1510 = vrot.slane %v1505, 4
        %v1512 = vshrl.u32 %v1473, 16
        %v1514 = vrot.slane %v1512, 7
        %v1515 = vshll.u32 %v1473, 16
        %v1517 = vor.u32 %v1514, %v1515
        %v1518 = vrot.slane %v1514, 4
        %v1520 = vshrl.u32 %v1474, 16
        %v1522 = vrot.slane %v1520, 7
        %v1523 = vshll.u32 %v1474, 16
        %v1525 = vor.u32 %v1522, %v1523
        %v1526 = vsel %vm790, %v1518, %v1525
        %v1527 = vrot.slane %v1522, 4
        %v1529 = vshrl.u32 %v1475, 16
        %v1531 = vrot.slane %v1529, 7
        %v1532 = vshll.u32 %v1475, 16
        %v1534 = vor.u32 %v1531, %v1532
        %v1535 = vrot.slane %v1531, 4
        %v1537 = vshrl.u32 %v1476, 16
        %v1539 = vrot.slane %v1537, 7
        %v1540 = vshll.u32 %v1476, 16
        %v1542 = vor.u32 %v1539, %v1540
        %v1543 = vsel %vm790, %v1535, %v1542
        %v1544 = vrot.slane %v1539, 4
        %v1557 = vsel %vm872, %v1483, %v904
        %1558 = vst [vmem:[#allocation3] sm:$0xf] %v1557
        %1559 = vst.msk [vmem:[#allocation3 + $0x4] sm:$0xf] %vm876, %v1492
        %v1560 = vld [vmem:[#allocation3 + $0x8] sm:$0x1]
        %v1561 = vsel %vm879, %v1493, %v1560
        %1562 = vst [vmem:[#allocation3 + $0x8] sm:$0x1] %v1561
        %v1563 = vld [vmem:[#allocation3 + $0xc] sm:$0xf]
        %v1564 = vsel %vm872, %v1500, %v1563
        %1565 = vst [vmem:[#allocation3 + $0xc] sm:$0xf] %v1564
        %1566 = vst.msk [vmem:[#allocation3 + $0x10] sm:$0xf] %vm876, %v1509
        %v1567 = vld [vmem:[#allocation3 + $0x14] sm:$0x1]
        %v1568 = vsel %vm879, %v1510, %v1567
        %1569 = vst [vmem:[#allocation3 + $0x14] sm:$0x1] %v1568
        %v1570 = vld [vmem:[#allocation3 + $0x18] sm:$0xf]
        %v1571 = vsel %vm872, %v1517, %v1570
        %1572 = vst [vmem:[#allocation3 + $0x18] sm:$0xf] %v1571
        %1573 = vst.msk [vmem:[#allocation3 + $0x1c] sm:$0xf] %vm876, %v1526
        %v1574 = vld [vmem:[#allocation3 + $0x20] sm:$0x1]
        %v1575 = vsel %vm879, %v1527, %v1574
        %1576 = vst [vmem:[#allocation3 + $0x20] sm:$0x1] %v1575
        %v1577 = vld [vmem:[#allocation3 + $0x24] sm:$0xf]
        %v1578 = vsel %vm872, %v1534, %v1577
        %1579 = vst [vmem:[#allocation3 + $0x24] sm:$0xf] %v1578
        %1580 = vst.msk [vmem:[#allocation3 + $0x28] sm:$0xf] %vm876, %v1543
        %v1581 = vld [vmem:[#allocation3 + $0x2c] sm:$0x1]
        %v1582 = vsel %vm879, %v1544, %v1581
        %1583 = vst [vmem:[#allocation3 + $0x2c] sm:$0x1] %v1582
        %v1584 = vld [vmem:[#allocation3] sm:$0xf]
        %v1585 = vld [vmem:[#allocation3 + $0x4] sm:$0xf]
        %v1586 = vld [vmem:[#allocation3 + $0xc] sm:$0xf]
        %v1587 = vld [vmem:[#allocation3 + $0x10] sm:$0xf]
        %v1588 = vld [vmem:[#allocation3 + $0x18] sm:$0xf]
        %v1589 = vld [vmem:[#allocation3 + $0x1c] sm:$0xf]
        %v1590 = vld [vmem:[#allocation3 + $0x24] sm:$0xf]
        %v1591 = vld [vmem:[#allocation3 + $0x28] sm:$0xf]
        %v1592 = vld [vmem:[%s4] sm:$0xf]
        %v1593 = vld [vmem:[#allocation3 + $0x8] sm:$0x1]
        %v1594 = vld [vmem:[#allocation3 + $0x14] sm:$0x1]
        %v1595 = vld [vmem:[#allocation3 + $0x20] sm:$0x1]
        %v1596 = vld [vmem:[#allocation3 + $0x2c] sm:$0x1]
        %v1598 = vshrl.u32 %v1584, 16
        %v1600 = vrot.slane %v1598, 4
        %v1601 = vshll.u32 %v1584, 16
        %v1603 = vrot.slane %v1601, 5
        %v1604 = vor.u32 %v1600, %v1603
        %v1605 = vrot.slane %v1604, 4
        %v1607 = vshll.u32 %v1585, 16
        %v1609 = vrot.slane %v1607, 5
        %v1610 = vsel %vm919, %v1605, %v1609
        %v1611 = vshrl.u32 %v1585, 16
        %v1613 = vrot.slane %v1611, 4
        %v1614 = vor.u32 %v1613, %v1609
        %v1615 = vrot.slane %v1614, 4
        %v1617 = vshll.u32 %v1593, 16
        %v1619 = vrot.slane %v1617, 5
        %v1620 = vsel %vm919, %v1615, %v1619
        %v1622 = vshrl.u32 %v1586, 16
        %v1624 = vrot.slane %v1622, 4
        %v1625 = vshll.u32 %v1586, 16
        %v1627 = vrot.slane %v1625, 5
        %v1628 = vor.u32 %v1624, %v1627
        %v1629 = vrot.slane %v1628, 4
        %v1631 = vshll.u32 %v1587, 16
        %v1633 = vrot.slane %v1631, 5
        %v1634 = vsel %vm919, %v1629, %v1633
        %v1635 = vshrl.u32 %v1587, 16
        %v1637 = vrot.slane %v1635, 4
        %v1638 = vor.u32 %v1637, %v1633
        %v1639 = vrot.slane %v1638, 4
        %v1641 = vshll.u32 %v1594, 16
        %v1643 = vrot.slane %v1641, 5
        %v1644 = vsel %vm919, %v1639, %v1643
        %v1646 = vshrl.u32 %v1588, 16
        %v1648 = vrot.slane %v1646, 4
        %v1649 = vshll.u32 %v1588, 16
        %v1651 = vrot.slane %v1649, 5
        %v1652 = vor.u32 %v1648, %v1651
        %v1653 = vrot.slane %v1652, 4
        %v1655 = vshll.u32 %v1589, 16
        %v1657 = vrot.slane %v1655, 5
        %v1658 = vsel %vm919, %v1653, %v1657
        %v1659 = vshrl.u32 %v1589, 16
        %v1661 = vrot.slane %v1659, 4
        %v1662 = vor.u32 %v1661, %v1657
        %v1663 = vrot.slane %v1662, 4
        %v1665 = vshll.u32 %v1595, 16
        %v1667 = vrot.slane %v1665, 5
        %v1668 = vsel %vm919, %v1663, %v1667
        %v1670 = vshrl.u32 %v1590, 16
        %v1672 = vrot.slane %v1670, 4
        %v1673 = vshll.u32 %v1590, 16
        %v1675 = vrot.slane %v1673, 5
        %v1676 = vor.u32 %v1672, %v1675
        %v1677 = vrot.slane %v1676, 4
        %v1679 = vshll.u32 %v1591, 16
        %v1681 = vrot.slane %v1679, 5
        %v1682 = vsel %vm919, %v1677, %v1681
        %v1683 = vshrl.u32 %v1591, 16
        %v1685 = vrot.slane %v1683, 4
        %v1686 = vor.u32 %v1685, %v1681
        %v1687 = vrot.slane %v1686, 4
        %v1689 = vshll.u32 %v1596, 16
        %v1691 = vrot.slane %v1689, 5
        %v1692 = vsel %vm919, %v1687, %v1691
        %s1693 = scalar_lea.vmem %s4, 4
        %v1694 = vld [vmem:[%s1693] sm:$0xf]
        %v1695 = vunpack.c.l.b16 %v1610
        %v1696 = vunpack.c.l.b16 %v1620
        %v1697 = vunpack.c.l.b16 %v1634
        %v1698 = vunpack.c.l.b16 %v1644
        %v1699 = vunpack.c.l.b16 %v1658
        %v1700 = vunpack.c.l.b16 %v1668
        %v1701 = vunpack.c.l.b16 %v1682
        %v1702 = vunpack.c.l.b16 %v1692
        %v1703 = vpack.c.b16 %v1696, %v1695
        %v1704 = vpack.c.b16 %v1698, %v1697
        %v1705 = vpack.c.b16 %v1700, %v1699
        %v1706 = vpack.c.b16 %v1702, %v1701
        %v1708 = vsel %vm730, %v1703, 0
        %v1711 = vsel %vm730, %v1704, 0
        %v1714 = vsel %vm730, %v1705, 0
        %v1717 = vsel %vm730, %v1706, 0
        %v1720 = vsel %vm1042, %v1694, 0
        %1722 = vmatprep.subr.bf16.mxu0 0
        %1723 = vmatpush1.bf16.msra.mxu0 %v1720
        %1724 = vmatprep.subr.bf16.mxu0 0
        %1725 = vmatpush1.bf16.msra.mxu0 0
        %1726 = vmatprep.subr.bf16.mxu0 0
        %1727 = vmatpush1.bf16.msra.mxu0 0
        %1728 = vmatprep.subr.bf16.mxu0 0
        %1729 = vmatpush1.bf16.msra.mxu0 0
        %1730 = vmatprep.subr.bf16.mxu0 0
        %1731 = vmatpush1.bf16.msra.mxu0 0
        %1732 = vmatprep.subr.bf16.mxu0 0
        %1733 = vmatpush1.bf16.msra.mxu0 0
        %1734 = vmatprep.subr.bf16.mxu0 0
        %1735 = vmatpush1.bf16.msra.mxu0 0
        %1736 = vmatprep.subr.bf16.mxu0 0
        %1737 = vmatpush1.bf16.msra.mxu0 0
        %1738 = vmatprep.subr.bf16.mxu0 0
        %1739 = vmatpush1.bf16.msra.mxu0 0
        %1740 = vmatprep.subr.bf16.mxu0 0
        %1741 = vmatpush1.bf16.msra.mxu0 0
        %1742 = vmatprep.subr.bf16.mxu0 0
        %1743 = vmatpush1.bf16.msra.mxu0 0
        %1744 = vmatprep.subr.bf16.mxu0 0
        %1745 = vmatpush1.bf16.msra.mxu0 0
        %1746 = vmatprep.subr.bf16.mxu0 0
        %1747 = vmatpush1.bf16.msra.mxu0 0
        %1748 = vmatprep.subr.bf16.mxu0 0
        %1749 = vmatpush1.bf16.msra.mxu0 0
        %1750 = vmatprep.subr.bf16.mxu0 0
        %1751 = vmatpush1.bf16.msra.mxu0 0
        %1752 = vmatprep.subr.bf16.mxu0 0
        %1753 = vmatpush1.bf16.msra.mxu0 0
        %1754 = vmatprep.mubr.bf16.mxu0 0
        %1755 = vmatmul.mubr.bf16.gmra.mrb[0].mxu0 %v1708
        %v1756 = vpop.f32.mrb[0].mxu0
        %v1757 = vadd.f32 0.0, %v1756
        %v1758 = vpop.f32.mrb[0].mxu0
        %v1759 = vpop.f32.mrb[0].mxu0
        %v1760 = vadd.f32 0.0, %v1759
        %v1761 = vpop.f32.mrb[0].mxu0
        %1762 = vmatprep.mubr.bf16.mxu0 0
        %1763 = vmatmul.mubr.bf16.gmra.mrb[0].mxu0 %v1711
        %v1764 = vpop.f32.mrb[0].mxu0
        %v1765 = vadd.f32 0.0, %v1764
        %v1766 = vpop.f32.mrb[0].mxu0
        %v1767 = vpop.f32.mrb[0].mxu0
        %v1768 = vadd.f32 0.0, %v1767
        %v1769 = vpop.f32.mrb[0].mxu0
        %1770 = vmatprep.mubr.bf16.mxu0 0
        %1771 = vmatmul.mubr.bf16.gmra.mrb[0].mxu0 %v1714
        %v1772 = vpop.f32.mrb[0].mxu0
        %v1773 = vadd.f32 0.0, %v1772
        %v1774 = vpop.f32.mrb[0].mxu0
        %v1775 = vpop.f32.mrb[0].mxu0
        %v1776 = vadd.f32 0.0, %v1775
        %v1777 = vpop.f32.mrb[0].mxu0
        %1778 = vmatprep.mubr.bf16.mxu0 0
        %1779 = vmatmul.mubr.bf16.gmra.mrb[0].mxu0 %v1717
        %v1780 = vpop.f32.mrb[0].mxu0
        %v1781 = vadd.f32 0.0, %v1780
        %v1782 = vpop.f32.mrb[0].mxu0
        %v1783 = vpop.f32.mrb[0].mxu0
        %v1784 = vadd.f32 0.0, %v1783
        %v1785 = vpop.f32.mrb[0].mxu0
        %1786 = vdwg.mxu0
        %v1795 = vunpack.c.l.b16 %v1584
        %v1796 = vunpack.c.l.b16 %v1585
        %v1797 = vunpack.c.l.b16 %v1586
        %v1798 = vunpack.c.l.b16 %v1587
        %v1799 = vunpack.c.l.b16 %v1588
        %v1800 = vunpack.c.l.b16 %v1589
        %v1801 = vunpack.c.l.b16 %v1590
        %v1802 = vunpack.c.l.b16 %v1591
        %v1803 = vpack.c.b16 %v1796, %v1795
        %v1804 = vpack.c.b16 %v1798, %v1797
        %v1805 = vpack.c.b16 %v1800, %v1799
        %v1806 = vpack.c.b16 %v1802, %v1801
        %v1808 = vsel %vm730, %v1803, 0
        %v1811 = vsel %vm730, %v1804, 0
        %v1814 = vsel %vm730, %v1805, 0
        %v1817 = vsel %vm730, %v1806, 0
        %v1820 = vsel %vm1042, %v1592, 0
        %1822 = vmatprep.subr.bf16.mxu0 0
        %1823 = vmatpush1.bf16.msra.mxu0 %v1820
        %1824 = vmatprep.subr.bf16.mxu0 0
        %1825 = vmatpush1.bf16.msra.mxu0 0
        %1826 = vmatprep.subr.bf16.mxu0 0
        %1827 = vmatpush1.bf16.msra.mxu0 0
        %1828 = vmatprep.subr.bf16.mxu0 0
        %1829 = vmatpush1.bf16.msra.mxu0 0
        %1830 = vmatprep.subr.bf16.mxu0 0
        %1831 = vmatpush1.bf16.msra.mxu0 0
        %1832 = vmatprep.subr.bf16.mxu0 0
        %1833 = vmatpush1.bf16.msra.mxu0 0
        %1834 = vmatprep.subr.bf16.mxu0 0
        %1835 = vmatpush1.bf16.msra.mxu0 0
        %1836 = vmatprep.subr.bf16.mxu0 0
        %1837 = vmatpush1.bf16.msra.mxu0 0
        %1838 = vmatprep.subr.bf16.mxu0 0
        %1839 = vmatpush1.bf16.msra.mxu0 0
        %1840 = vmatprep.subr.bf16.mxu0 0
        %1841 = vmatpush1.bf16.msra.mxu0 0
        %1842 = vmatprep.subr.bf16.mxu0 0
        %1843 = vmatpush1.bf16.msra.mxu0 0
        %1844 = vmatprep.subr.bf16.mxu0 0
        %1845 = vmatpush1.bf16.msra.mxu0 0
        %1846 = vmatprep.subr.bf16.mxu0 0
        %1847 = vmatpush1.bf16.msra.mxu0 0
        %1848 = vmatprep.subr.bf16.mxu0 0
        %1849 = vmatpush1.bf16.msra.mxu0 0
        %1850 = vmatprep.subr.bf16.mxu0 0
        %1851 = vmatpush1.bf16.msra.mxu0 0
        %1852 = vmatprep.subr.bf16.mxu0 0
        %1853 = vmatpush1.bf16.msra.mxu0 0
        %1854 = vmatprep.mubr.bf16.mxu0 0
        %1855 = vmatmul.mubr.bf16.gmra.mrb[0].mxu0 %v1808
        %v1856 = vpop.f32.mrb[0].mxu0
        %v1857 = vadd.f32 %v1757, %v1856
        %v1858 = vpop.f32.mrb[0].mxu0
        %v1859 = vpop.f32.mrb[0].mxu0
        %v1860 = vadd.f32 %v1760, %v1859
        %v1861 = vpop.f32.mrb[0].mxu0
        %1862 = vmatprep.mubr.bf16.mxu0 0
        %1863 = vmatmul.mubr.bf16.gmra.mrb[0].mxu0 %v1811
        %v1864 = vpop.f32.mrb[0].mxu0
        %v1865 = vadd.f32 %v1765, %v1864
        %v1866 = vpop.f32.mrb[0].mxu0
        %v1867 = vpop.f32.mrb[0].mxu0
        %v1868 = vadd.f32 %v1768, %v1867
        %v1869 = vpop.f32.mrb[0].mxu0
        %1870 = vmatprep.mubr.bf16.mxu0 0
        %1871 = vmatmul.mubr.bf16.gmra.mrb[0].mxu0 %v1814
        %v1872 = vpop.f32.mrb[0].mxu0
        %v1873 = vadd.f32 %v1773, %v1872
        %v1874 = vpop.f32.mrb[0].mxu0
        %v1875 = vpop.f32.mrb[0].mxu0
        %v1876 = vadd.f32 %v1776, %v1875
        %v1877 = vpop.f32.mrb[0].mxu0
        %1878 = vmatprep.mubr.bf16.mxu0 0
        %1879 = vmatmul.mubr.bf16.gmra.mrb[0].mxu0 %v1817
        %v1880 = vpop.f32.mrb[0].mxu0
        %v1881 = vadd.f32 %v1781, %v1880
        %v1882 = vpop.f32.mrb[0].mxu0
        %v1883 = vpop.f32.mrb[0].mxu0
        %v1884 = vadd.f32 %v1784, %v1883
        %v1885 = vpop.f32.mrb[0].mxu0
        %1886 = vdwg.mxu0
        %v1887 = vld [vmem:[#allocation3] sm:$0xe]
        %v1888 = vld [vmem:[#allocation3 + $0xc] sm:$0xe]
        %v1889 = vld [vmem:[#allocation3 + $0x18] sm:$0xe]
        %v1890 = vld [vmem:[#allocation3 + $0x24] sm:$0xe]
        %v1899 = vrot.slane %v1887, 5
        %v1900 = vrot.slane %v1899, 4
        %v1901 = vrot.slane %v1585, 5
        %v1902 = vsel %vm1225, %v1900, %v1901
        %v1903 = vrot.slane %v1901, 4
        %v1904 = vrot.slane %v1593, 5
        %v1905 = vsel %vm1225, %v1903, %v1904
        %v1906 = vrot.slane %v1888, 5
        %v1907 = vrot.slane %v1906, 4
        %v1908 = vrot.slane %v1587, 5
        %v1909 = vsel %vm1225, %v1907, %v1908
        %v1910 = vrot.slane %v1908, 4
        %v1911 = vrot.slane %v1594, 5
        %v1912 = vsel %vm1225, %v1910, %v1911
        %v1913 = vrot.slane %v1889, 5
        %v1914 = vrot.slane %v1913, 4
        %v1915 = vrot.slane %v1589, 5
        %v1916 = vsel %vm1225, %v1914, %v1915
        %v1917 = vrot.slane %v1915, 4
        %v1918 = vrot.slane %v1595, 5
        %v1919 = vsel %vm1225, %v1917, %v1918
        %v1920 = vrot.slane %v1890, 5
        %v1921 = vrot.slane %v1920, 4
        %v1922 = vrot.slane %v1591, 5
        %v1923 = vsel %vm1225, %v1921, %v1922
        %v1924 = vrot.slane %v1922, 4
        %v1925 = vrot.slane %v1596, 5
        %v1926 = vsel %vm1225, %v1924, %v1925
        %s1927 = scalar_lea.vmem %s4, 8
        %v1928 = vld [vmem:[%s1927] sm:$0xf]
        %v1929 = vunpack.c.l.b16 %v1902
        %v1930 = vunpack.c.l.b16 %v1905
        %v1931 = vunpack.c.l.b16 %v1909
        %v1932 = vunpack.c.l.b16 %v1912
        %v1933 = vunpack.c.l.b16 %v1916
        %v1934 = vunpack.c.l.b16 %v1919
        %v1935 = vunpack.c.l.b16 %v1923
        %v1936 = vunpack.c.l.b16 %v1926
        %v1937 = vpack.c.b16 %v1930, %v1929
        %v1938 = vpack.c.b16 %v1932, %v1931
        %v1939 = vpack.c.b16 %v1934, %v1933
        %v1940 = vpack.c.b16 %v1936, %v1935
        %v1942 = vsel %vm730, %v1937, 0
        %v1945 = vsel %vm730, %v1938, 0
        %v1948 = vsel %vm730, %v1939, 0
        %v1951 = vsel %vm730, %v1940, 0
        %v1954 = vsel %vm1042, %v1928, 0
        %1956 = vmatprep.subr.bf16.mxu0 0
        %1957 = vmatpush1.bf16.msra.mxu0 %v1954
        %1958 = vmatprep.subr.bf16.mxu0 0
        %1959 = vmatpush1.bf16.msra.mxu0 0
        %1960 = vmatprep.subr.bf16.mxu0 0
        %1961 = vmatpush1.bf16.msra.mxu0 0
        %1962 = vmatprep.subr.bf16.mxu0 0
        %1963 = vmatpush1.bf16.msra.mxu0 0
        %1964 = vmatprep.subr.bf16.mxu0 0
        %1965 = vmatpush1.bf16.msra.mxu0 0
        %1966 = vmatprep.subr.bf16.mxu0 0
        %1967 = vmatpush1.bf16.msra.mxu0 0
        %1968 = vmatprep.subr.bf16.mxu0 0
        %1969 = vmatpush1.bf16.msra.mxu0 0
        %1970 = vmatprep.subr.bf16.mxu0 0
        %1971 = vmatpush1.bf16.msra.mxu0 0
        %1972 = vmatprep.subr.bf16.mxu0 0
        %1973 = vmatpush1.bf16.msra.mxu0 0
        %1974 = vmatprep.subr.bf16.mxu0 0
        %1975 = vmatpush1.bf16.msra.mxu0 0
        %1976 = vmatprep.subr.bf16.mxu0 0
        %1977 = vmatpush1.bf16.msra.mxu0 0
        %1978 = vmatprep.subr.bf16.mxu0 0
        %1979 = vmatpush1.bf16.msra.mxu0 0
        %1980 = vmatprep.subr.bf16.mxu0 0
        %1981 = vmatpush1.bf16.msra.mxu0 0
        %1982 = vmatprep.subr.bf16.mxu0 0
        %1983 = vmatpush1.bf16.msra.mxu0 0
        %1984 = vmatprep.subr.bf16.mxu0 0
        %1985 = vmatpush1.bf16.msra.mxu0 0
        %1986 = vmatprep.subr.bf16.mxu0 0
        %1987 = vmatpush1.bf16.msra.mxu0 0
        %1988 = vmatprep.mubr.bf16.mxu0 0
        %1989 = vmatmul.mubr.bf16.gmra.mrb[0].mxu0 %v1942
        %v1990 = vpop.f32.mrb[0].mxu0
        %v1991 = vadd.f32 0.0, %v1990
        %v1992 = vpop.f32.mrb[0].mxu0
        %v1993 = vpop.f32.mrb[0].mxu0
        %v1994 = vadd.f32 0.0, %v1993
        %v1995 = vpop.f32.mrb[0].mxu0
        %1996 = vmatprep.mubr.bf16.mxu0 0
        %1997 = vmatmul.mubr.bf16.gmra.mrb[0].mxu0 %v1945
        %v1998 = vpop.f32.mrb[0].mxu0
        %v1999 = vadd.f32 0.0, %v1998
        %v2000 = vpop.f32.mrb[0].mxu0
        %v2001 = vpop.f32.mrb[0].mxu0
        %v2002 = vadd.f32 0.0, %v2001
        %v2003 = vpop.f32.mrb[0].mxu0
        %2004 = vmatprep.mubr.bf16.mxu0 0
        %2005 = vmatmul.mubr.bf16.gmra.mrb[0].mxu0 %v1948
        %v2006 = vpop.f32.mrb[0].mxu0
        %v2007 = vadd.f32 0.0, %v2006
        %v2008 = vpop.f32.mrb[0].mxu0
        %v2009 = vpop.f32.mrb[0].mxu0
        %v2010 = vadd.f32 0.0, %v2009
        %v2011 = vpop.f32.mrb[0].mxu0
        %2012 = vmatprep.mubr.bf16.mxu0 0
        %2013 = vmatmul.mubr.bf16.gmra.mrb[0].mxu0 %v1951
        %v2014 = vpop.f32.mrb[0].mxu0
        %v2015 = vadd.f32 0.0, %v2014
        %v2016 = vpop.f32.mrb[0].mxu0
        %v2017 = vpop.f32.mrb[0].mxu0
        %v2018 = vadd.f32 0.0, %v2017
        %v2019 = vpop.f32.mrb[0].mxu0
        %2020 = vdwg.mxu0
        %v2021 = vadd.f32 %v1857, %v1991
        %v2022 = vadd.f32 %v1860, %v1994
        %v2023 = vadd.f32 %v1865, %v1999
        %v2024 = vadd.f32 %v1868, %v2002
        %v2025 = vadd.f32 %v1873, %v2007
        %v2026 = vadd.f32 %v1876, %v2010
        %v2027 = vadd.f32 %v1881, %v2015
        %v2028 = vadd.f32 %v1884, %v2018
        %vm2029 = vcmask 130048
        %v2030 = vsel %vm2029, %v2021, 0.0
        %v2031 = vsel %vm2029, %v2022, 0.0
        %v2032 = vadd.f32 %v2030, %v2031
        %v2033 = vsel %vm2029, %v2023, 0.0
        %v2034 = vadd.f32 %v2032, %v2033
        %v2035 = vsel %vm2029, %v2024, 0.0
        %v2036 = vadd.f32 %v2034, %v2035
        %v2037 = vsel %vm2029, %v2025, 0.0
        %v2038 = vadd.f32 %v2036, %v2037
        %v2039 = vsel %vm2029, %v2026, 0.0
        %v2040 = vadd.f32 %v2038, %v2039
        %v2041 = vsel %vm2029, %v2027, 0.0
        %v2042 = vadd.f32 %v2040, %v2041
        %v2043 = vsel %vm2029, %v2028, 0.0
        %v2044 = vadd.f32 %v2042, %v2043
        %v2045 = vrot.slane %v2044, 4
        %v2046 = vadd.f32 %v2044, %v2045
        %v2047 = vrot.slane %v2046, 2
        %v2048 = vadd.f32 %v2046, %v2047
        %v2049 = vrot.slane %v2048, 1
        %v2050 = vadd.f32 %v2048, %v2049
        %v2051 = vmul.f32 %v2050, 0.015625
        %v2052 = vsub.f32 %v2021, %v2051
        %v2053 = vsub.f32 %v2022, %v2051
        %v2054 = vsub.f32 %v2023, %v2051
        %v2055 = vsub.f32 %v2024, %v2051
        %v2056 = vsub.f32 %v2025, %v2051
        %v2057 = vsub.f32 %v2026, %v2051
        %v2058 = vsub.f32 %v2027, %v2051
        %v2059 = vsub.f32 %v2028, %v2051
        %v2060 = vmul.f32 %v2052, %v2052
        %v2061 = vmul.f32 %v2053, %v2053
        %v2062 = vmul.f32 %v2054, %v2054
        %v2063 = vmul.f32 %v2055, %v2055
        %v2064 = vmul.f32 %v2056, %v2056
        %v2065 = vmul.f32 %v2057, %v2057
        %v2066 = vmul.f32 %v2058, %v2058
        %v2067 = vmul.f32 %v2059, %v2059
        %v2068 = vsel %vm2029, %v2060, 0.0
        %v2069 = vsel %vm2029, %v2061, 0.0
        %v2070 = vadd.f32 %v2068, %v2069
        %v2071 = vsel %vm2029, %v2062, 0.0
        %v2072 = vadd.f32 %v2070, %v2071
        %v2073 = vsel %vm2029, %v2063, 0.0
        %v2074 = vadd.f32 %v2072, %v2073
        %v2075 = vsel %vm2029, %v2064, 0.0
        %v2076 = vadd.f32 %v2074, %v2075
        %v2077 = vsel %vm2029, %v2065, 0.0
        %v2078 = vadd.f32 %v2076, %v2077
        %v2079 = vsel %vm2029, %v2066, 0.0
        %v2080 = vadd.f32 %v2078, %v2079
        %v2081 = vsel %vm2029, %v2067, 0.0
        %v2082 = vadd.f32 %v2080, %v2081
        %v2083 = vrot.slane %v2082, 4
        %v2084 = vadd.f32 %v2082, %v2083
        %v2085 = vrot.slane %v2084, 2
        %v2086 = vadd.f32 %v2084, %v2085
        %v2087 = vrot.slane %v2086, 1
        %v2088 = vadd.f32 %v2086, %v2087
        %v2089 = vmul.f32 %v2088, 0.015625
        %v2090 = vld [vmem:[%s5] sm:$0x1]
        %v2091 = vadd.f32 %v2089, 1e-05
        %v2092 = vrsqrt.pop %v2091
        %v2093 = vmul.f32 %v2090, %v2092
        %v2094 = vlaneseq
        %v2095 = vshrl.u32 %v2094, 7
        %v2096 = vsub.s32 0, %v2095
        %v2097 = vrot.slane %v2093, %v2096
        %v2098 = vmul.f32 %v2052, %v2097
        %v2099 = vmul.f32 %v2053, %v2097
        %v2100 = vmul.f32 %v2054, %v2097
        %v2101 = vmul.f32 %v2055, %v2097
        %v2102 = vmul.f32 %v2056, %v2097
        %v2103 = vmul.f32 %v2057, %v2097
        %v2104 = vmul.f32 %v2058, %v2097
        %v2105 = vmul.f32 %v2059, %v2097
        %v2106 = vld [vmem:[%s5 + $0x1] sm:$0x1]
        %v2107 = vlaneseq
        %v2108 = vshrl.u32 %v2107, 7
        %v2109 = vsub.s32 0, %v2108
        %v2110 = vrot.slane %v2106, %v2109
        %v2111 = vadd.f32 %v2098, %v2110
        %v2112 = vadd.f32 %v2099, %v2110
        %v2113 = vadd.f32 %v2100, %v2110
        %v2114 = vadd.f32 %v2101, %v2110
        %v2115 = vadd.f32 %v2102, %v2110
        %v2116 = vadd.f32 %v2103, %v2110
        %v2117 = vadd.f32 %v2104, %v2110
        %v2118 = vadd.f32 %v2105, %v2110
        %v2119 = vmax.f32 %v2111, 0.0
        %v2120 = vmax.f32 %v2112, 0.0
        %v2121 = vmax.f32 %v2113, 0.0
        %v2122 = vmax.f32 %v2114, 0.0
        %v2123 = vmax.f32 %v2115, 0.0
        %v2124 = vmax.f32 %v2116, 0.0
        %v2125 = vmax.f32 %v2117, 0.0
        %v2126 = vmax.f32 %v2118, 0.0
        %v2127 = vpack.c.bf16 %v2120, %v2119
        %v2128 = vpack.c.bf16 %v2122, %v2121
        %v2129 = vpack.c.bf16 %v2124, %v2123
        %v2130 = vpack.c.bf16 %v2126, %v2125
        %v2135 = vunpack.c.l.b16 %v2127
        %v2136 = vunpack.c.h.b16 %v2127
        %v2137 = vunpack.c.l.b16 %v2128
        %v2138 = vunpack.c.h.b16 %v2128
        %v2139 = vunpack.c.l.b16 %v2129
        %v2140 = vunpack.c.h.b16 %v2129
        %v2141 = vunpack.c.l.b16 %v2130
        %v2142 = vunpack.c.h.b16 %v2130
        %v2143 = vpack.c.b16 %v2135, %v2135
        %v2144 = vpack.c.b16 %v2136, %v2136
        %v2145 = vpack.c.b16 %v2137, %v2137
        %v2146 = vpack.c.b16 %v2138, %v2138
        %v2147 = vpack.c.b16 %v2139, %v2139
        %v2148 = vpack.c.b16 %v2140, %v2140
        %v2149 = vpack.c.b16 %v2141, %v2141
        %v2150 = vpack.c.b16 %v2142, %v2142
        %v2152 = vshrl.u32 %v2143, 16
        %v2154 = vrot.slane %v2152, 7
        %v2155 = vshll.u32 %v2143, 16
        %v2157 = vor.u32 %v2154, %v2155
        %v2158 = vrot.slane %v2154, 4
        %v2160 = vshrl.u32 %v2144, 16
        %v2162 = vrot.slane %v2160, 7
        %v2163 = vshll.u32 %v2144, 16
        %v2165 = vor.u32 %v2162, %v2163
        %v2166 = vsel %vm790, %v2158, %v2165
        %v2167 = vrot.slane %v2162, 4
        %v2169 = vshrl.u32 %v2145, 16
        %v2171 = vrot.slane %v2169, 7
        %v2172 = vshll.u32 %v2145, 16
        %v2174 = vor.u32 %v2171, %v2172
        %v2175 = vrot.slane %v2171, 4
        %v2177 = vshrl.u32 %v2146, 16
        %v2179 = vrot.slane %v2177, 7
        %v2180 = vshll.u32 %v2146, 16
        %v2182 = vor.u32 %v2179, %v2180
        %v2183 = vsel %vm790, %v2175, %v2182
        %v2184 = vrot.slane %v2179, 4
        %v2186 = vshrl.u32 %v2147, 16
        %v2188 = vrot.slane %v2186, 7
        %v2189 = vshll.u32 %v2147, 16
        %v2191 = vor.u32 %v2188, %v2189
        %v2192 = vrot.slane %v2188, 4
        %v2194 = vshrl.u32 %v2148, 16
        %v2196 = vrot.slane %v2194, 7
        %v2197 = vshll.u32 %v2148, 16
        %v2199 = vor.u32 %v2196, %v2197
        %v2200 = vsel %vm790, %v2192, %v2199
        %v2201 = vrot.slane %v2196, 4
        %v2203 = vshrl.u32 %v2149, 16
        %v2205 = vrot.slane %v2203, 7
        %v2206 = vshll.u32 %v2149, 16
        %v2208 = vor.u32 %v2205, %v2206
        %v2209 = vrot.slane %v2205, 4
        %v2211 = vshrl.u32 %v2150, 16
        %v2213 = vrot.slane %v2211, 7
        %v2214 = vshll.u32 %v2150, 16
        %v2216 = vor.u32 %v2213, %v2214
        %v2217 = vsel %vm790, %v2209, %v2216
        %v2218 = vrot.slane %v2213, 4
        %vm2231 = vcmask 125952
        %vm2232 = vmand %vm2231, %vm751
        %v2233 = vsel %vm2232, %v2157, %v1584
        %2234 = vst [vmem:[#allocation3] sm:$0xf] %v2233
        %vm2235 = vcmask 125952
        %2236 = vst.msk [vmem:[#allocation3 + $0x4] sm:$0xf] %vm2235, %v2166
        %vm2237 = vcmask 122880
        %vm2238 = vmand %vm2237, %vm737
        %v2239 = vld [vmem:[#allocation3 + $0x8] sm:$0x1]
        %v2240 = vsel %vm2238, %v2167, %v2239
        %2241 = vst [vmem:[#allocation3 + $0x8] sm:$0x1] %v2240
        %v2242 = vld [vmem:[#allocation3 + $0xc] sm:$0xf]
        %v2243 = vsel %vm2232, %v2174, %v2242
        %2244 = vst [vmem:[#allocation3 + $0xc] sm:$0xf] %v2243
        %2245 = vst.msk [vmem:[#allocation3 + $0x10] sm:$0xf] %vm2235, %v2183
        %v2246 = vld [vmem:[#allocation3 + $0x14] sm:$0x1]
        %v2247 = vsel %vm2238, %v2184, %v2246
        %2248 = vst [vmem:[#allocation3 + $0x14] sm:$0x1] %v2247
        %v2249 = vld [vmem:[#allocation3 + $0x18] sm:$0xf]
        %v2250 = vsel %vm2232, %v2191, %v2249
        %2251 = vst [vmem:[#allocation3 + $0x18] sm:$0xf] %v2250
        %2252 = vst.msk [vmem:[#allocation3 + $0x1c] sm:$0xf] %vm2235, %v2200
        %v2253 = vld [vmem:[#allocation3 + $0x20] sm:$0x1]
        %v2254 = vsel %vm2238, %v2201, %v2253
        %2255 = vst [vmem:[#allocation3 + $0x20] sm:$0x1] %v2254
        %v2256 = vld [vmem:[#allocation3 + $0x24] sm:$0xf]
        %v2257 = vsel %vm2232, %v2208, %v2256
        %2258 = vst [vmem:[#allocation3 + $0x24] sm:$0xf] %v2257
        %2259 = vst.msk [vmem:[#allocation3 + $0x28] sm:$0xf] %vm2235, %v2217
        %v2260 = vld [vmem:[#allocation3 + $0x2c] sm:$0x1]
        %v2261 = vsel %vm2238, %v2218, %v2260
        %2262 = vst [vmem:[#allocation3 + $0x2c] sm:$0x1] %v2261
        %v2263 = vld [vmem:[#allocation3] sm:$0xf]
        %v2264 = vld [vmem:[#allocation3 + $0x4] sm:$0xf]
        %v2265 = vld [vmem:[#allocation3 + $0xc] sm:$0xf]
        %v2266 = vld [vmem:[#allocation3 + $0x10] sm:$0xf]
        %v2267 = vld [vmem:[#allocation3 + $0x18] sm:$0xf]
        %v2268 = vld [vmem:[#allocation3 + $0x1c] sm:$0xf]
        %v2269 = vld [vmem:[#allocation3 + $0x24] sm:$0xf]
        %v2270 = vld [vmem:[#allocation3 + $0x28] sm:$0xf]
        %v2271 = vld [vmem:[%s6] sm:$0xf]
        %v2272 = vld [vmem:[%s6 + $0x4] sm:$0xf]
        %v2273 = vld [vmem:[#allocation3 + $0x8] sm:$0x1]
        %v2274 = vld [vmem:[#allocation3 + $0x14] sm:$0x1]
        %v2275 = vld [vmem:[#allocation3 + $0x20] sm:$0x1]
        %v2276 = vld [vmem:[#allocation3 + $0x2c] sm:$0x1]
        %v2278 = vshrl.u32 %v2263, 16
        %v2280 = vrot.slane %v2278, 4
        %v2281 = vshll.u32 %v2263, 16
        %v2283 = vrot.slane %v2281, 5
        %v2284 = vor.u32 %v2280, %v2283
        %v2285 = vrot.slane %v2284, 4
        %v2287 = vshll.u32 %v2264, 16
        %v2289 = vrot.slane %v2287, 5
        %v2290 = vsel %vm919, %v2285, %v2289
        %v2291 = vshrl.u32 %v2264, 16
        %v2293 = vrot.slane %v2291, 4
        %v2294 = vor.u32 %v2293, %v2289
        %v2295 = vrot.slane %v2294, 4
        %v2297 = vshll.u32 %v2273, 16
        %v2299 = vrot.slane %v2297, 5
        %v2300 = vsel %vm919, %v2295, %v2299
        %v2302 = vshrl.u32 %v2265, 16
        %v2304 = vrot.slane %v2302, 4
        %v2305 = vshll.u32 %v2265, 16
        %v2307 = vrot.slane %v2305, 5
        %v2308 = vor.u32 %v2304, %v2307
        %v2309 = vrot.slane %v2308, 4
        %v2311 = vshll.u32 %v2266, 16
        %v2313 = vrot.slane %v2311, 5
        %v2314 = vsel %vm919, %v2309, %v2313
        %v2315 = vshrl.u32 %v2266, 16
        %v2317 = vrot.slane %v2315, 4
        %v2318 = vor.u32 %v2317, %v2313
        %v2319 = vrot.slane %v2318, 4
        %v2321 = vshll.u32 %v2274, 16
        %v2323 = vrot.slane %v2321, 5
        %v2324 = vsel %vm919, %v2319, %v2323
        %v2326 = vshrl.u32 %v2267, 16
        %v2328 = vrot.slane %v2326, 4
        %v2329 = vshll.u32 %v2267, 16
        %v2331 = vrot.slane %v2329, 5
        %v2332 = vor.u32 %v2328, %v2331
        %v2333 = vrot.slane %v2332, 4
        %v2335 = vshll.u32 %v2268, 16
        %v2337 = vrot.slane %v2335, 5
        %v2338 = vsel %vm919, %v2333, %v2337
        %v2339 = vshrl.u32 %v2268, 16
        %v2341 = vrot.slane %v2339, 4
        %v2342 = vor.u32 %v2341, %v2337
        %v2343 = vrot.slane %v2342, 4
        %v2345 = vshll.u32 %v2275, 16
        %v2347 = vrot.slane %v2345, 5
        %v2348 = vsel %vm919, %v2343, %v2347
        %v2350 = vshrl.u32 %v2269, 16
        %v2352 = vrot.slane %v2350, 4
        %v2353 = vshll.u32 %v2269, 16
        %v2355 = vrot.slane %v2353, 5
        %v2356 = vor.u32 %v2352, %v2355
        %v2357 = vrot.slane %v2356, 4
        %v2359 = vshll.u32 %v2270, 16
        %v2361 = vrot.slane %v2359, 5
        %v2362 = vsel %vm919, %v2357, %v2361
        %v2363 = vshrl.u32 %v2270, 16
        %v2365 = vrot.slane %v2363, 4
        %v2366 = vor.u32 %v2365, %v2361
        %v2367 = vrot.slane %v2366, 4
        %v2369 = vshll.u32 %v2276, 16
        %v2371 = vrot.slane %v2369, 5
        %v2372 = vsel %vm919, %v2367, %v2371
        %s2373 = scalar_lea.vmem %s6, 8
        %v2374 = vld [vmem:[%s2373] sm:$0xf]
        %v2375 = vld [vmem:[%s2373 + $0x4] sm:$0xf]
        %v2376 = vunpack.c.l.b16 %v2290
        %v2377 = vunpack.c.l.b16 %v2300
        %v2378 = vunpack.c.l.b16 %v2314
        %v2379 = vunpack.c.l.b16 %v2324
        %v2380 = vunpack.c.l.b16 %v2338
        %v2381 = vunpack.c.l.b16 %v2348
        %v2382 = vunpack.c.l.b16 %v2362
        %v2383 = vunpack.c.l.b16 %v2372
        %v2384 = vpack.c.b16 %v2377, %v2376
        %v2385 = vpack.c.b16 %v2379, %v2378
        %v2386 = vpack.c.b16 %v2381, %v2380
        %v2387 = vpack.c.b16 %v2383, %v2382
        %v2390 = vunpack.c.l.b16 %v2374
        %v2391 = vunpack.c.l.b16 %v2375
        %v2392 = vpack.c.b16 %v2391, %v2390
        %v2395 = vsel %vm2029, %v2384, 0
        %v2398 = vsel %vm2029, %v2385, 0
        %v2401 = vsel %vm2029, %v2386, 0
        %v2404 = vsel %vm2029, %v2387, 0
        %2406 = vmatprep.subr.bf16.mxu0 0
        %2407 = vmatpush1.bf16.msra.mxu0 %v2392
        %2408 = vmatprep.subr.bf16.mxu0 0
        %2409 = vmatpush1.bf16.msra.mxu0 0
        %2410 = vmatprep.subr.bf16.mxu0 0
        %2411 = vmatpush1.bf16.msra.mxu0 0
        %2412 = vmatprep.subr.bf16.mxu0 0
        %2413 = vmatpush1.bf16.msra.mxu0 0
        %2414 = vmatprep.subr.bf16.mxu0 0
        %2415 = vmatpush1.bf16.msra.mxu0 0
        %2416 = vmatprep.subr.bf16.mxu0 0
        %2417 = vmatpush1.bf16.msra.mxu0 0
        %2418 = vmatprep.subr.bf16.mxu0 0
        %2419 = vmatpush1.bf16.msra.mxu0 0
        %2420 = vmatprep.subr.bf16.mxu0 0
        %2421 = vmatpush1.bf16.msra.mxu0 0
        %2422 = vmatprep.subr.bf16.mxu0 0
        %2423 = vmatpush1.bf16.msra.mxu0 0
        %2424 = vmatprep.subr.bf16.mxu0 0
        %2425 = vmatpush1.bf16.msra.mxu0 0
        %2426 = vmatprep.subr.bf16.mxu0 0
        %2427 = vmatpush1.bf16.msra.mxu0 0
        %2428 = vmatprep.subr.bf16.mxu0 0
        %2429 = vmatpush1.bf16.msra.mxu0 0
        %2430 = vmatprep.subr.bf16.mxu0 0
        %2431 = vmatpush1.bf16.msra.mxu0 0
        %2432 = vmatprep.subr.bf16.mxu0 0
        %2433 = vmatpush1.bf16.msra.mxu0 0
        %2434 = vmatprep.subr.bf16.mxu0 0
        %2435 = vmatpush1.bf16.msra.mxu0 0
        %2436 = vmatprep.subr.bf16.mxu0 0
        %2437 = vmatpush1.bf16.msra.mxu0 0
        %2438 = vmatprep.mubr.bf16.mxu0 0
        %2439 = vmatmul.mubr.bf16.gmra.mrb[0].mxu0 %v2395
        %v2440 = vpop.f32.mrb[0].mxu0
        %v2441 = vadd.f32 0.0, %v2440
        %v2442 = vpop.f32.mrb[0].mxu0
        %v2443 = vpop.f32.mrb[0].mxu0
        %v2444 = vadd.f32 0.0, %v2443
        %v2445 = vpop.f32.mrb[0].mxu0
        %2446 = vmatprep.mubr.bf16.mxu0 0
        %2447 = vmatmul.mubr.bf16.gmra.mrb[0].mxu0 %v2398
        %v2448 = vpop.f32.mrb[0].mxu0
        %v2449 = vadd.f32 0.0, %v2448
        %v2450 = vpop.f32.mrb[0].mxu0
        %v2451 = vpop.f32.mrb[0].mxu0
        %v2452 = vadd.f32 0.0, %v2451
        %v2453 = vpop.f32.mrb[0].mxu0
        %2454 = vmatprep.mubr.bf16.mxu0 0
        %2455 = vmatmul.mubr.bf16.gmra.mrb[0].mxu0 %v2401
        %v2456 = vpop.f32.mrb[0].mxu0
        %v2457 = vadd.f32 0.0, %v2456
        %v2458 = vpop.f32.mrb[0].mxu0
        %v2459 = vpop.f32.mrb[0].mxu0
        %v2460 = vadd.f32 0.0, %v2459
        %v2461 = vpop.f32.mrb[0].mxu0
        %2462 = vmatprep.mubr.bf16.mxu0 0
        %2463 = vmatmul.mubr.bf16.gmra.mrb[0].mxu0 %v2404
        %v2464 = vpop.f32.mrb[0].mxu0
        %v2465 = vadd.f32 0.0, %v2464
        %v2466 = vpop.f32.mrb[0].mxu0
        %v2467 = vpop.f32.mrb[0].mxu0
        %v2468 = vadd.f32 0.0, %v2467
        %v2469 = vpop.f32.mrb[0].mxu0
        %2470 = vdwg.mxu0
        %v2479 = vunpack.c.l.b16 %v2263
        %v2480 = vunpack.c.l.b16 %v2264
        %v2481 = vunpack.c.l.b16 %v2265
        %v2482 = vunpack.c.l.b16 %v2266
        %v2483 = vunpack.c.l.b16 %v2267
        %v2484 = vunpack.c.l.b16 %v2268
        %v2485 = vunpack.c.l.b16 %v2269
        %v2486 = vunpack.c.l.b16 %v2270
        %v2487 = vpack.c.b16 %v2480, %v2479
        %v2488 = vpack.c.b16 %v2482, %v2481
        %v2489 = vpack.c.b16 %v2484, %v2483
        %v2490 = vpack.c.b16 %v2486, %v2485
        %v2493 = vunpack.c.l.b16 %v2271
        %v2494 = vunpack.c.l.b16 %v2272
        %v2495 = vpack.c.b16 %v2494, %v2493
        %v2498 = vsel %vm2029, %v2487, 0
        %v2501 = vsel %vm2029, %v2488, 0
        %v2504 = vsel %vm2029, %v2489, 0
        %v2507 = vsel %vm2029, %v2490, 0
        %2509 = vmatprep.subr.bf16.mxu0 0
        %2510 = vmatpush1.bf16.msra.mxu0 %v2495
        %2511 = vmatprep.subr.bf16.mxu0 0
        %2512 = vmatpush1.bf16.msra.mxu0 0
        %2513 = vmatprep.subr.bf16.mxu0 0
        %2514 = vmatpush1.bf16.msra.mxu0 0
        %2515 = vmatprep.subr.bf16.mxu0 0
        %2516 = vmatpush1.bf16.msra.mxu0 0
        %2517 = vmatprep.subr.bf16.mxu0 0
        %2518 = vmatpush1.bf16.msra.mxu0 0
        %2519 = vmatprep.subr.bf16.mxu0 0
        %2520 = vmatpush1.bf16.msra.mxu0 0
        %2521 = vmatprep.subr.bf16.mxu0 0
        %2522 = vmatpush1.bf16.msra.mxu0 0
        %2523 = vmatprep.subr.bf16.mxu0 0
        %2524 = vmatpush1.bf16.msra.mxu0 0
        %2525 = vmatprep.subr.bf16.mxu0 0
        %2526 = vmatpush1.bf16.msra.mxu0 0
        %2527 = vmatprep.subr.bf16.mxu0 0
        %2528 = vmatpush1.bf16.msra.mxu0 0
        %2529 = vmatprep.subr.bf16.mxu0 0
        %2530 = vmatpush1.bf16.msra.mxu0 0
        %2531 = vmatprep.subr.bf16.mxu0 0
        %2532 = vmatpush1.bf16.msra.mxu0 0
        %2533 = vmatprep.subr.bf16.mxu0 0
        %2534 = vmatpush1.bf16.msra.mxu0 0
        %2535 = vmatprep.subr.bf16.mxu0 0
        %2536 = vmatpush1.bf16.msra.mxu0 0
        %2537 = vmatprep.subr.bf16.mxu0 0
        %2538 = vmatpush1.bf16.msra.mxu0 0
        %2539 = vmatprep.subr.bf16.mxu0 0
        %2540 = vmatpush1.bf16.msra.mxu0 0
        %2541 = vmatprep.mubr.bf16.mxu0 0
        %2542 = vmatmul.mubr.bf16.gmra.mrb[0].mxu0 %v2498
        %v2543 = vpop.f32.mrb[0].mxu0
        %v2544 = vadd.f32 %v2441, %v2543
        %v2545 = vpop.f32.mrb[0].mxu0
        %v2546 = vpop.f32.mrb[0].mxu0
        %v2547 = vadd.f32 %v2444, %v2546
        %v2548 = vpop.f32.mrb[0].mxu0
        %2549 = vmatprep.mubr.bf16.mxu0 0
        %2550 = vmatmul.mubr.bf16.gmra.mrb[0].mxu0 %v2501
        %v2551 = vpop.f32.mrb[0].mxu0
        %v2552 = vadd.f32 %v2449, %v2551
        %v2553 = vpop.f32.mrb[0].mxu0
        %v2554 = vpop.f32.mrb[0].mxu0
        %v2555 = vadd.f32 %v2452, %v2554
        %v2556 = vpop.f32.mrb[0].mxu0
        %2557 = vmatprep.mubr.bf16.mxu0 0
        %2558 = vmatmul.mubr.bf16.gmra.mrb[0].mxu0 %v2504
        %v2559 = vpop.f32.mrb[0].mxu0
        %v2560 = vadd.f32 %v2457, %v2559
        %v2561 = vpop.f32.mrb[0].mxu0
        %v2562 = vpop.f32.mrb[0].mxu0
        %v2563 = vadd.f32 %v2460, %v2562
        %v2564 = vpop.f32.mrb[0].mxu0
        %2565 = vmatprep.mubr.bf16.mxu0 0
        %2566 = vmatmul.mubr.bf16.gmra.mrb[0].mxu0 %v2507
        %v2567 = vpop.f32.mrb[0].mxu0
        %v2568 = vadd.f32 %v2465, %v2567
        %v2569 = vpop.f32.mrb[0].mxu0
        %v2570 = vpop.f32.mrb[0].mxu0
        %v2571 = vadd.f32 %v2468, %v2570
        %v2572 = vpop.f32.mrb[0].mxu0
        %2573 = vdwg.mxu0
        %v2574 = vld [vmem:[#allocation3] sm:$0xe]
        %v2575 = vld [vmem:[#allocation3 + $0xc] sm:$0xe]
        %v2576 = vld [vmem:[#allocation3 + $0x18] sm:$0xe]
        %v2577 = vld [vmem:[#allocation3 + $0x24] sm:$0xe]
        %v2586 = vrot.slane %v2574, 5
        %v2587 = vrot.slane %v2586, 4
        %v2588 = vrot.slane %v2264, 5
        %v2589 = vsel %vm1225, %v2587, %v2588
        %v2590 = vrot.slane %v2588, 4
        %v2591 = vrot.slane %v2273, 5
        %v2592 = vsel %vm1225, %v2590, %v2591
        %v2593 = vrot.slane %v2575, 5
        %v2594 = vrot.slane %v2593, 4
        %v2595 = vrot.slane %v2266, 5
        %v2596 = vsel %vm1225, %v2594, %v2595
        %v2597 = vrot.slane %v2595, 4
        %v2598 = vrot.slane %v2274, 5
        %v2599 = vsel %vm1225, %v2597, %v2598
        %v2600 = vrot.slane %v2576, 5
        %v2601 = vrot.slane %v2600, 4
        %v2602 = vrot.slane %v2268, 5
        %v2603 = vsel %vm1225, %v2601, %v2602
        %v2604 = vrot.slane %v2602, 4
        %v2605 = vrot.slane %v2275, 5
        %v2606 = vsel %vm1225, %v2604, %v2605
        %v2607 = vrot.slane %v2577, 5
        %v2608 = vrot.slane %v2607, 4
        %v2609 = vrot.slane %v2270, 5
        %v2610 = vsel %vm1225, %v2608, %v2609
        %v2611 = vrot.slane %v2609, 4
        %v2612 = vrot.slane %v2276, 5
        %v2613 = vsel %vm1225, %v2611, %v2612
        %s2614 = scalar_lea.vmem %s6, 16
        %v2615 = vld [vmem:[%s2614] sm:$0xf]
        %v2616 = vld [vmem:[%s2614 + $0x4] sm:$0xf]
        %v2617 = vunpack.c.l.b16 %v2589
        %v2618 = vunpack.c.l.b16 %v2592
        %v2619 = vunpack.c.l.b16 %v2596
        %v2620 = vunpack.c.l.b16 %v2599
        %v2621 = vunpack.c.l.b16 %v2603
        %v2622 = vunpack.c.l.b16 %v2606
        %v2623 = vunpack.c.l.b16 %v2610
        %v2624 = vunpack.c.l.b16 %v2613
        %v2625 = vpack.c.b16 %v2618, %v2617
        %v2626 = vpack.c.b16 %v2620, %v2619
        %v2627 = vpack.c.b16 %v2622, %v2621
        %v2628 = vpack.c.b16 %v2624, %v2623
        %v2631 = vunpack.c.l.b16 %v2615
        %v2632 = vunpack.c.l.b16 %v2616
        %v2633 = vpack.c.b16 %v2632, %v2631
        %v2636 = vsel %vm2029, %v2625, 0
        %v2639 = vsel %vm2029, %v2626, 0
        %v2642 = vsel %vm2029, %v2627, 0
        %v2645 = vsel %vm2029, %v2628, 0
        %2647 = vmatprep.subr.bf16.mxu0 0
        %2648 = vmatpush1.bf16.msra.mxu0 %v2633
        %2649 = vmatprep.subr.bf16.mxu0 0
        %2650 = vmatpush1.bf16.msra.mxu0 0
        %2651 = vmatprep.subr.bf16.mxu0 0
        %2652 = vmatpush1.bf16.msra.mxu0 0
        %2653 = vmatprep.subr.bf16.mxu0 0
        %2654 = vmatpush1.bf16.msra.mxu0 0
        %2655 = vmatprep.subr.bf16.mxu0 0
        %2656 = vmatpush1.bf16.msra.mxu0 0
        %2657 = vmatprep.subr.bf16.mxu0 0
        %2658 = vmatpush1.bf16.msra.mxu0 0
        %2659 = vmatprep.subr.bf16.mxu0 0
        %2660 = vmatpush1.bf16.msra.mxu0 0
        %2661 = vmatprep.subr.bf16.mxu0 0
        %2662 = vmatpush1.bf16.msra.mxu0 0
        %2663 = vmatprep.subr.bf16.mxu0 0
        %2664 = vmatpush1.bf16.msra.mxu0 0
        %2665 = vmatprep.subr.bf16.mxu0 0
        %2666 = vmatpush1.bf16.msra.mxu0 0
        %2667 = vmatprep.subr.bf16.mxu0 0
        %2668 = vmatpush1.bf16.msra.mxu0 0
        %2669 = vmatprep.subr.bf16.mxu0 0
        %2670 = vmatpush1.bf16.msra.mxu0 0
        %2671 = vmatprep.subr.bf16.mxu0 0
        %2672 = vmatpush1.bf16.msra.mxu0 0
        %2673 = vmatprep.subr.bf16.mxu0 0
        %2674 = vmatpush1.bf16.msra.mxu0 0
        %2675 = vmatprep.subr.bf16.mxu0 0
        %2676 = vmatpush1.bf16.msra.mxu0 0
        %2677 = vmatprep.subr.bf16.mxu0 0
        %2678 = vmatpush1.bf16.msra.mxu0 0
        %2679 = vmatprep.mubr.bf16.mxu0 0
        %2680 = vmatmul.mubr.bf16.gmra.mrb[0].mxu0 %v2636
        %v2681 = vpop.f32.mrb[0].mxu0
        %v2682 = vadd.f32 0.0, %v2681
        %v2683 = vpop.f32.mrb[0].mxu0
        %v2684 = vpop.f32.mrb[0].mxu0
        %v2685 = vadd.f32 0.0, %v2684
        %v2686 = vpop.f32.mrb[0].mxu0
        %2687 = vmatprep.mubr.bf16.mxu0 0
        %2688 = vmatmul.mubr.bf16.gmra.mrb[0].mxu0 %v2639
        %v2689 = vpop.f32.mrb[0].mxu0
        %v2690 = vadd.f32 0.0, %v2689
        %v2691 = vpop.f32.mrb[0].mxu0
        %v2692 = vpop.f32.mrb[0].mxu0
        %v2693 = vadd.f32 0.0, %v2692
        %v2694 = vpop.f32.mrb[0].mxu0
        %2695 = vmatprep.mubr.bf16.mxu0 0
        %2696 = vmatmul.mubr.bf16.gmra.mrb[0].mxu0 %v2642
        %v2697 = vpop.f32.mrb[0].mxu0
        %v2698 = vadd.f32 0.0, %v2697
        %v2699 = vpop.f32.mrb[0].mxu0
        %v2700 = vpop.f32.mrb[0].mxu0
        %v2701 = vadd.f32 0.0, %v2700
        %v2702 = vpop.f32.mrb[0].mxu0
        %2703 = vmatprep.mubr.bf16.mxu0 0
        %2704 = vmatmul.mubr.bf16.gmra.mrb[0].mxu0 %v2645
        %v2705 = vpop.f32.mrb[0].mxu0
        %v2706 = vadd.f32 0.0, %v2705
        %v2707 = vpop.f32.mrb[0].mxu0
        %v2708 = vpop.f32.mrb[0].mxu0
        %v2709 = vadd.f32 0.0, %v2708
        %v2710 = vpop.f32.mrb[0].mxu0
        %2711 = vdwg.mxu0
        %v2712 = vadd.f32 %v2544, %v2682
        %v2713 = vadd.f32 %v2547, %v2685
        %v2714 = vadd.f32 %v2552, %v2690
        %v2715 = vadd.f32 %v2555, %v2693
        %v2716 = vadd.f32 %v2560, %v2698
        %v2717 = vadd.f32 %v2563, %v2701
        %v2718 = vadd.f32 %v2568, %v2706
        %v2719 = vadd.f32 %v2571, %v2709
        %vm2720 = vcmask 261120
        %v2721 = vsel %vm2720, %v2712, 0.0
        %v2722 = vsel %vm2720, %v2713, 0.0
        %v2723 = vadd.f32 %v2721, %v2722
        %v2724 = vsel %vm2720, %v2714, 0.0
        %v2725 = vadd.f32 %v2723, %v2724
        %v2726 = vsel %vm2720, %v2715, 0.0
        %v2727 = vadd.f32 %v2725, %v2726
        %v2728 = vsel %vm2720, %v2716, 0.0
        %v2729 = vadd.f32 %v2727, %v2728
        %v2730 = vsel %vm2720, %v2717, 0.0
        %v2731 = vadd.f32 %v2729, %v2730
        %v2732 = vsel %vm2720, %v2718, 0.0
        %v2733 = vadd.f32 %v2731, %v2732
        %v2734 = vsel %vm2720, %v2719, 0.0
        %v2735 = vadd.f32 %v2733, %v2734
        %v2736 = vrot.slane %v2735, 4
        %v2737 = vadd.f32 %v2735, %v2736
        %v2738 = vrot.slane %v2737, 2
        %v2739 = vadd.f32 %v2737, %v2738
        %v2740 = vrot.slane %v2739, 1
        %v2741 = vadd.f32 %v2739, %v2740
        %v2742 = vmul.f32 %v2741, 0.015625
        %v2743 = vsub.f32 %v2712, %v2742
        %v2744 = vsub.f32 %v2713, %v2742
        %v2745 = vsub.f32 %v2714, %v2742
        %v2746 = vsub.f32 %v2715, %v2742
        %v2747 = vsub.f32 %v2716, %v2742
        %v2748 = vsub.f32 %v2717, %v2742
        %v2749 = vsub.f32 %v2718, %v2742
        %v2750 = vsub.f32 %v2719, %v2742
        %v2751 = vmul.f32 %v2743, %v2743
        %v2752 = vmul.f32 %v2744, %v2744
        %v2753 = vmul.f32 %v2745, %v2745
        %v2754 = vmul.f32 %v2746, %v2746
        %v2755 = vmul.f32 %v2747, %v2747
        %v2756 = vmul.f32 %v2748, %v2748
        %v2757 = vmul.f32 %v2749, %v2749
        %v2758 = vmul.f32 %v2750, %v2750
        %v2759 = vsel %vm2720, %v2751, 0.0
        %v2760 = vsel %vm2720, %v2752, 0.0
        %v2761 = vadd.f32 %v2759, %v2760
        %v2762 = vsel %vm2720, %v2753, 0.0
        %v2763 = vadd.f32 %v2761, %v2762
        %v2764 = vsel %vm2720, %v2754, 0.0
        %v2765 = vadd.f32 %v2763, %v2764
        %v2766 = vsel %vm2720, %v2755, 0.0
        %v2767 = vadd.f32 %v2765, %v2766
        %v2768 = vsel %vm2720, %v2756, 0.0
        %v2769 = vadd.f32 %v2767, %v2768
        %v2770 = vsel %vm2720, %v2757, 0.0
        %v2771 = vadd.f32 %v2769, %v2770
        %v2772 = vsel %vm2720, %v2758, 0.0
        %v2773 = vadd.f32 %v2771, %v2772
        %v2774 = vrot.slane %v2773, 4
        %v2775 = vadd.f32 %v2773, %v2774
        %v2776 = vrot.slane %v2775, 2
        %v2777 = vadd.f32 %v2775, %v2776
        %v2778 = vrot.slane %v2777, 1
        %v2779 = vadd.f32 %v2777, %v2778
        %v2780 = vmul.f32 %v2779, 0.015625
        %v2781 = vld [vmem:[%s7] sm:$0x1]
        %v2782 = vadd.f32 %v2780, 1e-05
        %v2783 = vrsqrt.pop %v2782
        %v2784 = vmul.f32 %v2781, %v2783
        %v2785 = vlaneseq
        %v2786 = vshrl.u32 %v2785, 7
        %v2787 = vsub.s32 0, %v2786
        %v2788 = vrot.slane %v2784, %v2787
        %v2789 = vmul.f32 %v2743, %v2788
        %v2790 = vmul.f32 %v2744, %v2788
        %v2791 = vmul.f32 %v2745, %v2788
        %v2792 = vmul.f32 %v2746, %v2788
        %v2793 = vmul.f32 %v2747, %v2788
        %v2794 = vmul.f32 %v2748, %v2788
        %v2795 = vmul.f32 %v2749, %v2788
        %v2796 = vmul.f32 %v2750, %v2788
        %v2797 = vld [vmem:[%s7 + $0x1] sm:$0x1]
        %v2798 = vlaneseq
        %v2799 = vshrl.u32 %v2798, 7
        %v2800 = vsub.s32 0, %v2799
        %v2801 = vrot.slane %v2797, %v2800
        %v2802 = vadd.f32 %v2789, %v2801
        %v2803 = vadd.f32 %v2790, %v2801
        %v2804 = vadd.f32 %v2791, %v2801
        %v2805 = vadd.f32 %v2792, %v2801
        %v2806 = vadd.f32 %v2793, %v2801
        %v2807 = vadd.f32 %v2794, %v2801
        %v2808 = vadd.f32 %v2795, %v2801
        %v2809 = vadd.f32 %v2796, %v2801
        %v2810 = vmax.f32 %v2802, 0.0
        %v2811 = vmax.f32 %v2803, 0.0
        %v2812 = vmax.f32 %v2804, 0.0
        %v2813 = vmax.f32 %v2805, 0.0
        %v2814 = vmax.f32 %v2806, 0.0
        %v2815 = vmax.f32 %v2807, 0.0
        %v2816 = vmax.f32 %v2808, 0.0
        %v2817 = vmax.f32 %v2809, 0.0
        %v2818 = vpack.c.bf16 %v2811, %v2810
        %v2819 = vpack.c.bf16 %v2813, %v2812
        %v2820 = vpack.c.bf16 %v2815, %v2814
        %v2821 = vpack.c.bf16 %v2817, %v2816
        %v2826 = vunpack.c.l.b16 %v2818
        %v2827 = vunpack.c.h.b16 %v2818
        %v2828 = vunpack.c.l.b16 %v2819
        %v2829 = vunpack.c.h.b16 %v2819
        %v2830 = vunpack.c.l.b16 %v2820
        %v2831 = vunpack.c.h.b16 %v2820
        %v2832 = vunpack.c.l.b16 %v2821
        %v2833 = vunpack.c.h.b16 %v2821
        %v2834 = vpack.c.b16 %v2826, %v2826
        %v2835 = vpack.c.b16 %v2827, %v2827
        %v2836 = vpack.c.b16 %v2828, %v2828
        %v2837 = vpack.c.b16 %v2829, %v2829
        %v2838 = vpack.c.b16 %v2830, %v2830
        %v2839 = vpack.c.b16 %v2831, %v2831
        %v2840 = vpack.c.b16 %v2832, %v2832
        %v2841 = vpack.c.b16 %v2833, %v2833
        %v2843 = vshrl.u32 %v2834, 16
        %v2845 = vrot.slane %v2843, 7
        %v2846 = vshll.u32 %v2834, 16
        %v2848 = vor.u32 %v2845, %v2846
        %v2849 = vrot.slane %v2845, 4
        %v2851 = vshrl.u32 %v2835, 16
        %v2853 = vrot.slane %v2851, 7
        %v2854 = vshll.u32 %v2835, 16
        %v2856 = vor.u32 %v2853, %v2854
        %v2857 = vsel %vm790, %v2849, %v2856
        %v2858 = vrot.slane %v2853, 4
        %v2860 = vshrl.u32 %v2836, 16
        %v2862 = vrot.slane %v2860, 7
        %v2863 = vshll.u32 %v2836, 16
        %v2865 = vor.u32 %v2862, %v2863
        %v2866 = vrot.slane %v2862, 4
        %v2868 = vshrl.u32 %v2837, 16
        %v2870 = vrot.slane %v2868, 7
        %v2871 = vshll.u32 %v2837, 16
        %v2873 = vor.u32 %v2870, %v2871
        %v2874 = vsel %vm790, %v2866, %v2873
        %v2875 = vrot.slane %v2870, 4
        %v2877 = vshrl.u32 %v2838, 16
        %v2879 = vrot.slane %v2877, 7
        %v2880 = vshll.u32 %v2838, 16
        %v2882 = vor.u32 %v2879, %v2880
        %v2883 = vrot.slane %v2879, 4
        %v2885 = vshrl.u32 %v2839, 16
        %v2887 = vrot.slane %v2885, 7
        %v2888 = vshll.u32 %v2839, 16
        %v2890 = vor.u32 %v2887, %v2888
        %v2891 = vsel %vm790, %v2883, %v2890
        %v2892 = vrot.slane %v2887, 4
        %v2894 = vshrl.u32 %v2840, 16
        %v2896 = vrot.slane %v2894, 7
        %v2897 = vshll.u32 %v2840, 16
        %v2899 = vor.u32 %v2896, %v2897
        %v2900 = vrot.slane %v2896, 4
        %v2902 = vshrl.u32 %v2841, 16
        %v2904 = vrot.slane %v2902, 7
        %v2905 = vshll.u32 %v2841, 16
        %v2907 = vor.u32 %v2904, %v2905
        %v2908 = vsel %vm790, %v2900, %v2907
        %v2909 = vrot.slane %v2904, 4
        %vm2922 = vcmask 257024
        %vm2923 = vmand %vm2922, %vm751
        %v2924 = vsel %vm2923, %v2848, %v2263
        %2925 = vst [vmem:[#allocation3] sm:$0xf] %v2924
        %vm2926 = vcmask 257024
        %2927 = vst.msk [vmem:[#allocation3 + $0x4] sm:$0xf] %vm2926, %v2857
        %vm2928 = vcmask 253952
        %vm2929 = vmand %vm2928, %vm737
        %v2930 = vld [vmem:[#allocation3 + $0x8] sm:$0x1]
        %v2931 = vsel %vm2929, %v2858, %v2930
        %2932 = vst [vmem:[#allocation3 + $0x8] sm:$0x1] %v2931
        %v2933 = vld [vmem:[#allocation3 + $0xc] sm:$0xf]
        %v2934 = vsel %vm2923, %v2865, %v2933
        %2935 = vst [vmem:[#allocation3 + $0xc] sm:$0xf] %v2934
        %2936 = vst.msk [vmem:[#allocation3 + $0x10] sm:$0xf] %vm2926, %v2874
        %v2937 = vld [vmem:[#allocation3 + $0x14] sm:$0x1]
        %v2938 = vsel %vm2929, %v2875, %v2937
        %2939 = vst [vmem:[#allocation3 + $0x14] sm:$0x1] %v2938
        %v2940 = vld [vmem:[#allocation3 + $0x18] sm:$0xf]
        %v2941 = vsel %vm2923, %v2882, %v2940
        %2942 = vst [vmem:[#allocation3 + $0x18] sm:$0xf] %v2941
        %2943 = vst.msk [vmem:[#allocation3 + $0x1c] sm:$0xf] %vm2926, %v2891
        %v2944 = vld [vmem:[#allocation3 + $0x20] sm:$0x1]
        %v2945 = vsel %vm2929, %v2892, %v2944
        %2946 = vst [vmem:[#allocation3 + $0x20] sm:$0x1] %v2945
        %v2947 = vld [vmem:[#allocation3 + $0x24] sm:$0xf]
        %v2948 = vsel %vm2923, %v2899, %v2947
        %2949 = vst [vmem:[#allocation3 + $0x24] sm:$0xf] %v2948
        %2950 = vst.msk [vmem:[#allocation3 + $0x28] sm:$0xf] %vm2926, %v2908
        %v2951 = vld [vmem:[#allocation3 + $0x2c] sm:$0x1]
        %v2952 = vsel %vm2929, %v2909, %v2951
        %2953 = vst [vmem:[#allocation3 + $0x2c] sm:$0x1] %v2952
        %v2954 = vld [vmem:[#allocation3] sm:$0xf]
        %v2955 = vld [vmem:[#allocation3 + $0x4] sm:$0xf]
        %v2956 = vld [vmem:[#allocation3 + $0xc] sm:$0xf]
        %v2957 = vld [vmem:[#allocation3 + $0x10] sm:$0xf]
        %v2958 = vld [vmem:[#allocation3 + $0x18] sm:$0xf]
        %v2959 = vld [vmem:[#allocation3 + $0x1c] sm:$0xf]
        %v2960 = vld [vmem:[#allocation3 + $0x24] sm:$0xf]
        %v2961 = vld [vmem:[#allocation3 + $0x28] sm:$0xf]
        %v2962 = vld [vmem:[%s8] sm:$0xf]
        %v2963 = vld [vmem:[%s8 + $0x4] sm:$0xf]
        %v2964 = vld [vmem:[%s8 + $0x8] sm:$0xf]
        %v2965 = vld [vmem:[%s8 + $0xc] sm:$0xf]
        %v2966 = vld [vmem:[#allocation3 + $0x8] sm:$0x1]
        %v2967 = vld [vmem:[#allocation3 + $0x14] sm:$0x1]
        %v2968 = vld [vmem:[#allocation3 + $0x20] sm:$0x1]
        %v2969 = vld [vmem:[#allocation3 + $0x2c] sm:$0x1]
        %v2971 = vshrl.u32 %v2954, 16
        %v2973 = vrot.slane %v2971, 4
        %v2974 = vshll.u32 %v2954, 16
        %v2976 = vrot.slane %v2974, 5
        %v2977 = vor.u32 %v2973, %v2976
        %v2978 = vrot.slane %v2977, 4
        %v2980 = vshll.u32 %v2955, 16
        %v2982 = vrot.slane %v2980, 5
        %v2983 = vsel %vm919, %v2978, %v2982
        %v2984 = vshrl.u32 %v2955, 16
        %v2986 = vrot.slane %v2984, 4
        %v2987 = vor.u32 %v2986, %v2982
        %v2988 = vrot.slane %v2987, 4
        %v2990 = vshll.u32 %v2966, 16
        %v2992 = vrot.slane %v2990, 5
        %v2993 = vsel %vm919, %v2988, %v2992
        %v2995 = vshrl.u32 %v2956, 16
        %v2997 = vrot.slane %v2995, 4
        %v2998 = vshll.u32 %v2956, 16
        %v3000 = vrot.slane %v2998, 5
        %v3001 = vor.u32 %v2997, %v3000
        %v3002 = vrot.slane %v3001, 4
        %v3004 = vshll.u32 %v2957, 16
        %v3006 = vrot.slane %v3004, 5
        %v3007 = vsel %vm919, %v3002, %v3006
        %v3008 = vshrl.u32 %v2957, 16
        %v3010 = vrot.slane %v3008, 4
        %v3011 = vor.u32 %v3010, %v3006
        %v3012 = vrot.slane %v3011, 4
        %v3014 = vshll.u32 %v2967, 16
        %v3016 = vrot.slane %v3014, 5
        %v3017 = vsel %vm919, %v3012, %v3016
        %v3019 = vshrl.u32 %v2958, 16
        %v3021 = vrot.slane %v3019, 4
        %v3022 = vshll.u32 %v2958, 16
        %v3024 = vrot.slane %v3022, 5
        %v3025 = vor.u32 %v3021, %v3024
        %v3026 = vrot.slane %v3025, 4
        %v3028 = vshll.u32 %v2959, 16
        %v3030 = vrot.slane %v3028, 5
        %v3031 = vsel %vm919, %v3026, %v3030
        %v3032 = vshrl.u32 %v2959, 16
        %v3034 = vrot.slane %v3032, 4
        %v3035 = vor.u32 %v3034, %v3030
        %v3036 = vrot.slane %v3035, 4
        %v3038 = vshll.u32 %v2968, 16
        %v3040 = vrot.slane %v3038, 5
        %v3041 = vsel %vm919, %v3036, %v3040
        %v3043 = vshrl.u32 %v2960, 16
        %v3045 = vrot.slane %v3043, 4
        %v3046 = vshll.u32 %v2960, 16
        %v3048 = vrot.slane %v3046, 5
        %v3049 = vor.u32 %v3045, %v3048
        %v3050 = vrot.slane %v3049, 4
        %v3052 = vshll.u32 %v2961, 16
        %v3054 = vrot.slane %v3052, 5
        %v3055 = vsel %vm919, %v3050, %v3054
        %v3056 = vshrl.u32 %v2961, 16
        %v3058 = vrot.slane %v3056, 4
        %v3059 = vor.u32 %v3058, %v3054
        %v3060 = vrot.slane %v3059, 4
        %v3062 = vshll.u32 %v2969, 16
        %v3064 = vrot.slane %v3062, 5
        %v3065 = vsel %vm919, %v3060, %v3064
        %s3066 = scalar_lea.vmem %s8, 16
        %v3067 = vld [vmem:[%s3066] sm:$0xf]
        %v3068 = vld [vmem:[%s3066 + $0x4] sm:$0xf]
        %v3069 = vld [vmem:[%s3066 + $0x8] sm:$0xf]
        %v3070 = vld [vmem:[%s3066 + $0xc] sm:$0xf]
        %v3071 = vunpack.c.l.b16 %v2983
        %v3072 = vunpack.c.l.b16 %v2993
        %v3073 = vunpack.c.l.b16 %v3007
        %v3074 = vunpack.c.l.b16 %v3017
        %v3075 = vunpack.c.l.b16 %v3031
        %v3076 = vunpack.c.l.b16 %v3041
        %v3077 = vunpack.c.l.b16 %v3055
        %v3078 = vunpack.c.l.b16 %v3065
        %v3079 = vpack.c.b16 %v3072, %v3071
        %v3080 = vpack.c.b16 %v3074, %v3073
        %v3081 = vpack.c.b16 %v3076, %v3075
        %v3082 = vpack.c.b16 %v3078, %v3077
        %v3087 = vunpack.c.l.b16 %v3067
        %v3088 = vunpack.c.l.b16 %v3068
        %v3089 = vunpack.c.l.b16 %v3069
        %v3090 = vunpack.c.l.b16 %v3070
        %v3091 = vpack.c.b16 %v3088, %v3087
        %v3092 = vpack.c.b16 %v3090, %v3089
        %v3096 = vsel %vm2720, %v3079, 0
        %v3099 = vsel %vm2720, %v3080, 0
        %v3102 = vsel %vm2720, %v3081, 0
        %v3105 = vsel %vm2720, %v3082, 0
        %3107 = vmatprep.subr.bf16.mxu0 0
        %3108 = vmatpush1.bf16.msra.mxu0 %v3091
        %3109 = vmatprep.subr.bf16.mxu0 0
        %3110 = vmatpush1.bf16.msra.mxu0 %v3092
        %3111 = vmatprep.subr.bf16.mxu0 0
        %3112 = vmatpush1.bf16.msra.mxu0 0
        %3113 = vmatprep.subr.bf16.mxu0 0
        %3114 = vmatpush1.bf16.msra.mxu0 0
        %3115 = vmatprep.subr.bf16.mxu0 0
        %3116 = vmatpush1.bf16.msra.mxu0 0
        %3117 = vmatprep.subr.bf16.mxu0 0
        %3118 = vmatpush1.bf16.msra.mxu0 0
        %3119 = vmatprep.subr.bf16.mxu0 0
        %3120 = vmatpush1.bf16.msra.mxu0 0
        %3121 = vmatprep.subr.bf16.mxu0 0
        %3122 = vmatpush1.bf16.msra.mxu0 0
        %3123 = vmatprep.subr.bf16.mxu0 0
        %3124 = vmatpush1.bf16.msra.mxu0 0
        %3125 = vmatprep.subr.bf16.mxu0 0
        %3126 = vmatpush1.bf16.msra.mxu0 0
        %3127 = vmatprep.subr.bf16.mxu0 0
        %3128 = vmatpush1.bf16.msra.mxu0 0
        %3129 = vmatprep.subr.bf16.mxu0 0
        %3130 = vmatpush1.bf16.msra.mxu0 0
        %3131 = vmatprep.subr.bf16.mxu0 0
        %3132 = vmatpush1.bf16.msra.mxu0 0
        %3133 = vmatprep.subr.bf16.mxu0 0
        %3134 = vmatpush1.bf16.msra.mxu0 0
        %3135 = vmatprep.subr.bf16.mxu0 0
        %3136 = vmatpush1.bf16.msra.mxu0 0
        %3137 = vmatprep.subr.bf16.mxu0 0
        %3138 = vmatpush1.bf16.msra.mxu0 0
        %3139 = vmatprep.mubr.bf16.mxu0 0
        %3140 = vmatmul.mubr.bf16.gmra.mrb[0].mxu0 %v3096
        %v3141 = vpop.f32.mrb[0].mxu0
        %v3142 = vadd.f32 0.0, %v3141
        %v3143 = vpop.f32.mrb[0].mxu0
        %v3144 = vpop.f32.mrb[0].mxu0
        %v3145 = vadd.f32 0.0, %v3144
        %v3146 = vpop.f32.mrb[0].mxu0
        %3147 = vmatprep.mubr.bf16.mxu0 0
        %3148 = vmatmul.mubr.bf16.gmra.mrb[0].mxu0 %v3099
        %v3149 = vpop.f32.mrb[0].mxu0
        %v3150 = vadd.f32 0.0, %v3149
        %v3151 = vpop.f32.mrb[0].mxu0
        %v3152 = vpop.f32.mrb[0].mxu0
        %v3153 = vadd.f32 0.0, %v3152
        %v3154 = vpop.f32.mrb[0].mxu0
        %3155 = vmatprep.mubr.bf16.mxu0 0
        %3156 = vmatmul.mubr.bf16.gmra.mrb[0].mxu0 %v3102
        %v3157 = vpop.f32.mrb[0].mxu0
        %v3158 = vadd.f32 0.0, %v3157
        %v3159 = vpop.f32.mrb[0].mxu0
        %v3160 = vpop.f32.mrb[0].mxu0
        %v3161 = vadd.f32 0.0, %v3160
        %v3162 = vpop.f32.mrb[0].mxu0
        %3163 = vmatprep.mubr.bf16.mxu0 0
        %3164 = vmatmul.mubr.bf16.gmra.mrb[0].mxu0 %v3105
        %v3165 = vpop.f32.mrb[0].mxu0
        %v3166 = vadd.f32 0.0, %v3165
        %v3167 = vpop.f32.mrb[0].mxu0
        %v3168 = vpop.f32.mrb[0].mxu0
        %v3169 = vadd.f32 0.0, %v3168
        %v3170 = vpop.f32.mrb[0].mxu0
        %3171 = vdwg.mxu0
        %v3180 = vunpack.c.l.b16 %v2954
        %v3181 = vunpack.c.l.b16 %v2955
        %v3182 = vunpack.c.l.b16 %v2956
        %v3183 = vunpack.c.l.b16 %v2957
        %v3184 = vunpack.c.l.b16 %v2958
        %v3185 = vunpack.c.l.b16 %v2959
        %v3186 = vunpack.c.l.b16 %v2960
        %v3187 = vunpack.c.l.b16 %v2961
        %v3188 = vpack.c.b16 %v3181, %v3180
        %v3189 = vpack.c.b16 %v3183, %v3182
        %v3190 = vpack.c.b16 %v3185, %v3184
        %v3191 = vpack.c.b16 %v3187, %v3186
        %v3196 = vunpack.c.l.b16 %v2962
        %v3197 = vunpack.c.l.b16 %v2963
        %v3198 = vunpack.c.l.b16 %v2964
        %v3199 = vunpack.c.l.b16 %v2965
        %v3200 = vpack.c.b16 %v3197, %v3196
        %v3201 = vpack.c.b16 %v3199, %v3198
        %v3205 = vsel %vm2720, %v3188, 0
        %v3208 = vsel %vm2720, %v3189, 0
        %v3211 = vsel %vm2720, %v3190, 0
        %v3214 = vsel %vm2720, %v3191, 0
        %3216 = vmatprep.subr.bf16.mxu0 0
        %3217 = vmatpush1.bf16.msra.mxu0 %v3200
        %3218 = vmatprep.subr.bf16.mxu0 0
        %3219 = vmatpush1.bf16.msra.mxu0 %v3201
        %3220 = vmatprep.subr.bf16.mxu0 0
        %3221 = vmatpush1.bf16.msra.mxu0 0
        %3222 = vmatprep.subr.bf16.mxu0 0
        %3223 = vmatpush1.bf16.msra.mxu0 0
        %3224 = vmatprep.subr.bf16.mxu0 0
        %3225 = vmatpush1.bf16.msra.mxu0 0
        %3226 = vmatprep.subr.bf16.mxu0 0
        %3227 = vmatpush1.bf16.msra.mxu0 0
        %3228 = vmatprep.subr.bf16.mxu0 0
        %3229 = vmatpush1.bf16.msra.mxu0 0
        %3230 = vmatprep.subr.bf16.mxu0 0
        %3231 = vmatpush1.bf16.msra.mxu0 0
        %3232 = vmatprep.subr.bf16.mxu0 0
        %3233 = vmatpush1.bf16.msra.mxu0 0
        %3234 = vmatprep.subr.bf16.mxu0 0
        %3235 = vmatpush1.bf16.msra.mxu0 0
        %3236 = vmatprep.subr.bf16.mxu0 0
        %3237 = vmatpush1.bf16.msra.mxu0 0
        %3238 = vmatprep.subr.bf16.mxu0 0
        %3239 = vmatpush1.bf16.msra.mxu0 0
        %3240 = vmatprep.subr.bf16.mxu0 0
        %3241 = vmatpush1.bf16.msra.mxu0 0
        %3242 = vmatprep.subr.bf16.mxu0 0
        %3243 = vmatpush1.bf16.msra.mxu0 0
        %3244 = vmatprep.subr.bf16.mxu0 0
        %3245 = vmatpush1.bf16.msra.mxu0 0
        %3246 = vmatprep.subr.bf16.mxu0 0
        %3247 = vmatpush1.bf16.msra.mxu0 0
        %3248 = vmatprep.mubr.bf16.mxu0 0
        %3249 = vmatmul.mubr.bf16.gmra.mrb[0].mxu0 %v3205
        %v3250 = vpop.f32.mrb[0].mxu0
        %v3251 = vadd.f32 %v3142, %v3250
        %v3252 = vpop.f32.mrb[0].mxu0
        %v3253 = vpop.f32.mrb[0].mxu0
        %v3254 = vadd.f32 %v3145, %v3253
        %v3255 = vpop.f32.mrb[0].mxu0
        %3256 = vmatprep.mubr.bf16.mxu0 0
        %3257 = vmatmul.mubr.bf16.gmra.mrb[0].mxu0 %v3208
        %v3258 = vpop.f32.mrb[0].mxu0
        %v3259 = vadd.f32 %v3150, %v3258
        %v3260 = vpop.f32.mrb[0].mxu0
        %v3261 = vpop.f32.mrb[0].mxu0
        %v3262 = vadd.f32 %v3153, %v3261
        %v3263 = vpop.f32.mrb[0].mxu0
        %3264 = vmatprep.mubr.bf16.mxu0 0
        %3265 = vmatmul.mubr.bf16.gmra.mrb[0].mxu0 %v3211
        %v3266 = vpop.f32.mrb[0].mxu0
        %v3267 = vadd.f32 %v3158, %v3266
        %v3268 = vpop.f32.mrb[0].mxu0
        %v3269 = vpop.f32.mrb[0].mxu0
        %v3270 = vadd.f32 %v3161, %v3269
        %v3271 = vpop.f32.mrb[0].mxu0
        %3272 = vmatprep.mubr.bf16.mxu0 0
        %3273 = vmatmul.mubr.bf16.gmra.mrb[0].mxu0 %v3214
        %v3274 = vpop.f32.mrb[0].mxu0
        %v3275 = vadd.f32 %v3166, %v3274
        %v3276 = vpop.f32.mrb[0].mxu0
        %v3277 = vpop.f32.mrb[0].mxu0
        %v3278 = vadd.f32 %v3169, %v3277
        %v3279 = vpop.f32.mrb[0].mxu0
        %3280 = vdwg.mxu0
        %v3281 = vld [vmem:[#allocation3] sm:$0xe]
        %v3282 = vld [vmem:[#allocation3 + $0xc] sm:$0xe]
        %v3283 = vld [vmem:[#allocation3 + $0x18] sm:$0xe]
        %v3284 = vld [vmem:[#allocation3 + $0x24] sm:$0xe]
        %v3293 = vrot.slane %v3281, 5
        %v3294 = vrot.slane %v3293, 4
        %v3295 = vrot.slane %v2955, 5
        %v3296 = vsel %vm1225, %v3294, %v3295
        %v3297 = vrot.slane %v3295, 4
        %v3298 = vrot.slane %v2966, 5
        %v3299 = vsel %vm1225, %v3297, %v3298
        %v3300 = vrot.slane %v3282, 5
        %v3301 = vrot.slane %v3300, 4
        %v3302 = vrot.slane %v2957, 5
        %v3303 = vsel %vm1225, %v3301, %v3302
        %v3304 = vrot.slane %v3302, 4
        %v3305 = vrot.slane %v2967, 5
        %v3306 = vsel %vm1225, %v3304, %v3305
        %v3307 = vrot.slane %v3283, 5
        %v3308 = vrot.slane %v3307, 4
        %v3309 = vrot.slane %v2959, 5
        %v3310 = vsel %vm1225, %v3308, %v3309
        %v3311 = vrot.slane %v3309, 4
        %v3312 = vrot.slane %v2968, 5
        %v3313 = vsel %vm1225, %v3311, %v3312
        %v3314 = vrot.slane %v3284, 5
        %v3315 = vrot.slane %v3314, 4
        %v3316 = vrot.slane %v2961, 5
        %v3317 = vsel %vm1225, %v3315, %v3316
        %v3318 = vrot.slane %v3316, 4
        %v3319 = vrot.slane %v2969, 5
        %v3320 = vsel %vm1225, %v3318, %v3319
        %s3321 = scalar_lea.vmem %s8, 32
        %v3322 = vld [vmem:[%s3321] sm:$0xf]
        %v3323 = vld [vmem:[%s3321 + $0x4] sm:$0xf]
        %v3324 = vld [vmem:[%s3321 + $0x8] sm:$0xf]
        %v3325 = vld [vmem:[%s3321 + $0xc] sm:$0xf]
        %v3326 = vunpack.c.l.b16 %v3296
        %v3327 = vunpack.c.l.b16 %v3299
        %v3328 = vunpack.c.l.b16 %v3303
        %v3329 = vunpack.c.l.b16 %v3306
        %v3330 = vunpack.c.l.b16 %v3310
        %v3331 = vunpack.c.l.b16 %v3313
        %v3332 = vunpack.c.l.b16 %v3317
        %v3333 = vunpack.c.l.b16 %v3320
        %v3334 = vpack.c.b16 %v3327, %v3326
        %v3335 = vpack.c.b16 %v3329, %v3328
        %v3336 = vpack.c.b16 %v3331, %v3330
        %v3337 = vpack.c.b16 %v3333, %v3332
        %v3342 = vunpack.c.l.b16 %v3322
        %v3343 = vunpack.c.l.b16 %v3323
        %v3344 = vunpack.c.l.b16 %v3324
        %v3345 = vunpack.c.l.b16 %v3325
        %v3346 = vpack.c.b16 %v3343, %v3342
        %v3347 = vpack.c.b16 %v3345, %v3344
        %v3351 = vsel %vm2720, %v3334, 0
        %v3354 = vsel %vm2720, %v3335, 0
        %v3357 = vsel %vm2720, %v3336, 0
        %v3360 = vsel %vm2720, %v3337, 0
        %3362 = vmatprep.subr.bf16.mxu0 0
        %3363 = vmatpush1.bf16.msra.mxu0 %v3346
        %3364 = vmatprep.subr.bf16.mxu0 0
        %3365 = vmatpush1.bf16.msra.mxu0 %v3347
        %3366 = vmatprep.subr.bf16.mxu0 0
        %3367 = vmatpush1.bf16.msra.mxu0 0
        %3368 = vmatprep.subr.bf16.mxu0 0
        %3369 = vmatpush1.bf16.msra.mxu0 0
        %3370 = vmatprep.subr.bf16.mxu0 0
        %3371 = vmatpush1.bf16.msra.mxu0 0
        %3372 = vmatprep.subr.bf16.mxu0 0
        %3373 = vmatpush1.bf16.msra.mxu0 0
        %3374 = vmatprep.subr.bf16.mxu0 0
        %3375 = vmatpush1.bf16.msra.mxu0 0
        %3376 = vmatprep.subr.bf16.mxu0 0
        %3377 = vmatpush1.bf16.msra.mxu0 0
        %3378 = vmatprep.subr.bf16.mxu0 0
        %3379 = vmatpush1.bf16.msra.mxu0 0
        %3380 = vmatprep.subr.bf16.mxu0 0
        %3381 = vmatpush1.bf16.msra.mxu0 0
        %3382 = vmatprep.subr.bf16.mxu0 0
        %3383 = vmatpush1.bf16.msra.mxu0 0
        %3384 = vmatprep.subr.bf16.mxu0 0
        %3385 = vmatpush1.bf16.msra.mxu0 0
        %3386 = vmatprep.subr.bf16.mxu0 0
        %3387 = vmatpush1.bf16.msra.mxu0 0
        %3388 = vmatprep.subr.bf16.mxu0 0
        %3389 = vmatpush1.bf16.msra.mxu0 0
        %3390 = vmatprep.subr.bf16.mxu0 0
        %3391 = vmatpush1.bf16.msra.mxu0 0
        %3392 = vmatprep.subr.bf16.mxu0 0
        %3393 = vmatpush1.bf16.msra.mxu0 0
        %3394 = vmatprep.mubr.bf16.mxu0 0
        %3395 = vmatmul.mubr.bf16.gmra.mrb[0].mxu0 %v3351
        %v3396 = vpop.f32.mrb[0].mxu0
        %v3397 = vadd.f32 0.0, %v3396
        %v3398 = vpop.f32.mrb[0].mxu0
        %v3399 = vpop.f32.mrb[0].mxu0
        %v3400 = vadd.f32 0.0, %v3399
        %v3401 = vpop.f32.mrb[0].mxu0
        %3402 = vmatprep.mubr.bf16.mxu0 0
        %3403 = vmatmul.mubr.bf16.gmra.mrb[0].mxu0 %v3354
        %v3404 = vpop.f32.mrb[0].mxu0
        %v3405 = vadd.f32 0.0, %v3404
        %v3406 = vpop.f32.mrb[0].mxu0
        %v3407 = vpop.f32.mrb[0].mxu0
        %v3408 = vadd.f32 0.0, %v3407
        %v3409 = vpop.f32.mrb[0].mxu0
        %3410 = vmatprep.mubr.bf16.mxu0 0
        %3411 = vmatmul.mubr.bf16.gmra.mrb[0].mxu0 %v3357
        %v3412 = vpop.f32.mrb[0].mxu0
        %v3413 = vadd.f32 0.0, %v3412
        %v3414 = vpop.f32.mrb[0].mxu0
        %v3415 = vpop.f32.mrb[0].mxu0
        %v3416 = vadd.f32 0.0, %v3415
        %v3417 = vpop.f32.mrb[0].mxu0
        %3418 = vmatprep.mubr.bf16.mxu0 0
        %3419 = vmatmul.mubr.bf16.gmra.mrb[0].mxu0 %v3360
        %v3420 = vpop.f32.mrb[0].mxu0
        %v3421 = vadd.f32 0.0, %v3420
        %v3422 = vpop.f32.mrb[0].mxu0
        %v3423 = vpop.f32.mrb[0].mxu0
        %v3424 = vadd.f32 0.0, %v3423
        %v3425 = vpop.f32.mrb[0].mxu0
        %3426 = vdwg.mxu0
        %v3427 = vadd.f32 %v3251, %v3397
        %v3428 = vadd.f32 %v3254, %v3400
        %v3429 = vadd.f32 %v3259, %v3405
        %v3430 = vadd.f32 %v3262, %v3408
        %v3431 = vadd.f32 %v3267, %v3413
        %v3432 = vadd.f32 %v3270, %v3416
        %v3433 = vadd.f32 %v3275, %v3421
        %v3434 = vadd.f32 %v3278, %v3424
        %v3435 = vsel %vm638, %v3427, 0.0
        %v3436 = vsel %vm638, %v3428, 0.0
        %v3437 = vadd.f32 %v3435, %v3436
        %v3438 = vsel %vm638, %v3429, 0.0
        %v3439 = vadd.f32 %v3437, %v3438
        %v3440 = vsel %vm638, %v3430, 0.0
        %v3441 = vadd.f32 %v3439, %v3440
        %v3442 = vsel %vm638, %v3431, 0.0
        %v3443 = vadd.f32 %v3441, %v3442
        %v3444 = vsel %vm638, %v3432, 0.0
        %v3445 = vadd.f32 %v3443, %v3444
        %v3446 = vsel %vm638, %v3433, 0.0
        %v3447 = vadd.f32 %v3445, %v3446
        %v3448 = vsel %vm638, %v3434, 0.0
        %v3449 = vadd.f32 %v3447, %v3448
        %v3450 = vrot.slane %v3449, 4
        %v3451 = vadd.f32 %v3449, %v3450
        %v3452 = vrot.slane %v3451, 2
        %v3453 = vadd.f32 %v3451, %v3452
        %v3454 = vrot.slane %v3453, 1
        %v3455 = vadd.f32 %v3453, %v3454
        %v3456 = vmul.f32 %v3455, 0.015625
        %v3457 = vsub.f32 %v3427, %v3456
        %v3458 = vsub.f32 %v3428, %v3456
        %v3459 = vsub.f32 %v3429, %v3456
        %v3460 = vsub.f32 %v3430, %v3456
        %v3461 = vsub.f32 %v3431, %v3456
        %v3462 = vsub.f32 %v3432, %v3456
        %v3463 = vsub.f32 %v3433, %v3456
        %v3464 = vsub.f32 %v3434, %v3456
        %v3465 = vmul.f32 %v3457, %v3457
        %v3466 = vmul.f32 %v3458, %v3458
        %v3467 = vmul.f32 %v3459, %v3459
        %v3468 = vmul.f32 %v3460, %v3460
        %v3469 = vmul.f32 %v3461, %v3461
        %v3470 = vmul.f32 %v3462, %v3462
        %v3471 = vmul.f32 %v3463, %v3463
        %v3472 = vmul.f32 %v3464, %v3464
        %v3473 = vsel %vm638, %v3465, 0.0
        %v3474 = vsel %vm638, %v3466, 0.0
        %v3475 = vadd.f32 %v3473, %v3474
        %v3476 = vsel %vm638, %v3467, 0.0
        %v3477 = vadd.f32 %v3475, %v3476
        %v3478 = vsel %vm638, %v3468, 0.0
        %v3479 = vadd.f32 %v3477, %v3478
        %v3480 = vsel %vm638, %v3469, 0.0
        %v3481 = vadd.f32 %v3479, %v3480
        %v3482 = vsel %vm638, %v3470, 0.0
        %v3483 = vadd.f32 %v3481, %v3482
        %v3484 = vsel %vm638, %v3471, 0.0
        %v3485 = vadd.f32 %v3483, %v3484
        %v3486 = vsel %vm638, %v3472, 0.0
        %v3487 = vadd.f32 %v3485, %v3486
        %v3488 = vrot.slane %v3487, 4
        %v3489 = vadd.f32 %v3487, %v3488
        %v3490 = vrot.slane %v3489, 2
        %v3491 = vadd.f32 %v3489, %v3490
        %v3492 = vrot.slane %v3491, 1
        %v3493 = vadd.f32 %v3491, %v3492
        %v3494 = vmul.f32 %v3493, 0.015625
        %v3495 = vld [vmem:[%s9] sm:$0x1]
        %v3496 = vadd.f32 %v3494, 1e-05
        %v3497 = vrsqrt.pop %v3496
        %v3498 = vmul.f32 %v3495, %v3497
        %v3499 = vlaneseq
        %v3500 = vshrl.u32 %v3499, 7
        %v3501 = vsub.s32 0, %v3500
        %v3502 = vrot.slane %v3498, %v3501
        %v3503 = vmul.f32 %v3457, %v3502
        %v3504 = vmul.f32 %v3458, %v3502
        %v3505 = vmul.f32 %v3459, %v3502
        %v3506 = vmul.f32 %v3460, %v3502
        %v3507 = vmul.f32 %v3461, %v3502
        %v3508 = vmul.f32 %v3462, %v3502
        %v3509 = vmul.f32 %v3463, %v3502
        %v3510 = vmul.f32 %v3464, %v3502
        %v3511 = vld [vmem:[%s9 + $0x1] sm:$0x1]
        %v3512 = vlaneseq
        %v3513 = vshrl.u32 %v3512, 7
        %v3514 = vsub.s32 0, %v3513
        %v3515 = vrot.slane %v3511, %v3514
        %v3516 = vadd.f32 %v3503, %v3515
        %v3517 = vadd.f32 %v3504, %v3515
        %v3518 = vadd.f32 %v3505, %v3515
        %v3519 = vadd.f32 %v3506, %v3515
        %v3520 = vadd.f32 %v3507, %v3515
        %v3521 = vadd.f32 %v3508, %v3515
        %v3522 = vadd.f32 %v3509, %v3515
        %v3523 = vadd.f32 %v3510, %v3515
        %v3524 = vmax.f32 %v3516, 0.0
        %v3525 = vmax.f32 %v3517, 0.0
        %v3526 = vmax.f32 %v3518, 0.0
        %v3527 = vmax.f32 %v3519, 0.0
        %v3528 = vmax.f32 %v3520, 0.0
        %v3529 = vmax.f32 %v3521, 0.0
        %v3530 = vmax.f32 %v3522, 0.0
        %v3531 = vmax.f32 %v3523, 0.0
        %v3532 = vsel %vm638, %v3524, 0.0
        %v3533 = vsel %vm638, %v3525, 0.0
        %v3534 = vadd.f32 %v3532, %v3533
        %v3535 = vrot.slane %v3534, 4
        %v3536 = vadd.f32 %v3534, %v3535
        %v3537 = vrot.slane %v3536, 2
        %v3538 = vadd.f32 %v3536, %v3537
        %v3539 = vrot.slane %v3538, 1
        %v3540 = vadd.f32 %v3538, %v3539
        %v3541 = vsel %vm638, %v3526, 0.0
        %v3542 = vsel %vm638, %v3527, 0.0
        %v3543 = vadd.f32 %v3541, %v3542
        %v3544 = vrot.slane %v3543, 4
        %v3545 = vadd.f32 %v3543, %v3544
        %v3546 = vrot.slane %v3545, 2
        %v3547 = vadd.f32 %v3545, %v3546
        %v3548 = vrot.slane %v3547, 1
        %v3549 = vadd.f32 %v3547, %v3548
        %v3550 = vsel %vm638, %v3528, 0.0
        %v3551 = vsel %vm638, %v3529, 0.0
        %v3552 = vadd.f32 %v3550, %v3551
        %v3553 = vrot.slane %v3552, 4
        %v3554 = vadd.f32 %v3552, %v3553
        %v3555 = vrot.slane %v3554, 2
        %v3556 = vadd.f32 %v3554, %v3555
        %v3557 = vrot.slane %v3556, 1
        %v3558 = vadd.f32 %v3556, %v3557
        %v3559 = vsel %vm638, %v3530, 0.0
        %v3560 = vsel %vm638, %v3531, 0.0
        %v3561 = vadd.f32 %v3559, %v3560
        %v3562 = vrot.slane %v3561, 4
        %v3563 = vadd.f32 %v3561, %v3562
        %v3564 = vrot.slane %v3563, 2
        %v3565 = vadd.f32 %v3563, %v3564
        %v3566 = vrot.slane %v3565, 1
        %v3567 = vadd.f32 %v3565, %v3566
        %v3568 = vrcp.pop 16.0
        %v3569 = vmul.f32 %v3540, %v3568
        %v3570 = vmul.f32 %v3549, %v3568
        %v3571 = vmul.f32 %v3558, %v3568
        %v3572 = vmul.f32 %v3567, %v3568
        %v3573 = vpack.c.bf16 %v3569, %v3569
        %v3574 = vpack.c.bf16 %v3570, %v3570
        %v3575 = vpack.c.bf16 %v3571, %v3571
        %v3576 = vpack.c.bf16 %v3572, %v3572
        %v3577 = vld [vmem:[%s10] sm:$0xf]
        %v3578 = vld [vmem:[%s10 + $0x4] sm:$0xf]
        %v3579 = vld [vmem:[%s10 + $0x8] sm:$0xf]
        %v3580 = vld [vmem:[%s10 + $0xc] sm:$0xf]
        %v3581 = vld [vmem:[%s10 + $0x10] sm:$0xf]
        %v3582 = vld [vmem:[%s10 + $0x14] sm:$0xf]
        %v3583 = vld [vmem:[%s10 + $0x18] sm:$0xf]
        %v3584 = vld [vmem:[%s10 + $0x1c] sm:$0xf]
        %v3585 = vld [vmem:[%s11] sm:$0x1]
        %v3587 = vlaneseq
        %v3588 = vshrl.u32 %v3587, 7
        %v3589 = vsub.s32 0, %v3588
        %v3590 = vrot.slane %v3585, %v3589
        %v3596 = vunpack.c.l.b16 %v3573
        %v3597 = vunpack.c.l.b16 %v3574
        %v3598 = vunpack.c.l.b16 %v3575
        %v3599 = vunpack.c.l.b16 %v3576
        %vm3600 = vcmask 1041409
        %v3601 = vsel %vm3600, %v3597, %v3596
        %vm3602 = vcmask 1042434
        %v3603 = vsel %vm3602, %v3598, %v3601
        %vm3604 = vcmask 1043459
        %v3605 = vsel %vm3604, %v3599, %v3603
        %v3606 = vpack.c.b16 %v3605, %v3605
        %v3615 = vunpack.c.l.b16 %v3577
        %v3616 = vunpack.c.l.b16 %v3578
        %v3617 = vunpack.c.l.b16 %v3579
        %v3618 = vunpack.c.l.b16 %v3580
        %v3619 = vunpack.c.l.b16 %v3581
        %v3620 = vunpack.c.l.b16 %v3582
        %v3621 = vunpack.c.l.b16 %v3583
        %v3622 = vunpack.c.l.b16 %v3584
        %v3623 = vpack.c.b16 %v3616, %v3615
        %v3624 = vpack.c.b16 %v3618, %v3617
        %v3625 = vpack.c.b16 %v3620, %v3619
        %v3626 = vpack.c.b16 %v3622, %v3621
        %v3632 = vsel %vm638, %v3606, 0
        %3634 = vmatprep.subr.bf16.mxu0 0
        %3635 = vmatpush1.bf16.msra.mxu0 %v3623
        %3636 = vmatprep.subr.bf16.mxu0 0
        %3637 = vmatpush1.bf16.msra.mxu0 %v3624
        %3638 = vmatprep.subr.bf16.mxu0 0
        %3639 = vmatpush1.bf16.msra.mxu0 %v3625
        %3640 = vmatprep.subr.bf16.mxu0 0
        %3641 = vmatpush1.bf16.msra.mxu0 %v3626
        %3642 = vmatprep.subr.bf16.mxu0 0
        %3643 = vmatpush1.bf16.msra.mxu0 0
        %3644 = vmatprep.subr.bf16.mxu0 0
        %3645 = vmatpush1.bf16.msra.mxu0 0
        %3646 = vmatprep.subr.bf16.mxu0 0
        %3647 = vmatpush1.bf16.msra.mxu0 0
        %3648 = vmatprep.subr.bf16.mxu0 0
        %3649 = vmatpush1.bf16.msra.mxu0 0
        %3650 = vmatprep.subr.bf16.mxu0 0
        %3651 = vmatpush1.bf16.msra.mxu0 0
        %3652 = vmatprep.subr.bf16.mxu0 0
        %3653 = vmatpush1.bf16.msra.mxu0 0
        %3654 = vmatprep.subr.bf16.mxu0 0
        %3655 = vmatpush1.bf16.msra.mxu0 0
        %3656 = vmatprep.subr.bf16.mxu0 0
        %3657 = vmatpush1.bf16.msra.mxu0 0
        %3658 = vmatprep.subr.bf16.mxu0 0
        %3659 = vmatpush1.bf16.msra.mxu0 0
        %3660 = vmatprep.subr.bf16.mxu0 0
        %3661 = vmatpush1.bf16.msra.mxu0 0
        %3662 = vmatprep.subr.bf16.mxu0 0
        %3663 = vmatpush1.bf16.msra.mxu0 0
        %3664 = vmatprep.subr.bf16.mxu0 0
        %3665 = vmatpush1.bf16.msra.mxu0 0
        %3666 = vmatprep.mubr.bf16.mxu0 0
        %3667 = vmatmul.mubr.bf16.gmra.mrb[0].mxu0 %v3632
        %v3668 = vpop.f32.mrb[0].mxu0
        %v3669 = vadd.f32 %v3590, %v3668
        %v3670 = vpop.f32.mrb[0].mxu0
        %v3671 = vpop.f32.mrb[0].mxu0
        %v3672 = vpop.f32.mrb[0].mxu0
        %3673 = vdwg.mxu0
        %v3674 = vmax.f32 %v3669, 0.0
        %v3675 = vsel %vm2926, %v3674, -inf
        %v3676 = vrot.slane %v3675, 4
        %v3677 = vmax.f32 %v3675, %v3676
        %v3678 = vrot.slane %v3677, 2
        %v3679 = vmax.f32 %v3677, %v3678
        %v3680 = vrot.slane %v3679, 1
        %v3681 = vmax.f32 %v3679, %v3680
        %v3682 = vpack.c.bf16 %v3681, %v3681
        %v3683 = vld [vmem:[%s12] sm:$0xf]
        %v3684 = vld [vmem:[%s12 + $0x4] sm:$0xf]
        %v3685 = vld [vmem:[%s12 + $0x8] sm:$0xf]
        %v3686 = vld [vmem:[%s12 + $0xc] sm:$0xf]
        %v3687 = vld [vmem:[%s13] sm:$0x1]
        %v3692 = vunpack.c.l.b16 %v3683
        %v3693 = vunpack.c.l.b16 %v3684
        %v3694 = vunpack.c.l.b16 %v3685
        %v3695 = vunpack.c.l.b16 %v3686
        %v3696 = vpack.c.b16 %v3693, %v3692
        %v3697 = vpack.c.b16 %v3695, %v3694
        %v3701 = vsel %vm2720, %v3682, 0
        %3703 = vmatprep.subr.bf16.mxu0 0
        %3704 = vmatpush1.bf16.msra.mxu0 %v3696
        %3705 = vmatprep.subr.bf16.mxu0 0
        %3706 = vmatpush1.bf16.msra.mxu0 %v3697
        %3707 = vmatprep.subr.bf16.mxu0 0
        %3708 = vmatpush1.bf16.msra.mxu0 0
        %3709 = vmatprep.subr.bf16.mxu0 0
        %3710 = vmatpush1.bf16.msra.mxu0 0
        %3711 = vmatprep.subr.bf16.mxu0 0
        %3712 = vmatpush1.bf16.msra.mxu0 0
        %3713 = vmatprep.subr.bf16.mxu0 0
        %3714 = vmatpush1.bf16.msra.mxu0 0
        %3715 = vmatprep.subr.bf16.mxu0 0
        %3716 = vmatpush1.bf16.msra.mxu0 0
        %3717 = vmatprep.subr.bf16.mxu0 0
        %3718 = vmatpush1.bf16.msra.mxu0 0
        %3719 = vmatprep.subr.bf16.mxu0 0
        %3720 = vmatpush1.bf16.msra.mxu0 0
        %3721 = vmatprep.subr.bf16.mxu0 0
        %3722 = vmatpush1.bf16.msra.mxu0 0
        %3723 = vmatprep.subr.bf16.mxu0 0
        %3724 = vmatpush1.bf16.msra.mxu0 0
        %3725 = vmatprep.subr.bf16.mxu0 0
        %3726 = vmatpush1.bf16.msra.mxu0 0
        %3727 = vmatprep.subr.bf16.mxu0 0
        %3728 = vmatpush1.bf16.msra.mxu0 0
        %3729 = vmatprep.subr.bf16.mxu0 0
        %3730 = vmatpush1.bf16.msra.mxu0 0
        %3731 = vmatprep.subr.bf16.mxu0 0
        %3732 = vmatpush1.bf16.msra.mxu0 0
        %3733 = vmatprep.subr.bf16.mxu0 0
        %3734 = vmatpush1.bf16.msra.mxu0 0
        %3735 = vmatprep.mubr.bf16.mxu0 0
        %3736 = vmatmul.mubr.bf16.gmra.mrb[0].mxu0 %v3701
        %v3737 = vpop.f32.mrb[0].mxu0
        %v3738 = vadd.f32 %v3687, %v3737
        %v3739 = vpop.f32.mrb[0].mxu0
        %v3740 = vpop.f32.mrb[0].mxu0
        %v3741 = vpop.f32.mrb[0].mxu0
        %3742 = vdwg.mxu0
        %vm3743 = vcmask 188416
        %3744 = vst.msk [vmem:[%s14] sm:$0x1] %vm3743, %v3738
      $region80: #{model_forward.1} parent=75 // pred_fallthru
        _
      // Predicated region
      $region81: #{model_forward.1} parent=75 // pred_check
        %p3745 = pneg %p337
      $region82: #{model_forward.1} parent=75 // pred_check_branch
        %3747 = sbr.rel (%p3745) target = $region84
      $region83: #{model_forward.1} parent=75 // pred_region
        _
      $region84: #{model_forward.1} parent=75 // pred_fallthru
        _
      // Predicated region
      $region85: #{model_forward.1} parent=75 // pred_check
        %p3748 = pneg %p337
      $region86: #{model_forward.1} parent=75 // pred_check_branch
        %3750 = sbr.rel (%p3748) target = $region88
      $region87: #{model_forward.1} parent=75 // pred_region
        _
      $region88: #{model_forward.1} parent=75 // pred_fallthru
        _
    $region76: #{model_forward.1} parent=5 // pred_fallthru
      _
    %p3751 = scmp.le.s32.totalorder 2, %s20
    // Predicated region
    $region89: #{model_forward.1} parent=5 // pred_check
      %p3752 = pneg %p3751
    $region90: #{model_forward.1} parent=5 // pred_check_branch
      %3754 = sbr.rel (%p3752) target = $region92
    $region91: #{model_forward.1} parent=5 // pred_region
      %s3755 = ssub.s32 %s20, 2
    $region92: #{model_forward.1} parent=5 // pred_fallthru
      _
  $region6: #{model_forward.1} parent=0 // loop_footer
    %s24 = sadd.s32 1, %s20
  $region7: #{model_forward.1} parent=0 // loop_footer_branch
    %19 = sbr.rel target = $region3
  $region8: #{model_forward.1} parent=0 // loop_exit
    _

</llo_original>
